<compile_context>
chip_gen: v7x
topology: tpu7x:2x2x1
jax: 0.10.0
libtpu: 0.0.40
codegen_flags: <defaults>
</compile_context>

<pallas_src>
import functools

import jax
import jax.numpy as jnp
from jax.experimental import pallas as pl
from jax.experimental.pallas import tpu as pltpu


# ----------------------------- in-kernel helpers ----------------------------

def _ln(x, gamma, beta, eps=1e-5):
    # LayerNorm over the last dim, f32 statistics (PyTorch eps=1e-5).
    mu = jnp.mean(x, axis=-1, keepdims=True)
    var = jnp.mean(jnp.square(x - mu), axis=-1, keepdims=True)
    return (x - mu) * jax.lax.rsqrt(var + eps) * gamma + beta


# ------------------------------ fused kernel --------------------------------

def _decoder_kernel(tgt_ref, qpos_ref, mem_ref, memk_ref,
                    sa_wqk_ref, sa_wv_ref, sa_wo_ref,
                    ca_wq_ref, ca_wk_ref, ca_wv_ref, ca_wo_ref,
                    ffn_w1b_ref, ffn_w2_ref,
                    bias_ref, final_norm_ref,
                    out_ref, x_sc,
                    *, nhead, return_intermediate):
    n_layers = pl.num_programs(1)
    layer = pl.program_id(1)

    # Load the initial activation into the layer-carried VMEM scratch.
    @pl.when(layer == 0)
    def _():
        x_sc[...] = tgt_ref[...].astype(jnp.float32)

    x = x_sc[...]                                   # (TB, T, D) running act.
    qpos = qpos_ref[...].astype(jnp.float32)        # (TB, T, D)
    mem = mem_ref[...].astype(jnp.float32)          # (TB, S, D)
    memk = memk_ref[...].astype(jnp.float32)        # (TB, S, D) = memory + pos

    TB, T, D = x.shape
    S = mem.shape[1]
    dh = D // nhead
    rows_t = TB * T
    rows_s = TB * S

    # Packed per-layer biases + LayerNorm params (one DMA instead of ~12).
    bl = bias_ref[...].astype(jnp.float32)          # (16, D)
    sa_bq, sa_bk, sa_bv, sa_bo = bl[0:1], bl[1:2], bl[2:3], bl[3:4]
    ca_bq, ca_bk, ca_bv, ca_bo = bl[4:5], bl[5:6], bl[6:7], bl[7:8]
    ffn_b2 = bl[8:9]
    g1, be1, g2, be2, g3, be3 = (bl[9:10], bl[10:11], bl[11:12],
                                 bl[12:13], bl[13:14], bl[14:15])

    def mm(a, w):
        # Weights live in bf16 in HBM; cast the LHS to the weight dtype so the
        # MXU runs in its native low-precision mode, accumulate in f32.
        return jnp.dot(a.astype(w.dtype), w, preferred_element_type=jnp.float32)

    def attend(q, k, v):
        # q: (TB, Tq, D), k/v: (TB, Skv, D).  Heads are static lane slices;
        # head outputs are concatenated lane-wise so the output projection is
        # one full-D MXU matmul (done by the caller).
        # TODO(synk): switch to lax.fori_loop over heads if the unrolled loop
        # shows ld/st-slot pressure at real DETR sizes (nhead=8, S~850).
        heads = []
        for h in range(nhead):
            sl = slice(h * dh, (h + 1) * dh)
            s = jnp.einsum('bqd,bkd->bqk', q[..., sl], k[..., sl],
                           preferred_element_type=jnp.float32)   # (TB, Tq, Skv)
            s = s - jnp.max(s, axis=-1, keepdims=True)
            p = jnp.exp(s)
            p = p * pl.reciprocal(jnp.sum(p, axis=-1, keepdims=True),
                                  approx=False)                  # exact divide
            heads.append(jnp.einsum('bqk,bkd->bqd', p, v[..., sl],
                                    preferred_element_type=jnp.float32))
        return jnp.concatenate(heads, axis=-1)                   # (TB, Tq, D)

    # ---- self-attention (fused Q|K proj; softmax scale folded into Wq/bq) --
    xq = (x + qpos).reshape(rows_t, D)
    qk = mm(xq, sa_wqk_ref[...])                                 # (rows, 2D)
    q = (qk[:, :D] + sa_bq).reshape(TB, T, D)
    k = (qk[:, D:] + sa_bk).reshape(TB, T, D)
    v = (mm(x.reshape(rows_t, D), sa_wv_ref[...]) + sa_bv).reshape(TB, T, D)
    a = attend(q, k, v).reshape(rows_t, D)
    proj = (mm(a, sa_wo_ref[...]) + sa_bo).reshape(TB, T, D)
    x = _ln(x + proj, g1, be1)                      # residual fused into LN

    # ---- cross-attention (K input memory+pos precomputed in the wrapper) ---
    q = (mm((x + qpos).reshape(rows_t, D), ca_wq_ref[...]) + ca_bq
         ).reshape(TB, T, D)
    k = (mm(memk.reshape(rows_s, D), ca_wk_ref[...]) + ca_bk).reshape(TB, S, D)
    v = (mm(mem.reshape(rows_s, D), ca_wv_ref[...]) + ca_bv).reshape(TB, S, D)
    a = attend(q, k, v).reshape(rows_t, D)
    proj = (mm(a, ca_wo_ref[...]) + ca_bo).reshape(TB, T, D)
    x = _ln(x + proj, g2, be2)

    # ---- feed-forward (ReLU; dropout == identity in eval) ------------------
    w1b = ffn_w1b_ref[...]                          # (D+1, FF): W1 | b1 row
    h1 = jnp.maximum(
        mm(x.reshape(rows_t, D), w1b[:D, :]) + w1b[D:D + 1, :].astype(jnp.float32),
        0.0)
    f = (mm(h1, ffn_w2_ref[...]) + ffn_b2).reshape(TB, T, D)
    x = _ln(x + f, g3, be3)

    x_sc[...] = x                                   # carry to next layer

    fn = final_norm_ref[...].astype(jnp.float32)    # (2, D): [gamma, beta]
    if return_intermediate:
        out_ref[...] = _ln(x, fn[0:1], fn[1:2]).astype(out_ref.dtype)
    else:
        @pl.when(layer == n_layers - 1)
        def _():
            out_ref[...] = _ln(x, fn[0:1], fn[1:2]).astype(out_ref.dtype)


# ------------------------------- wrapper -------------------------------------

def transformer_decoder(tgt, memory, params, pos, query_pos, nhead,
                        return_intermediate=False, batch_blocks=None):
    # Interface matches PyTorch (batch_first=False): (T, B, D) / (S, B, D).
    T, B, D = tgt.shape
    S = memory.shape[0]
    L = params["sa_wqk"].shape[0]
    FF = params["ffn_w2"].shape[1]
    assert D % nhead == 0

    # Keep a small "parallel" axis (2-way when possible) so both v7x
    # TensorCores are used; fold the rest of the batch into in-block rows so
    # each layer's weights are streamed batch_blocks*L times, not B*L times.
    if batch_blocks is None:
        batch_blocks = 2 if (B % 2 == 0 and B >= 2) else 1
    assert B % batch_blocks == 0
    TBLK = B // batch_blocks

    # One batch-major relayout per tensor per forward; memory+pos precomputed
    # once so the per-layer cross-attention K add disappears.
    tgt_b = jnp.transpose(tgt, (1, 0, 2))
    qpos_b = jnp.transpose(query_pos, (1, 0, 2))
    mem_b = jnp.transpose(memory, (1, 0, 2))
    memk_b = jnp.transpose(memory + pos, (1, 0, 2))

    act_T = pl.BlockSpec((TBLK, T, D), lambda b, l: (b, 0, 0))
    act_S = pl.BlockSpec((TBLK, S, D), lambda b, l: (b, 0, 0))

    def wspec(*shape):
        # per-layer weight slab: leading (squeezed) layer axis indexed by l
        return pl.BlockSpec((None,) + shape, lambda b, l: (l,) + (0,) * len(shape))

    in_specs = [
        act_T, act_T, act_S, act_S,
        wspec(D, 2 * D),                         # sa_wqk (scale folded in)
        wspec(D, D), wspec(D, D),                # sa_wv, sa_wo
        wspec(D, D), wspec(D, D),                # ca_wq, ca_wk
        wspec(D, D), wspec(D, D),                # ca_wv, ca_wo
        wspec(D + 1, FF),                        # ffn_w1 (+ bias row)
        wspec(FF, D),                            # ffn_w2
        wspec(16, D),                            # packed biases + LN params
        pl.BlockSpec((2, D), lambda b, l: (0, 0)),   # final norm
    ]

    if return_intermediate:
        out_shape = jax.ShapeDtypeStruct((L, B, T, D), tgt.dtype)
        out_spec = pl.BlockSpec((None, TBLK, T, D), lambda b, l: (l, b, 0, 0))
    else:
        out_shape = jax.ShapeDtypeStruct((B, T, D), tgt.dtype)
        out_spec = pl.BlockSpec((TBLK, T, D), lambda b, l: (b, 0, 0))

    # ---- advisory cost estimate + explicit VMEM budget (v7x: 64 MiB phys) --
    w_isize = jnp.dtype(params["sa_wqk"].dtype).itemsize
    weight_bytes_layer = w_isize * (2 * D * D + 6 * D * D + (D + 1) * FF + FF * D)
    bias_bytes = 4 * (16 * D + 2 * D)
    flops = 2 * B * L * (D * D * (6 * T + 2 * S) + 2 * T * D * (T + S)
                         + 2 * T * D * FF)
    cost = pl.CostEstimate(
        flops=int(flops),
        transcendentals=int(B * L * nhead * (T * T + T * S)),
        bytes_accessed=int(batch_blocks * L * (weight_bytes_layer + bias_bytes)
                           + 4 * B * D * (2 * T + 2 * S)
                           + 4 * B * T * D * (L if return_intermediate else 1)))

    act_bytes = 4 * TBLK * D * (2 * T + 2 * S) + 4 * TBLK * T * D
    tmp_bytes = 4 * TBLK * (T * FF + 2 * nhead * T * max(T, S) + 8 * T * D)
    vmem_needed = (2 * (weight_bytes_layer + bias_bytes + act_bytes)
                   + 4 * TBLK * T * D + tmp_bytes)
    vmem_limit = int(min(100 * (2 ** 20), max(32 * (2 ** 20), 2 * vmem_needed)))

    kernel = functools.partial(_decoder_kernel, nhead=nhead,
                               return_intermediate=return_intermediate)

    out = pl.pallas_call(
        kernel,
        out_shape=out_shape,
        grid=(batch_blocks, L),
        in_specs=in_specs,
        out_specs=out_spec,
        scratch_shapes=[pltpu.VMEM((TBLK, T, D), jnp.float32)],
        compiler_params=pltpu.CompilerParams(
            dimension_semantics=("parallel", "arbitrary"),
            vmem_limit_bytes=vmem_limit),
        cost_estimate=cost,
    )(
        tgt_b, qpos_b, mem_b, memk_b,
        params["sa_wqk"], params["sa_wv"], params["sa_wo"],
        params["ca_wq"], params["ca_wk"], params["ca_wv"], params["ca_wo"],
        params["ffn_w1b"], params["ffn_w2"],
        params["bias_ln"], params["final_norm"],
    )

    if return_intermediate:
        return jnp.transpose(out, (0, 2, 1, 3))      # (L, T, B, D)
    return jnp.transpose(out, (1, 0, 2))[None]       # (1, T, B, D)


# ----------------------------- parameter init --------------------------------

def init_params(key, num_layers, d_model, nhead, dim_ff,
                weight_dtype=jnp.bfloat16):
    L, D, FF = num_layers, d_model, dim_ff
    dh = D // nhead
    scale = 1.0 / float(dh) ** 0.5

    def dense(k, *shape):
        return 0.02 * jax.random.normal(k, shape, jnp.float32)

    ks = jax.random.split(key, 9)

    sa_wqk = dense(ks[0], L, D, 2 * D)       # fused [Wq | Wk]
    sa_wv = dense(ks[1], L, D, D)
    sa_wo = dense(ks[2], L, D, D)
    ca_wq = dense(ks[3], L, D, D)
    ca_wk = dense(ks[4], L, D, D)
    ca_wv = dense(ks[5], L, D, D)
    ca_wo = dense(ks[6], L, D, D)
    ffn_w1 = dense(ks[7], L, D, FF)
    ffn_w2 = dense(ks[8], L, FF, D)

    # One-time fold of the 1/sqrt(dh) softmax scale into the Q projections
    # (do the same when importing a PyTorch checkpoint).
    sa_wqk = sa_wqk.at[:, :, :D].multiply(scale)
    ca_wq = ca_wq * scale

    # All per-layer biases + LayerNorm params packed into ONE (L, 16, D) slab:
    # rows: 0 sa_bq(*scale) 1 sa_bk 2 sa_bv 3 sa_bo 4 ca_bq(*scale) 5 ca_bk
    #       6 ca_bv 7 ca_bo 8 ffn_b2 9 g1 10 b1 11 g2 12 b2 13 g3 14 b3 15 pad
    bias_ln = jnp.zeros((L, 16, D), jnp.float32)
    bias_ln = bias_ln.at[:, 9, :].set(1.0)
    bias_ln = bias_ln.at[:, 11, :].set(1.0)
    bias_ln = bias_ln.at[:, 13, :].set(1.0)
    bias_ln = bias_ln.at[:, 0, :].multiply(scale)   # keep scale fold general
    bias_ln = bias_ln.at[:, 4, :].multiply(scale)

    # ffn_b1 rides as the last row of the W1 slab (saves one DMA stream).
    ffn_w1b = jnp.concatenate([ffn_w1, jnp.zeros((L, 1, FF), jnp.float32)],
                              axis=1)

    wd = weight_dtype
    return {
        "sa_wqk": sa_wqk.astype(wd),
        "sa_wv": sa_wv.astype(wd), "sa_wo": sa_wo.astype(wd),
        "ca_wq": ca_wq.astype(wd), "ca_wk": ca_wk.astype(wd),
        "ca_wv": ca_wv.astype(wd), "ca_wo": ca_wo.astype(wd),
        "ffn_w1b": ffn_w1b.astype(wd), "ffn_w2": ffn_w2.astype(wd),
        "bias_ln": bias_ln,                       # f32 (small, precise)
        # final decoder norm (DETR always provides one): rows [gamma, beta]
        "final_norm": jnp.stack([jnp.ones((D,), jnp.float32),
                                 jnp.zeros((D,), jnp.float32)]),
    }


# ---------------------------------- main --------------------------------------

if __name__ == "__main__":
    T, S, B, D = 8, 16, 2, 32           # num_queries, memory_len, batch, d_model
    NHEAD, DIM_FF, NUM_LAYERS = 4, 64, 2

    root = jax.random.PRNGKey(0)
    k_tgt, k_mem, k_pos, k_qpos, k_par = jax.random.split(root, 5)

    tgt = jax.random.normal(k_tgt, (T, B, D), jnp.float32)
    memory = jax.random.normal(k_mem, (S, B, D), jnp.float32)
    pos = jax.random.normal(k_pos, (S, B, D), jnp.float32)
    query_pos = jax.random.normal(k_qpos, (T, B, D), jnp.float32)

    params = init_params(k_par, NUM_LAYERS, D, NHEAD, DIM_FF)

    fwd = jax.jit(functools.partial(transformer_decoder, nhead=NHEAD,
                                    return_intermediate=False))
    out = fwd(tgt, memory, params, pos, query_pos)
    jax.block_until_ready(out)

    assert out.shape == (1, T, B, D), out.shape
    assert bool(jnp.all(jnp.isfinite(out)))
    print("KERNEL_OK")
</pallas_src>

<mosaic_0001>
module attributes {stable_mosaic.version = 11 : i64} {
  func.func @_decoder_kernel(%arg0: i32, %arg1: i32, %arg2: memref<1x8x32xf32, #tpu.memory_space<vmem>>, %arg3: memref<1x8x32xf32, #tpu.memory_space<vmem>>, %arg4: memref<1x16x32xf32, #tpu.memory_space<vmem>>, %arg5: memref<1x16x32xf32, #tpu.memory_space<vmem>>, %arg6: memref<1x32x64xbf16, #tpu.memory_space<vmem>>, %arg7: memref<1x32x32xbf16, #tpu.memory_space<vmem>>, %arg8: memref<1x32x32xbf16, #tpu.memory_space<vmem>>, %arg9: memref<1x32x32xbf16, #tpu.memory_space<vmem>>, %arg10: memref<1x32x32xbf16, #tpu.memory_space<vmem>>, %arg11: memref<1x32x32xbf16, #tpu.memory_space<vmem>>, %arg12: memref<1x32x32xbf16, #tpu.memory_space<vmem>>, %arg13: memref<1x33x64xbf16, #tpu.memory_space<vmem>>, %arg14: memref<1x64x32xbf16, #tpu.memory_space<vmem>>, %arg15: memref<1x16x32xf32, #tpu.memory_space<vmem>>, %arg16: memref<2x32xf32, #tpu.memory_space<vmem>>, %arg17: memref<1x8x32xf32, #tpu.memory_space<vmem>>, %arg18: memref<1x8x32xf32, #tpu.memory_space<vmem>>) attributes {dimension_semantics = [#tpu.dimension_semantics<parallel>, #tpu.dimension_semantics<arbitrary>], iteration_bounds = array<i64: 2, 2>, scalar_prefetch = 0 : i64, scratch_operands = 1 : i64, tpu.core_type = #tpu.core_type<tc>, window_params = [{transform_indices = @transform_0, window_bounds = array<i64: 1, 8, 32>}, {transform_indices = @transform_1, window_bounds = array<i64: 1, 8, 32>}, {transform_indices = @transform_2, window_bounds = array<i64: 1, 16, 32>}, {transform_indices = @transform_3, window_bounds = array<i64: 1, 16, 32>}, {transform_indices = @transform_4, window_bounds = array<i64: 1, 32, 64>}, {transform_indices = @transform_5, window_bounds = array<i64: 1, 32, 32>}, {transform_indices = @transform_6, window_bounds = array<i64: 1, 32, 32>}, {transform_indices = @transform_7, window_bounds = array<i64: 1, 32, 32>}, {transform_indices = @transform_8, window_bounds = array<i64: 1, 32, 32>}, {transform_indices = @transform_9, window_bounds = array<i64: 1, 32, 32>}, {transform_indices = @transform_10, window_bounds = array<i64: 1, 32, 32>}, {transform_indices = @transform_11, window_bounds = array<i64: 1, 33, 64>}, {transform_indices = @transform_12, window_bounds = array<i64: 1, 64, 32>}, {transform_indices = @transform_13, window_bounds = array<i64: 1, 16, 32>}, {pipeline_mode = #tpu.pipeline_mode<synchronous>, transform_indices = @transform_14, window_bounds = array<i64: 2, 32>}, {transform_indices = @transform_15, window_bounds = array<i64: 1, 8, 32>}]} {
    %c0_i32 = arith.constant 0 : i32
    %0 = arith.cmpi eq, %arg1, %c0_i32 : i32
    %1 = arith.extui %0 : i1 to i32
    %c0_i32_0 = arith.constant 0 : i32
    %2 = arith.cmpi ne, %1, %c0_i32_0 : i32
    scf.if %2 {
      %c0_104 = arith.constant 0 : index
      %c0_105 = arith.constant 0 : index
      %c0_106 = arith.constant 0 : index
      %308 = vector.load %arg2[%c0_104, %c0_105, %c0_106] : memref<1x8x32xf32, #tpu.memory_space<vmem>>, vector<1x8x32xf32>
      %c0_107 = arith.constant 0 : index
      %c0_108 = arith.constant 0 : index
      %c0_109 = arith.constant 0 : index
      %309 = vector.load %arg18[%c0_107, %c0_108, %c0_109] : memref<1x8x32xf32, #tpu.memory_space<vmem>>, vector<1x8x32xf32>
      tpu.vector_store %arg18[%c0_107, %c0_108, %c0_109], %308 {strides = array<i32>} : memref<1x8x32xf32, #tpu.memory_space<vmem>>, vector<1x8x32xf32>,
    } else {
    }
    %c0 = arith.constant 0 : index
    %c0_1 = arith.constant 0 : index
    %c0_2 = arith.constant 0 : index
    %3 = vector.load %arg18[%c0, %c0_1, %c0_2] : memref<1x8x32xf32, #tpu.memory_space<vmem>>, vector<1x8x32xf32>
    %c0_3 = arith.constant 0 : index
    %c0_4 = arith.constant 0 : index
    %c0_5 = arith.constant 0 : index
    %4 = vector.load %arg3[%c0_3, %c0_4, %c0_5] : memref<1x8x32xf32, #tpu.memory_space<vmem>>, vector<1x8x32xf32>
    %c0_6 = arith.constant 0 : index
    %c0_7 = arith.constant 0 : index
    %c0_8 = arith.constant 0 : index
    %5 = vector.load %arg4[%c0_6, %c0_7, %c0_8] : memref<1x16x32xf32, #tpu.memory_space<vmem>>, vector<1x16x32xf32>
    %c0_9 = arith.constant 0 : index
    %c0_10 = arith.constant 0 : index
    %c0_11 = arith.constant 0 : index
    %6 = vector.load %arg5[%c0_9, %c0_10, %c0_11] : memref<1x16x32xf32, #tpu.memory_space<vmem>>, vector<1x16x32xf32>
    %c0_12 = arith.constant 0 : index
    %c0_13 = arith.constant 0 : index
    %c0_14 = arith.constant 0 : index
    %7 = vector.load %arg15[%c0_12, %c0_13, %c0_14] : memref<1x16x32xf32, #tpu.memory_space<vmem>>, vector<1x16x32xf32>
    %8 = vector.shape_cast %7 : vector<1x16x32xf32> to vector<16x32xf32>
    %9 = vector.extract_strided_slice %8 {offsets = [0, 0], sizes = [1, 32], strides = [1, 1]} : vector<16x32xf32> to vector<1x32xf32>
    %10 = vector.extract_strided_slice %8 {offsets = [1, 0], sizes = [1, 32], strides = [1, 1]} : vector<16x32xf32> to vector<1x32xf32>
    %11 = vector.extract_strided_slice %8 {offsets = [2, 0], sizes = [1, 32], strides = [1, 1]} : vector<16x32xf32> to vector<1x32xf32>
    %12 = vector.extract_strided_slice %8 {offsets = [3, 0], sizes = [1, 32], strides = [1, 1]} : vector<16x32xf32> to vector<1x32xf32>
    %13 = vector.extract_strided_slice %8 {offsets = [4, 0], sizes = [1, 32], strides = [1, 1]} : vector<16x32xf32> to vector<1x32xf32>
    %14 = vector.extract_strided_slice %8 {offsets = [5, 0], sizes = [1, 32], strides = [1, 1]} : vector<16x32xf32> to vector<1x32xf32>
    %15 = vector.extract_strided_slice %8 {offsets = [6, 0], sizes = [1, 32], strides = [1, 1]} : vector<16x32xf32> to vector<1x32xf32>
    %16 = vector.extract_strided_slice %8 {offsets = [7, 0], sizes = [1, 32], strides = [1, 1]} : vector<16x32xf32> to vector<1x32xf32>
    %17 = vector.extract_strided_slice %8 {offsets = [8, 0], sizes = [1, 32], strides = [1, 1]} : vector<16x32xf32> to vector<1x32xf32>
    %18 = vector.extract_strided_slice %8 {offsets = [9, 0], sizes = [1, 32], strides = [1, 1]} : vector<16x32xf32> to vector<1x32xf32>
    %19 = vector.extract_strided_slice %8 {offsets = [10, 0], sizes = [1, 32], strides = [1, 1]} : vector<16x32xf32> to vector<1x32xf32>
    %20 = vector.extract_strided_slice %8 {offsets = [11, 0], sizes = [1, 32], strides = [1, 1]} : vector<16x32xf32> to vector<1x32xf32>
    %21 = vector.extract_strided_slice %8 {offsets = [12, 0], sizes = [1, 32], strides = [1, 1]} : vector<16x32xf32> to vector<1x32xf32>
    %22 = vector.extract_strided_slice %8 {offsets = [13, 0], sizes = [1, 32], strides = [1, 1]} : vector<16x32xf32> to vector<1x32xf32>
    %23 = vector.extract_strided_slice %8 {offsets = [14, 0], sizes = [1, 32], strides = [1, 1]} : vector<16x32xf32> to vector<1x32xf32>
    %24 = arith.addf %3, %4 : vector<1x8x32xf32>
    %25 = vector.shape_cast %24 : vector<1x8x32xf32> to vector<8x32xf32>
    %c0_15 = arith.constant 0 : index
    %c0_16 = arith.constant 0 : index
    %c0_17 = arith.constant 0 : index
    %26 = vector.load %arg6[%c0_15, %c0_16, %c0_17] : memref<1x32x64xbf16, #tpu.memory_space<vmem>>, vector<1x32x64xbf16>
    %27 = vector.shape_cast %26 : vector<1x32x64xbf16> to vector<32x64xbf16>
    %28 = arith.truncf %25 : vector<8x32xf32> to vector<8x32xbf16>
    %cst = arith.constant dense<0.000000e+00> : vector<8x64xf32>
    %29 = tpu.matmul %28, %27, %cst {dimension_numbers = #tpu.dot_dimension_numbers<[1], [0], [0], [1], [0, 0, 1, 1], [], []>} : vector<8x32xbf16>, vector<32x64xbf16>, vector<8x64xf32> -> vector<8x64xf32>
    %30 = vector.extract_strided_slice %29 {offsets = [0, 0], sizes = [8, 32], strides = [1, 1]} : vector<8x64xf32> to vector<8x32xf32>
    %31 = vector.broadcast %9 : vector<1x32xf32> to vector<8x32xf32>
    %32 = arith.addf %30, %31 : vector<8x32xf32>
    %33 = vector.shape_cast %32 : vector<8x32xf32> to vector<1x8x32xf32>
    %34 = vector.extract_strided_slice %29 {offsets = [0, 32], sizes = [8, 32], strides = [1, 1]} : vector<8x64xf32> to vector<8x32xf32>
    %35 = vector.broadcast %10 : vector<1x32xf32> to vector<8x32xf32>
    %36 = arith.addf %34, %35 : vector<8x32xf32>
    %37 = vector.shape_cast %36 : vector<8x32xf32> to vector<1x8x32xf32>
    %38 = vector.shape_cast %3 : vector<1x8x32xf32> to vector<8x32xf32>
    %c0_18 = arith.constant 0 : index
    %c0_19 = arith.constant 0 : index
    %c0_20 = arith.constant 0 : index
    %39 = vector.load %arg7[%c0_18, %c0_19, %c0_20] : memref<1x32x32xbf16, #tpu.memory_space<vmem>>, vector<1x32x32xbf16>
    %40 = vector.shape_cast %39 : vector<1x32x32xbf16> to vector<32x32xbf16>
    %41 = arith.truncf %38 : vector<8x32xf32> to vector<8x32xbf16>
    %cst_21 = arith.constant dense<0.000000e+00> : vector<8x32xf32>
    %42 = tpu.matmul %41, %40, %cst_21 {dimension_numbers = #tpu.dot_dimension_numbers<[1], [0], [0], [1], [0, 0, 1, 1], [], []>} : vector<8x32xbf16>, vector<32x32xbf16>, vector<8x32xf32> -> vector<8x32xf32>
    %43 = vector.broadcast %11 : vector<1x32xf32> to vector<8x32xf32>
    %44 = arith.addf %42, %43 : vector<8x32xf32>
    %45 = vector.shape_cast %44 : vector<8x32xf32> to vector<1x8x32xf32>
    %46 = vector.extract_strided_slice %33 {offsets = [0, 0, 0], sizes = [1, 8, 8], strides = [1, 1, 1]} : vector<1x8x32xf32> to vector<1x8x8xf32>
    %47 = vector.extract_strided_slice %37 {offsets = [0, 0, 0], sizes = [1, 8, 8], strides = [1, 1, 1]} : vector<1x8x32xf32> to vector<1x8x8xf32>
    "tpu.trace_start"() <{level = 10 : i32, message = "bqd,bkd->bqk"}> : () -> ()
    %cst_22 = arith.constant dense<0.000000e+00> : vector<1x8x8xf32>
    %48 = tpu.matmul %46, %47, %cst_22 {dimension_numbers = #tpu.dot_dimension_numbers<[2], [2], [1], [1], [0, 0, 0, 1, 1, 1], [0], [0]>} : vector<1x8x8xf32>, vector<1x8x8xf32>, vector<1x8x8xf32> -> vector<1x8x8xf32>
    "tpu.trace_stop"() : () -> ()
    %cst_23 = arith.constant dense<0xFF800000> : vector<1x8xf32>
    %49 = vector.multi_reduction <maximumf>, %48, %cst_23 [2] : vector<1x8x8xf32> to vector<1x8xf32>
    %50 = vector.shape_cast %49 : vector<1x8xf32> to vector<1x8x1xf32>
    %51 = vector.broadcast %50 : vector<1x8x1xf32> to vector<1x8x8xf32>
    %52 = arith.subf %48, %51 : vector<1x8x8xf32>
    %53 = math.exp %52 : vector<1x8x8xf32>
    %cst_24 = arith.constant dense<0.000000e+00> : vector<1x8xf32>
    %54 = vector.multi_reduction <add>, %53, %cst_24 [2] : vector<1x8x8xf32> to vector<1x8xf32>
    %55 = vector.shape_cast %54 : vector<1x8xf32> to vector<1x8x1xf32>
    %56 = tpu.reciprocal %55 : vector<1x8x1xf32> -> vector<1x8x1xf32>
    %57 = vector.broadcast %56 : vector<1x8x1xf32> to vector<1x8x8xf32>
    %58 = arith.mulf %53, %57 : vector<1x8x8xf32>
    %59 = vector.extract_strided_slice %45 {offsets = [0, 0, 0], sizes = [1, 8, 8], strides = [1, 1, 1]} : vector<1x8x32xf32> to vector<1x8x8xf32>
    "tpu.trace_start"() <{level = 10 : i32, message = "bqk,bkd->bqd"}> : () -> ()
    %cst_25 = arith.constant dense<0.000000e+00> : vector<1x8x8xf32>
    %60 = tpu.matmul %58, %59, %cst_25 {dimension_numbers = #tpu.dot_dimension_numbers<[2], [1], [1], [2], [0, 0, 0, 1, 1, 2], [0], [0]>} : vector<1x8x8xf32>, vector<1x8x8xf32>, vector<1x8x8xf32> -> vector<1x8x8xf32>
    "tpu.trace_stop"() : () -> ()
    %61 = vector.extract_strided_slice %33 {offsets = [0, 0, 8], sizes = [1, 8, 8], strides = [1, 1, 1]} : vector<1x8x32xf32> to vector<1x8x8xf32>
    %62 = vector.extract_strided_slice %37 {offsets = [0, 0, 8], sizes = [1, 8, 8], strides = [1, 1, 1]} : vector<1x8x32xf32> to vector<1x8x8xf32>
    "tpu.trace_start"() <{level = 10 : i32, message = "bqd,bkd->bqk"}> : () -> ()
    %cst_26 = arith.constant dense<0.000000e+00> : vector<1x8x8xf32>
    %63 = tpu.matmul %61, %62, %cst_26 {dimension_numbers = #tpu.dot_dimension_numbers<[2], [2], [1], [1], [0, 0, 0, 1, 1, 1], [0], [0]>} : vector<1x8x8xf32>, vector<1x8x8xf32>, vector<1x8x8xf32> -> vector<1x8x8xf32>
    "tpu.trace_stop"() : () -> ()
    %cst_27 = arith.constant dense<0xFF800000> : vector<1x8xf32>
    %64 = vector.multi_reduction <maximumf>, %63, %cst_27 [2] : vector<1x8x8xf32> to vector<1x8xf32>
    %65 = vector.shape_cast %64 : vector<1x8xf32> to vector<1x8x1xf32>
    %66 = vector.broadcast %65 : vector<1x8x1xf32> to vector<1x8x8xf32>
    %67 = arith.subf %63, %66 : vector<1x8x8xf32>
    %68 = math.exp %67 : vector<1x8x8xf32>
    %cst_28 = arith.constant dense<0.000000e+00> : vector<1x8xf32>
    %69 = vector.multi_reduction <add>, %68, %cst_28 [2] : vector<1x8x8xf32> to vector<1x8xf32>
    %70 = vector.shape_cast %69 : vector<1x8xf32> to vector<1x8x1xf32>
    %71 = tpu.reciprocal %70 : vector<1x8x1xf32> -> vector<1x8x1xf32>
    %72 = vector.broadcast %71 : vector<1x8x1xf32> to vector<1x8x8xf32>
    %73 = arith.mulf %68, %72 : vector<1x8x8xf32>
    %74 = vector.extract_strided_slice %45 {offsets = [0, 0, 8], sizes = [1, 8, 8], strides = [1, 1, 1]} : vector<1x8x32xf32> to vector<1x8x8xf32>
    "tpu.trace_start"() <{level = 10 : i32, message = "bqk,bkd->bqd"}> : () -> ()
    %cst_29 = arith.constant dense<0.000000e+00> : vector<1x8x8xf32>
    %75 = tpu.matmul %73, %74, %cst_29 {dimension_numbers = #tpu.dot_dimension_numbers<[2], [1], [1], [2], [0, 0, 0, 1, 1, 2], [0], [0]>} : vector<1x8x8xf32>, vector<1x8x8xf32>, vector<1x8x8xf32> -> vector<1x8x8xf32>
    "tpu.trace_stop"() : () -> ()
    %76 = vector.extract_strided_slice %33 {offsets = [0, 0, 16], sizes = [1, 8, 8], strides = [1, 1, 1]} : vector<1x8x32xf32> to vector<1x8x8xf32>
    %77 = vector.extract_strided_slice %37 {offsets = [0, 0, 16], sizes = [1, 8, 8], strides = [1, 1, 1]} : vector<1x8x32xf32> to vector<1x8x8xf32>
    "tpu.trace_start"() <{level = 10 : i32, message = "bqd,bkd->bqk"}> : () -> ()
    %cst_30 = arith.constant dense<0.000000e+00> : vector<1x8x8xf32>
    %78 = tpu.matmul %76, %77, %cst_30 {dimension_numbers = #tpu.dot_dimension_numbers<[2], [2], [1], [1], [0, 0, 0, 1, 1, 1], [0], [0]>} : vector<1x8x8xf32>, vector<1x8x8xf32>, vector<1x8x8xf32> -> vector<1x8x8xf32>
    "tpu.trace_stop"() : () -> ()
    %cst_31 = arith.constant dense<0xFF800000> : vector<1x8xf32>
    %79 = vector.multi_reduction <maximumf>, %78, %cst_31 [2] : vector<1x8x8xf32> to vector<1x8xf32>
    %80 = vector.shape_cast %79 : vector<1x8xf32> to vector<1x8x1xf32>
    %81 = vector.broadcast %80 : vector<1x8x1xf32> to vector<1x8x8xf32>
    %82 = arith.subf %78, %81 : vector<1x8x8xf32>
    %83 = math.exp %82 : vector<1x8x8xf32>
    %cst_32 = arith.constant dense<0.000000e+00> : vector<1x8xf32>
    %84 = vector.multi_reduction <add>, %83, %cst_32 [2] : vector<1x8x8xf32> to vector<1x8xf32>
    %85 = vector.shape_cast %84 : vector<1x8xf32> to vector<1x8x1xf32>
    %86 = tpu.reciprocal %85 : vector<1x8x1xf32> -> vector<1x8x1xf32>
    %87 = vector.broadcast %86 : vector<1x8x1xf32> to vector<1x8x8xf32>
    %88 = arith.mulf %83, %87 : vector<1x8x8xf32>
    %89 = vector.extract_strided_slice %45 {offsets = [0, 0, 16], sizes = [1, 8, 8], strides = [1, 1, 1]} : vector<1x8x32xf32> to vector<1x8x8xf32>
    "tpu.trace_start"() <{level = 10 : i32, message = "bqk,bkd->bqd"}> : () -> ()
    %cst_33 = arith.constant dense<0.000000e+00> : vector<1x8x8xf32>
    %90 = tpu.matmul %88, %89, %cst_33 {dimension_numbers = #tpu.dot_dimension_numbers<[2], [1], [1], [2], [0, 0, 0, 1, 1, 2], [0], [0]>} : vector<1x8x8xf32>, vector<1x8x8xf32>, vector<1x8x8xf32> -> vector<1x8x8xf32>
    "tpu.trace_stop"() : () -> ()
    %91 = vector.extract_strided_slice %33 {offsets = [0, 0, 24], sizes = [1, 8, 8], strides = [1, 1, 1]} : vector<1x8x32xf32> to vector<1x8x8xf32>
    %92 = vector.extract_strided_slice %37 {offsets = [0, 0, 24], sizes = [1, 8, 8], strides = [1, 1, 1]} : vector<1x8x32xf32> to vector<1x8x8xf32>
    "tpu.trace_start"() <{level = 10 : i32, message = "bqd,bkd->bqk"}> : () -> ()
    %cst_34 = arith.constant dense<0.000000e+00> : vector<1x8x8xf32>
    %93 = tpu.matmul %91, %92, %cst_34 {dimension_numbers = #tpu.dot_dimension_numbers<[2], [2], [1], [1], [0, 0, 0, 1, 1, 1], [0], [0]>} : vector<1x8x8xf32>, vector<1x8x8xf32>, vector<1x8x8xf32> -> vector<1x8x8xf32>
    "tpu.trace_stop"() : () -> ()
    %cst_35 = arith.constant dense<0xFF800000> : vector<1x8xf32>
    %94 = vector.multi_reduction <maximumf>, %93, %cst_35 [2] : vector<1x8x8xf32> to vector<1x8xf32>
    %95 = vector.shape_cast %94 : vector<1x8xf32> to vector<1x8x1xf32>
    %96 = vector.broadcast %95 : vector<1x8x1xf32> to vector<1x8x8xf32>
    %97 = arith.subf %93, %96 : vector<1x8x8xf32>
    %98 = math.exp %97 : vector<1x8x8xf32>
    %cst_36 = arith.constant dense<0.000000e+00> : vector<1x8xf32>
    %99 = vector.multi_reduction <add>, %98, %cst_36 [2] : vector<1x8x8xf32> to vector<1x8xf32>
    %100 = vector.shape_cast %99 : vector<1x8xf32> to vector<1x8x1xf32>
    %101 = tpu.reciprocal %100 : vector<1x8x1xf32> -> vector<1x8x1xf32>
    %102 = vector.broadcast %101 : vector<1x8x1xf32> to vector<1x8x8xf32>
    %103 = arith.mulf %98, %102 : vector<1x8x8xf32>
    %104 = vector.extract_strided_slice %45 {offsets = [0, 0, 24], sizes = [1, 8, 8], strides = [1, 1, 1]} : vector<1x8x32xf32> to vector<1x8x8xf32>
    "tpu.trace_start"() <{level = 10 : i32, message = "bqk,bkd->bqd"}> : () -> ()
    %cst_37 = arith.constant dense<0.000000e+00> : vector<1x8x8xf32>
    %105 = tpu.matmul %103, %104, %cst_37 {dimension_numbers = #tpu.dot_dimension_numbers<[2], [1], [1], [2], [0, 0, 0, 1, 1, 2], [0], [0]>} : vector<1x8x8xf32>, vector<1x8x8xf32>, vector<1x8x8xf32> -> vector<1x8x8xf32>
    "tpu.trace_stop"() : () -> ()
    %106 = tpu.concatenate %60, %75, %90, %105 in 2 : vector<1x8x8xf32>, vector<1x8x8xf32>, vector<1x8x8xf32>, vector<1x8x8xf32> -> vector<1x8x32xf32>
    %107 = vector.shape_cast %106 : vector<1x8x32xf32> to vector<8x32xf32>
    %c0_38 = arith.constant 0 : index
    %c0_39 = arith.constant 0 : index
    %c0_40 = arith.constant 0 : index
    %108 = vector.load %arg8[%c0_38, %c0_39, %c0_40] : memref<1x32x32xbf16, #tpu.memory_space<vmem>>, vector<1x32x32xbf16>
    %109 = vector.shape_cast %108 : vector<1x32x32xbf16> to vector<32x32xbf16>
    %110 = arith.truncf %107 : vector<8x32xf32> to vector<8x32xbf16>
    %cst_41 = arith.constant dense<0.000000e+00> : vector<8x32xf32>
    %111 = tpu.matmul %110, %109, %cst_41 {dimension_numbers = #tpu.dot_dimension_numbers<[1], [0], [0], [1], [0, 0, 1, 1], [], []>} : vector<8x32xbf16>, vector<32x32xbf16>, vector<8x32xf32> -> vector<8x32xf32>
    %112 = vector.broadcast %12 : vector<1x32xf32> to vector<8x32xf32>
    %113 = arith.addf %111, %112 : vector<8x32xf32>
    %114 = vector.shape_cast %113 : vector<8x32xf32> to vector<1x8x32xf32>
    %115 = arith.addf %3, %114 : vector<1x8x32xf32>
    %cst_42 = arith.constant dense<0.000000e+00> : vector<1x8xf32>
    %116 = vector.multi_reduction <add>, %115, %cst_42 [2] : vector<1x8x32xf32> to vector<1x8xf32>
    %117 = vector.shape_cast %116 : vector<1x8xf32> to vector<1x8x1xf32>
    %cst_43 = arith.constant 3.200000e+01 : f32
    %118 = vector.broadcast %cst_43 : f32 to vector<1x8x1xf32>
    %119 = arith.divf %117, %118 : vector<1x8x1xf32>
    %120 = vector.broadcast %119 : vector<1x8x1xf32> to vector<1x8x32xf32>
    %121 = arith.subf %115, %120 : vector<1x8x32xf32>
    %122 = arith.mulf %121, %121 : vector<1x8x32xf32>
    %cst_44 = arith.constant dense<0.000000e+00> : vector<1x8xf32>
    %123 = vector.multi_reduction <add>, %122, %cst_44 [2] : vector<1x8x32xf32> to vector<1x8xf32>
    %124 = vector.shape_cast %123 : vector<1x8xf32> to vector<1x8x1xf32>
    %cst_45 = arith.constant 3.200000e+01 : f32
    %125 = vector.broadcast %cst_45 : f32 to vector<1x8x1xf32>
    %126 = arith.divf %124, %125 : vector<1x8x1xf32>
    %127 = vector.broadcast %119 : vector<1x8x1xf32> to vector<1x8x32xf32>
    %128 = arith.subf %115, %127 : vector<1x8x32xf32>
    %cst_46 = arith.constant 9.99999974E-6 : f32
    %129 = vector.broadcast %cst_46 : f32 to vector<1x8x1xf32>
    %130 = arith.addf %126, %129 : vector<1x8x1xf32>
    %131 = math.rsqrt %130 : vector<1x8x1xf32>
    %132 = vector.broadcast %131 : vector<1x8x1xf32> to vector<1x8x32xf32>
    %133 = arith.mulf %128, %132 : vector<1x8x32xf32>
    %134 = vector.shape_cast %18 : vector<1x32xf32> to vector<1x1x32xf32>
    %135 = vector.broadcast %134 : vector<1x1x32xf32> to vector<1x8x32xf32>
    %136 = arith.mulf %133, %135 : vector<1x8x32xf32>
    %137 = vector.shape_cast %19 : vector<1x32xf32> to vector<1x1x32xf32>
    %138 = vector.broadcast %137 : vector<1x1x32xf32> to vector<1x8x32xf32>
    %139 = arith.addf %136, %138 : vector<1x8x32xf32>
    %140 = arith.addf %139, %4 : vector<1x8x32xf32>
    %141 = vector.shape_cast %140 : vector<1x8x32xf32> to vector<8x32xf32>
    %c0_47 = arith.constant 0 : index
    %c0_48 = arith.constant 0 : index
    %c0_49 = arith.constant 0 : index
    %142 = vector.load %arg9[%c0_47, %c0_48, %c0_49] : memref<1x32x32xbf16, #tpu.memory_space<vmem>>, vector<1x32x32xbf16>
    %143 = vector.shape_cast %142 : vector<1x32x32xbf16> to vector<32x32xbf16>
    %144 = arith.truncf %141 : vector<8x32xf32> to vector<8x32xbf16>
    %cst_50 = arith.constant dense<0.000000e+00> : vector<8x32xf32>
    %145 = tpu.matmul %144, %143, %cst_50 {dimension_numbers = #tpu.dot_dimension_numbers<[1], [0], [0], [1], [0, 0, 1, 1], [], []>} : vector<8x32xbf16>, vector<32x32xbf16>, vector<8x32xf32> -> vector<8x32xf32>
    %146 = vector.broadcast %13 : vector<1x32xf32> to vector<8x32xf32>
    %147 = arith.addf %145, %146 : vector<8x32xf32>
    %148 = vector.shape_cast %147 : vector<8x32xf32> to vector<1x8x32xf32>
    %149 = vector.shape_cast %6 : vector<1x16x32xf32> to vector<16x32xf32>
    %c0_51 = arith.constant 0 : index
    %c0_52 = arith.constant 0 : index
    %c0_53 = arith.constant 0 : index
    %150 = vector.load %arg10[%c0_51, %c0_52, %c0_53] : memref<1x32x32xbf16, #tpu.memory_space<vmem>>, vector<1x32x32xbf16>
    %151 = vector.shape_cast %150 : vector<1x32x32xbf16> to vector<32x32xbf16>
    %152 = arith.truncf %149 : vector<16x32xf32> to vector<16x32xbf16>
    %cst_54 = arith.constant dense<0.000000e+00> : vector<16x32xf32>
    %153 = tpu.matmul %152, %151, %cst_54 {dimension_numbers = #tpu.dot_dimension_numbers<[1], [0], [0], [1], [0, 0, 1, 1], [], []>} : vector<16x32xbf16>, vector<32x32xbf16>, vector<16x32xf32> -> vector<16x32xf32>
    %154 = vector.broadcast %14 : vector<1x32xf32> to vector<16x32xf32>
    %155 = arith.addf %153, %154 : vector<16x32xf32>
    %156 = vector.shape_cast %155 : vector<16x32xf32> to vector<1x16x32xf32>
    %157 = vector.shape_cast %5 : vector<1x16x32xf32> to vector<16x32xf32>
    %c0_55 = arith.constant 0 : index
    %c0_56 = arith.constant 0 : index
    %c0_57 = arith.constant 0 : index
    %158 = vector.load %arg11[%c0_55, %c0_56, %c0_57] : memref<1x32x32xbf16, #tpu.memory_space<vmem>>, vector<1x32x32xbf16>
    %159 = vector.shape_cast %158 : vector<1x32x32xbf16> to vector<32x32xbf16>
    %160 = arith.truncf %157 : vector<16x32xf32> to vector<16x32xbf16>
    %cst_58 = arith.constant dense<0.000000e+00> : vector<16x32xf32>
    %161 = tpu.matmul %160, %159, %cst_58 {dimension_numbers = #tpu.dot_dimension_numbers<[1], [0], [0], [1], [0, 0, 1, 1], [], []>} : vector<16x32xbf16>, vector<32x32xbf16>, vector<16x32xf32> -> vector<16x32xf32>
    %162 = vector.broadcast %15 : vector<1x32xf32> to vector<16x32xf32>
    %163 = arith.addf %161, %162 : vector<16x32xf32>
    %164 = vector.shape_cast %163 : vector<16x32xf32> to vector<1x16x32xf32>
    %165 = vector.extract_strided_slice %148 {offsets = [0, 0, 0], sizes = [1, 8, 8], strides = [1, 1, 1]} : vector<1x8x32xf32> to vector<1x8x8xf32>
    %166 = vector.extract_strided_slice %156 {offsets = [0, 0, 0], sizes = [1, 16, 8], strides = [1, 1, 1]} : vector<1x16x32xf32> to vector<1x16x8xf32>
    "tpu.trace_start"() <{level = 10 : i32, message = "bqd,bkd->bqk"}> : () -> ()
    %cst_59 = arith.constant dense<0.000000e+00> : vector<1x8x16xf32>
    %167 = tpu.matmul %165, %166, %cst_59 {dimension_numbers = #tpu.dot_dimension_numbers<[2], [2], [1], [1], [0, 0, 0, 1, 1, 1], [0], [0]>} : vector<1x8x8xf32>, vector<1x16x8xf32>, vector<1x8x16xf32> -> vector<1x8x16xf32>
    "tpu.trace_stop"() : () -> ()
    %cst_60 = arith.constant dense<0xFF800000> : vector<1x8xf32>
    %168 = vector.multi_reduction <maximumf>, %167, %cst_60 [2] : vector<1x8x16xf32> to vector<1x8xf32>
    %169 = vector.shape_cast %168 : vector<1x8xf32> to vector<1x8x1xf32>
    %170 = vector.broadcast %169 : vector<1x8x1xf32> to vector<1x8x16xf32>
    %171 = arith.subf %167, %170 : vector<1x8x16xf32>
    %172 = math.exp %171 : vector<1x8x16xf32>
    %cst_61 = arith.constant dense<0.000000e+00> : vector<1x8xf32>
    %173 = vector.multi_reduction <add>, %172, %cst_61 [2] : vector<1x8x16xf32> to vector<1x8xf32>
    %174 = vector.shape_cast %173 : vector<1x8xf32> to vector<1x8x1xf32>
    %175 = tpu.reciprocal %174 : vector<1x8x1xf32> -> vector<1x8x1xf32>
    %176 = vector.broadcast %175 : vector<1x8x1xf32> to vector<1x8x16xf32>
    %177 = arith.mulf %172, %176 : vector<1x8x16xf32>
    %178 = vector.extract_strided_slice %164 {offsets = [0, 0, 0], sizes = [1, 16, 8], strides = [1, 1, 1]} : vector<1x16x32xf32> to vector<1x16x8xf32>
    "tpu.trace_start"() <{level = 10 : i32, message = "bqk,bkd->bqd"}> : () -> ()
    %cst_62 = arith.constant dense<0.000000e+00> : vector<1x8x8xf32>
    %179 = tpu.matmul %177, %178, %cst_62 {dimension_numbers = #tpu.dot_dimension_numbers<[2], [1], [1], [2], [0, 0, 0, 1, 1, 2], [0], [0]>} : vector<1x8x16xf32>, vector<1x16x8xf32>, vector<1x8x8xf32> -> vector<1x8x8xf32>
    "tpu.trace_stop"() : () -> ()
    %180 = vector.extract_strided_slice %148 {offsets = [0, 0, 8], sizes = [1, 8, 8], strides = [1, 1, 1]} : vector<1x8x32xf32> to vector<1x8x8xf32>
    %181 = vector.extract_strided_slice %156 {offsets = [0, 0, 8], sizes = [1, 16, 8], strides = [1, 1, 1]} : vector<1x16x32xf32> to vector<1x16x8xf32>
    "tpu.trace_start"() <{level = 10 : i32, message = "bqd,bkd->bqk"}> : () -> ()
    %cst_63 = arith.constant dense<0.000000e+00> : vector<1x8x16xf32>
    %182 = tpu.matmul %180, %181, %cst_63 {dimension_numbers = #tpu.dot_dimension_numbers<[2], [2], [1], [1], [0, 0, 0, 1, 1, 1], [0], [0]>} : vector<1x8x8xf32>, vector<1x16x8xf32>, vector<1x8x16xf32> -> vector<1x8x16xf32>
    "tpu.trace_stop"() : () -> ()
    %cst_64 = arith.constant dense<0xFF800000> : vector<1x8xf32>
    %183 = vector.multi_reduction <maximumf>, %182, %cst_64 [2] : vector<1x8x16xf32> to vector<1x8xf32>
    %184 = vector.shape_cast %183 : vector<1x8xf32> to vector<1x8x1xf32>
    %185 = vector.broadcast %184 : vector<1x8x1xf32> to vector<1x8x16xf32>
    %186 = arith.subf %182, %185 : vector<1x8x16xf32>
    %187 = math.exp %186 : vector<1x8x16xf32>
    %cst_65 = arith.constant dense<0.000000e+00> : vector<1x8xf32>
    %188 = vector.multi_reduction <add>, %187, %cst_65 [2] : vector<1x8x16xf32> to vector<1x8xf32>
    %189 = vector.shape_cast %188 : vector<1x8xf32> to vector<1x8x1xf32>
    %190 = tpu.reciprocal %189 : vector<1x8x1xf32> -> vector<1x8x1xf32>
    %191 = vector.broadcast %190 : vector<1x8x1xf32> to vector<1x8x16xf32>
    %192 = arith.mulf %187, %191 : vector<1x8x16xf32>
    %193 = vector.extract_strided_slice %164 {offsets = [0, 0, 8], sizes = [1, 16, 8], strides = [1, 1, 1]} : vector<1x16x32xf32> to vector<1x16x8xf32>
    "tpu.trace_start"() <{level = 10 : i32, message = "bqk,bkd->bqd"}> : () -> ()
    %cst_66 = arith.constant dense<0.000000e+00> : vector<1x8x8xf32>
    %194 = tpu.matmul %192, %193, %cst_66 {dimension_numbers = #tpu.dot_dimension_numbers<[2], [1], [1], [2], [0, 0, 0, 1, 1, 2], [0], [0]>} : vector<1x8x16xf32>, vector<1x16x8xf32>, vector<1x8x8xf32> -> vector<1x8x8xf32>
    "tpu.trace_stop"() : () -> ()
    %195 = vector.extract_strided_slice %148 {offsets = [0, 0, 16], sizes = [1, 8, 8], strides = [1, 1, 1]} : vector<1x8x32xf32> to vector<1x8x8xf32>
    %196 = vector.extract_strided_slice %156 {offsets = [0, 0, 16], sizes = [1, 16, 8], strides = [1, 1, 1]} : vector<1x16x32xf32> to vector<1x16x8xf32>
    "tpu.trace_start"() <{level = 10 : i32, message = "bqd,bkd->bqk"}> : () -> ()
    %cst_67 = arith.constant dense<0.000000e+00> : vector<1x8x16xf32>
    %197 = tpu.matmul %195, %196, %cst_67 {dimension_numbers = #tpu.dot_dimension_numbers<[2], [2], [1], [1], [0, 0, 0, 1, 1, 1], [0], [0]>} : vector<1x8x8xf32>, vector<1x16x8xf32>, vector<1x8x16xf32> -> vector<1x8x16xf32>
    "tpu.trace_stop"() : () -> ()
    %cst_68 = arith.constant dense<0xFF800000> : vector<1x8xf32>
    %198 = vector.multi_reduction <maximumf>, %197, %cst_68 [2] : vector<1x8x16xf32> to vector<1x8xf32>
    %199 = vector.shape_cast %198 : vector<1x8xf32> to vector<1x8x1xf32>
    %200 = vector.broadcast %199 : vector<1x8x1xf32> to vector<1x8x16xf32>
    %201 = arith.subf %197, %200 : vector<1x8x16xf32>
    %202 = math.exp %201 : vector<1x8x16xf32>
    %cst_69 = arith.constant dense<0.000000e+00> : vector<1x8xf32>
    %203 = vector.multi_reduction <add>, %202, %cst_69 [2] : vector<1x8x16xf32> to vector<1x8xf32>
    %204 = vector.shape_cast %203 : vector<1x8xf32> to vector<1x8x1xf32>
    %205 = tpu.reciprocal %204 : vector<1x8x1xf32> -> vector<1x8x1xf32>
    %206 = vector.broadcast %205 : vector<1x8x1xf32> to vector<1x8x16xf32>
    %207 = arith.mulf %202, %206 : vector<1x8x16xf32>
    %208 = vector.extract_strided_slice %164 {offsets = [0, 0, 16], sizes = [1, 16, 8], strides = [1, 1, 1]} : vector<1x16x32xf32> to vector<1x16x8xf32>
    "tpu.trace_start"() <{level = 10 : i32, message = "bqk,bkd->bqd"}> : () -> ()
    %cst_70 = arith.constant dense<0.000000e+00> : vector<1x8x8xf32>
    %209 = tpu.matmul %207, %208, %cst_70 {dimension_numbers = #tpu.dot_dimension_numbers<[2], [1], [1], [2], [0, 0, 0, 1, 1, 2], [0], [0]>} : vector<1x8x16xf32>, vector<1x16x8xf32>, vector<1x8x8xf32> -> vector<1x8x8xf32>
    "tpu.trace_stop"() : () -> ()
    %210 = vector.extract_strided_slice %148 {offsets = [0, 0, 24], sizes = [1, 8, 8], strides = [1, 1, 1]} : vector<1x8x32xf32> to vector<1x8x8xf32>
    %211 = vector.extract_strided_slice %156 {offsets = [0, 0, 24], sizes = [1, 16, 8], strides = [1, 1, 1]} : vector<1x16x32xf32> to vector<1x16x8xf32>
    "tpu.trace_start"() <{level = 10 : i32, message = "bqd,bkd->bqk"}> : () -> ()
    %cst_71 = arith.constant dense<0.000000e+00> : vector<1x8x16xf32>
    %212 = tpu.matmul %210, %211, %cst_71 {dimension_numbers = #tpu.dot_dimension_numbers<[2], [2], [1], [1], [0, 0, 0, 1, 1, 1], [0], [0]>} : vector<1x8x8xf32>, vector<1x16x8xf32>, vector<1x8x16xf32> -> vector<1x8x16xf32>
    "tpu.trace_stop"() : () -> ()
    %cst_72 = arith.constant dense<0xFF800000> : vector<1x8xf32>
    %213 = vector.multi_reduction <maximumf>, %212, %cst_72 [2] : vector<1x8x16xf32> to vector<1x8xf32>
    %214 = vector.shape_cast %213 : vector<1x8xf32> to vector<1x8x1xf32>
    %215 = vector.broadcast %214 : vector<1x8x1xf32> to vector<1x8x16xf32>
    %216 = arith.subf %212, %215 : vector<1x8x16xf32>
    %217 = math.exp %216 : vector<1x8x16xf32>
    %cst_73 = arith.constant dense<0.000000e+00> : vector<1x8xf32>
    %218 = vector.multi_reduction <add>, %217, %cst_73 [2] : vector<1x8x16xf32> to vector<1x8xf32>
    %219 = vector.shape_cast %218 : vector<1x8xf32> to vector<1x8x1xf32>
    %220 = tpu.reciprocal %219 : vector<1x8x1xf32> -> vector<1x8x1xf32>
    %221 = vector.broadcast %220 : vector<1x8x1xf32> to vector<1x8x16xf32>
    %222 = arith.mulf %217, %221 : vector<1x8x16xf32>
    %223 = vector.extract_strided_slice %164 {offsets = [0, 0, 24], sizes = [1, 16, 8], strides = [1, 1, 1]} : vector<1x16x32xf32> to vector<1x16x8xf32>
    "tpu.trace_start"() <{level = 10 : i32, message = "bqk,bkd->bqd"}> : () -> ()
    %cst_74 = arith.constant dense<0.000000e+00> : vector<1x8x8xf32>
    %224 = tpu.matmul %222, %223, %cst_74 {dimension_numbers = #tpu.dot_dimension_numbers<[2], [1], [1], [2], [0, 0, 0, 1, 1, 2], [0], [0]>} : vector<1x8x16xf32>, vector<1x16x8xf32>, vector<1x8x8xf32> -> vector<1x8x8xf32>
    "tpu.trace_stop"() : () -> ()
    %225 = tpu.concatenate %179, %194, %209, %224 in 2 : vector<1x8x8xf32>, vector<1x8x8xf32>, vector<1x8x8xf32>, vector<1x8x8xf32> -> vector<1x8x32xf32>
    %226 = vector.shape_cast %225 : vector<1x8x32xf32> to vector<8x32xf32>
    %c0_75 = arith.constant 0 : index
    %c0_76 = arith.constant 0 : index
    %c0_77 = arith.constant 0 : index
    %227 = vector.load %arg12[%c0_75, %c0_76, %c0_77] : memref<1x32x32xbf16, #tpu.memory_space<vmem>>, vector<1x32x32xbf16>
    %228 = vector.shape_cast %227 : vector<1x32x32xbf16> to vector<32x32xbf16>
    %229 = arith.truncf %226 : vector<8x32xf32> to vector<8x32xbf16>
    %cst_78 = arith.constant dense<0.000000e+00> : vector<8x32xf32>
    %230 = tpu.matmul %229, %228, %cst_78 {dimension_numbers = #tpu.dot_dimension_numbers<[1], [0], [0], [1], [0, 0, 1, 1], [], []>} : vector<8x32xbf16>, vector<32x32xbf16>, vector<8x32xf32> -> vector<8x32xf32>
    %231 = vector.broadcast %16 : vector<1x32xf32> to vector<8x32xf32>
    %232 = arith.addf %230, %231 : vector<8x32xf32>
    %233 = vector.shape_cast %232 : vector<8x32xf32> to vector<1x8x32xf32>
    %234 = arith.addf %139, %233 : vector<1x8x32xf32>
    %cst_79 = arith.constant dense<0.000000e+00> : vector<1x8xf32>
    %235 = vector.multi_reduction <add>, %234, %cst_79 [2] : vector<1x8x32xf32> to vector<1x8xf32>
    %236 = vector.shape_cast %235 : vector<1x8xf32> to vector<1x8x1xf32>
    %cst_80 = arith.constant 3.200000e+01 : f32
    %237 = vector.broadcast %cst_80 : f32 to vector<1x8x1xf32>
    %238 = arith.divf %236, %237 : vector<1x8x1xf32>
    %239 = vector.broadcast %238 : vector<1x8x1xf32> to vector<1x8x32xf32>
    %240 = arith.subf %234, %239 : vector<1x8x32xf32>
    %241 = arith.mulf %240, %240 : vector<1x8x32xf32>
    %cst_81 = arith.constant dense<0.000000e+00> : vector<1x8xf32>
    %242 = vector.multi_reduction <add>, %241, %cst_81 [2] : vector<1x8x32xf32> to vector<1x8xf32>
    %243 = vector.shape_cast %242 : vector<1x8xf32> to vector<1x8x1xf32>
    %cst_82 = arith.constant 3.200000e+01 : f32
    %244 = vector.broadcast %cst_82 : f32 to vector<1x8x1xf32>
    %245 = arith.divf %243, %244 : vector<1x8x1xf32>
    %246 = vector.broadcast %238 : vector<1x8x1xf32> to vector<1x8x32xf32>
    %247 = arith.subf %234, %246 : vector<1x8x32xf32>
    %cst_83 = arith.constant 9.99999974E-6 : f32
    %248 = vector.broadcast %cst_83 : f32 to vector<1x8x1xf32>
    %249 = arith.addf %245, %248 : vector<1x8x1xf32>
    %250 = math.rsqrt %249 : vector<1x8x1xf32>
    %251 = vector.broadcast %250 : vector<1x8x1xf32> to vector<1x8x32xf32>
    %252 = arith.mulf %247, %251 : vector<1x8x32xf32>
    %253 = vector.shape_cast %20 : vector<1x32xf32> to vector<1x1x32xf32>
    %254 = vector.broadcast %253 : vector<1x1x32xf32> to vector<1x8x32xf32>
    %255 = arith.mulf %252, %254 : vector<1x8x32xf32>
    %256 = vector.shape_cast %21 : vector<1x32xf32> to vector<1x1x32xf32>
    %257 = vector.broadcast %256 : vector<1x1x32xf32> to vector<1x8x32xf32>
    %258 = arith.addf %255, %257 : vector<1x8x32xf32>
    %c0_84 = arith.constant 0 : index
    %c0_85 = arith.constant 0 : index
    %c0_86 = arith.constant 0 : index
    %259 = vector.load %arg13[%c0_84, %c0_85, %c0_86] : memref<1x33x64xbf16, #tpu.memory_space<vmem>>, vector<1x33x64xbf16>
    %260 = vector.shape_cast %259 : vector<1x33x64xbf16> to vector<33x64xbf16>
    %261 = vector.shape_cast %258 : vector<1x8x32xf32> to vector<8x32xf32>
    %262 = vector.extract_strided_slice %260 {offsets = [0, 0], sizes = [32, 64], strides = [1, 1]} : vector<33x64xbf16> to vector<32x64xbf16>
    %263 = arith.truncf %261 : vector<8x32xf32> to vector<8x32xbf16>
    %cst_87 = arith.constant dense<0.000000e+00> : vector<8x64xf32>
    %264 = tpu.matmul %263, %262, %cst_87 {dimension_numbers = #tpu.dot_dimension_numbers<[1], [0], [0], [1], [0, 0, 1, 1], [], []>} : vector<8x32xbf16>, vector<32x64xbf16>, vector<8x64xf32> -> vector<8x64xf32>
    %265 = vector.extract_strided_slice %260 {offsets = [32, 0], sizes = [1, 64], strides = [1, 1]} : vector<33x64xbf16> to vector<1x64xbf16>
    %266 = arith.extf %265 : vector<1x64xbf16> to vector<1x64xf32>
    %267 = vector.broadcast %266 : vector<1x64xf32> to vector<8x64xf32>
    %268 = arith.addf %264, %267 : vector<8x64xf32>
    %cst_88 = arith.constant 0.000000e+00 : f32
    %269 = vector.broadcast %cst_88 : f32 to vector<8x64xf32>
    %270 = arith.maximumf %268, %269 : vector<8x64xf32>
    %c0_89 = arith.constant 0 : index
    %c0_90 = arith.constant 0 : index
    %c0_91 = arith.constant 0 : index
    %271 = vector.load %arg14[%c0_89, %c0_90, %c0_91] : memref<1x64x32xbf16, #tpu.memory_space<vmem>>, vector<1x64x32xbf16>
    %272 = vector.shape_cast %271 : vector<1x64x32xbf16> to vector<64x32xbf16>
    %273 = arith.truncf %270 : vector<8x64xf32> to vector<8x64xbf16>
    %cst_92 = arith.constant dense<0.000000e+00> : vector<8x32xf32>
    %274 = tpu.matmul %273, %272, %cst_92 {dimension_numbers = #tpu.dot_dimension_numbers<[1], [0], [0], [1], [0, 0, 1, 1], [], []>} : vector<8x64xbf16>, vector<64x32xbf16>, vector<8x32xf32> -> vector<8x32xf32>
    %275 = vector.broadcast %17 : vector<1x32xf32> to vector<8x32xf32>
    %276 = arith.addf %274, %275 : vector<8x32xf32>
    %277 = vector.shape_cast %276 : vector<8x32xf32> to vector<1x8x32xf32>
    %278 = arith.addf %258, %277 : vector<1x8x32xf32>
    %cst_93 = arith.constant dense<0.000000e+00> : vector<1x8xf32>
    %279 = vector.multi_reduction <add>, %278, %cst_93 [2] : vector<1x8x32xf32> to vector<1x8xf32>
    %280 = vector.shape_cast %279 : vector<1x8xf32> to vector<1x8x1xf32>
    %cst_94 = arith.constant 3.200000e+01 : f32
    %281 = vector.broadcast %cst_94 : f32 to vector<1x8x1xf32>
    %282 = arith.divf %280, %281 : vector<1x8x1xf32>
    %283 = vector.broadcast %282 : vector<1x8x1xf32> to vector<1x8x32xf32>
    %284 = arith.subf %278, %283 : vector<1x8x32xf32>
    %285 = arith.mulf %284, %284 : vector<1x8x32xf32>
    %cst_95 = arith.constant dense<0.000000e+00> : vector<1x8xf32>
    %286 = vector.multi_reduction <add>, %285, %cst_95 [2] : vector<1x8x32xf32> to vector<1x8xf32>
    %287 = vector.shape_cast %286 : vector<1x8xf32> to vector<1x8x1xf32>
    %cst_96 = arith.constant 3.200000e+01 : f32
    %288 = vector.broadcast %cst_96 : f32 to vector<1x8x1xf32>
    %289 = arith.divf %287, %288 : vector<1x8x1xf32>
    %290 = vector.broadcast %282 : vector<1x8x1xf32> to vector<1x8x32xf32>
    %291 = arith.subf %278, %290 : vector<1x8x32xf32>
    %cst_97 = arith.constant 9.99999974E-6 : f32
    %292 = vector.broadcast %cst_97 : f32 to vector<1x8x1xf32>
    %293 = arith.addf %289, %292 : vector<1x8x1xf32>
    %294 = math.rsqrt %293 : vector<1x8x1xf32>
    %295 = vector.broadcast %294 : vector<1x8x1xf32> to vector<1x8x32xf32>
    %296 = arith.mulf %291, %295 : vector<1x8x32xf32>
    %297 = vector.shape_cast %22 : vector<1x32xf32> to vector<1x1x32xf32>
    %298 = vector.broadcast %297 : vector<1x1x32xf32> to vector<1x8x32xf32>
    %299 = arith.mulf %296, %298 : vector<1x8x32xf32>
    %300 = vector.shape_cast %23 : vector<1x32xf32> to vector<1x1x32xf32>
    %301 = vector.broadcast %300 : vector<1x1x32xf32> to vector<1x8x32xf32>
    %302 = arith.addf %299, %301 : vector<1x8x32xf32>
    %c0_98 = arith.constant 0 : index
    %c0_99 = arith.constant 0 : index
    %c0_100 = arith.constant 0 : index
    %303 = vector.load %arg18[%c0_98, %c0_99, %c0_100] : memref<1x8x32xf32, #tpu.memory_space<vmem>>, vector<1x8x32xf32>
    tpu.vector_store %arg18[%c0_98, %c0_99, %c0_100], %302 {strides = array<i32>} : memref<1x8x32xf32, #tpu.memory_space<vmem>>, vector<1x8x32xf32>,
    %c0_101 = arith.constant 0 : index
    %c0_102 = arith.constant 0 : index
    %304 = vector.load %arg16[%c0_101, %c0_102] : memref<2x32xf32, #tpu.memory_space<vmem>>, vector<2x32xf32>
    %c1_i32 = arith.constant 1 : i32
    %305 = arith.cmpi eq, %arg1, %c1_i32 : i32
    %306 = arith.extui %305 : i1 to i32
    %c0_i32_103 = arith.constant 0 : i32
    %307 = arith.cmpi ne, %306, %c0_i32_103 : i32
    scf.if %307 {
      %308 = vector.extract_strided_slice %304 {offsets = [0, 0], sizes = [1, 32], strides = [1, 1]} : vector<2x32xf32> to vector<1x32xf32>
      %309 = vector.extract_strided_slice %304 {offsets = [1, 0], sizes = [1, 32], strides = [1, 1]} : vector<2x32xf32> to vector<1x32xf32>
      %cst_104 = arith.constant dense<0.000000e+00> : vector<1x8xf32>
      %310 = vector.multi_reduction <add>, %302, %cst_104 [2] : vector<1x8x32xf32> to vector<1x8xf32>
      %311 = vector.shape_cast %310 : vector<1x8xf32> to vector<1x8x1xf32>
      %cst_105 = arith.constant 3.200000e+01 : f32
      %312 = vector.broadcast %cst_105 : f32 to vector<1x8x1xf32>
      %313 = arith.divf %311, %312 : vector<1x8x1xf32>
      %314 = vector.broadcast %313 : vector<1x8x1xf32> to vector<1x8x32xf32>
      %315 = arith.subf %302, %314 : vector<1x8x32xf32>
      %316 = arith.mulf %315, %315 : vector<1x8x32xf32>
      %cst_106 = arith.constant dense<0.000000e+00> : vector<1x8xf32>
      %317 = vector.multi_reduction <add>, %316, %cst_106 [2] : vector<1x8x32xf32> to vector<1x8xf32>
      %318 = vector.shape_cast %317 : vector<1x8xf32> to vector<1x8x1xf32>
      %cst_107 = arith.constant 3.200000e+01 : f32
      %319 = vector.broadcast %cst_107 : f32 to vector<1x8x1xf32>
      %320 = arith.divf %318, %319 : vector<1x8x1xf32>
      %321 = vector.broadcast %313 : vector<1x8x1xf32> to vector<1x8x32xf32>
      %322 = arith.subf %302, %321 : vector<1x8x32xf32>
      %cst_108 = arith.constant 9.99999974E-6 : f32
      %323 = vector.broadcast %cst_108 : f32 to vector<1x8x1xf32>
      %324 = arith.addf %320, %323 : vector<1x8x1xf32>
      %325 = math.rsqrt %324 : vector<1x8x1xf32>
      %326 = vector.broadcast %325 : vector<1x8x1xf32> to vector<1x8x32xf32>
      %327 = arith.mulf %322, %326 : vector<1x8x32xf32>
      %328 = vector.shape_cast %308 : vector<1x32xf32> to vector<1x1x32xf32>
      %329 = vector.broadcast %328 : vector<1x1x32xf32> to vector<1x8x32xf32>
      %330 = arith.mulf %327, %329 : vector<1x8x32xf32>
      %331 = vector.shape_cast %309 : vector<1x32xf32> to vector<1x1x32xf32>
      %332 = vector.broadcast %331 : vector<1x1x32xf32> to vector<1x8x32xf32>
      %333 = arith.addf %330, %332 : vector<1x8x32xf32>
      %c0_109 = arith.constant 0 : index
      %c0_110 = arith.constant 0 : index
      %c0_111 = arith.constant 0 : index
      %334 = vector.load %arg17[%c0_109, %c0_110, %c0_111] : memref<1x8x32xf32, #tpu.memory_space<vmem>>, vector<1x8x32xf32>
      tpu.vector_store %arg17[%c0_109, %c0_110, %c0_111], %333 {strides = array<i32>} : memref<1x8x32xf32, #tpu.memory_space<vmem>>, vector<1x8x32xf32>,
    } else {
    }
    return
  }
  func.func @transform_0(%arg0: i32, %arg1: i32) -> (i32, i32, i32) {
    %c0_i32 = arith.constant 0 : i32
    %c0_i32_0 = arith.constant 0 : i32
    %c0_i32_1 = arith.constant 0 : i32
    return %arg0, %c0_i32, %c0_i32_0 : i32, i32, i32
  }
  func.func @transform_1(%arg0: i32, %arg1: i32) -> (i32, i32, i32) {
    %c0_i32 = arith.constant 0 : i32
    %c0_i32_0 = arith.constant 0 : i32
    %c0_i32_1 = arith.constant 0 : i32
    return %arg0, %c0_i32, %c0_i32_0 : i32, i32, i32
  }
  func.func @transform_2(%arg0: i32, %arg1: i32) -> (i32, i32, i32) {
    %c0_i32 = arith.constant 0 : i32
    %c0_i32_0 = arith.constant 0 : i32
    %c0_i32_1 = arith.constant 0 : i32
    return %arg0, %c0_i32, %c0_i32_0 : i32, i32, i32
  }
  func.func @transform_3(%arg0: i32, %arg1: i32) -> (i32, i32, i32) {
    %c0_i32 = arith.constant 0 : i32
    %c0_i32_0 = arith.constant 0 : i32
    %c0_i32_1 = arith.constant 0 : i32
    return %arg0, %c0_i32, %c0_i32_0 : i32, i32, i32
  }
  func.func @transform_4(%arg0: i32, %arg1: i32) -> (i32, i32, i32) {
    %c0_i32 = arith.constant 0 : i32
    %c0_i32_0 = arith.constant 0 : i32
    %c0_i32_1 = arith.constant 0 : i32
    return %arg1, %c0_i32, %c0_i32_0 : i32, i32, i32
  }
  func.func @transform_5(%arg0: i32, %arg1: i32) -> (i32, i32, i32) {
    %c0_i32 = arith.constant 0 : i32
    %c0_i32_0 = arith.constant 0 : i32
    %c0_i32_1 = arith.constant 0 : i32
    return %arg1, %c0_i32, %c0_i32_0 : i32, i32, i32
  }
  func.func @transform_6(%arg0: i32, %arg1: i32) -> (i32, i32, i32) {
    %c0_i32 = arith.constant 0 : i32
    %c0_i32_0 = arith.constant 0 : i32
    %c0_i32_1 = arith.constant 0 : i32
    return %arg1, %c0_i32, %c0_i32_0 : i32, i32, i32
  }
  func.func @transform_7(%arg0: i32, %arg1: i32) -> (i32, i32, i32) {
    %c0_i32 = arith.constant 0 : i32
    %c0_i32_0 = arith.constant 0 : i32
    %c0_i32_1 = arith.constant 0 : i32
    return %arg1, %c0_i32, %c0_i32_0 : i32, i32, i32
  }
  func.func @transform_8(%arg0: i32, %arg1: i32) -> (i32, i32, i32) {
    %c0_i32 = arith.constant 0 : i32
    %c0_i32_0 = arith.constant 0 : i32
    %c0_i32_1 = arith.constant 0 : i32
    return %arg1, %c0_i32, %c0_i32_0 : i32, i32, i32
  }
  func.func @transform_9(%arg0: i32, %arg1: i32) -> (i32, i32, i32) {
    %c0_i32 = arith.constant 0 : i32
    %c0_i32_0 = arith.constant 0 : i32
    %c0_i32_1 = arith.constant 0 : i32
    return %arg1, %c0_i32, %c0_i32_0 : i32, i32, i32
  }
  func.func @transform_10(%arg0: i32, %arg1: i32) -> (i32, i32, i32) {
    %c0_i32 = arith.constant 0 : i32
    %c0_i32_0 = arith.constant 0 : i32
    %c0_i32_1 = arith.constant 0 : i32
    return %arg1, %c0_i32, %c0_i32_0 : i32, i32, i32
  }
  func.func @transform_11(%arg0: i32, %arg1: i32) -> (i32, i32, i32) {
    %c0_i32 = arith.constant 0 : i32
    %c0_i32_0 = arith.constant 0 : i32
    %c0_i32_1 = arith.constant 0 : i32
    return %arg1, %c0_i32, %c0_i32_0 : i32, i32, i32
  }
  func.func @transform_12(%arg0: i32, %arg1: i32) -> (i32, i32, i32) {
    %c0_i32 = arith.constant 0 : i32
    %c0_i32_0 = arith.constant 0 : i32
    %c0_i32_1 = arith.constant 0 : i32
    return %arg1, %c0_i32, %c0_i32_0 : i32, i32, i32
  }
  func.func @transform_13(%arg0: i32, %arg1: i32) -> (i32, i32, i32) {
    %c0_i32 = arith.constant 0 : i32
    %c0_i32_0 = arith.constant 0 : i32
    %c0_i32_1 = arith.constant 0 : i32
    return %arg1, %c0_i32, %c0_i32_0 : i32, i32, i32
  }
  func.func @transform_14(%arg0: i32, %arg1: i32) -> (i32, i32) {
    %c0_i32 = arith.constant 0 : i32
    %c0_i32_0 = arith.constant 0 : i32
    %c0_i32_1 = arith.constant 0 : i32
    return %c0_i32, %c0_i32_0 : i32, i32
  }
  func.func @transform_15(%arg0: i32, %arg1: i32) -> (i32, i32, i32) {
    %c0_i32 = arith.constant 0 : i32
    %c0_i32_0 = arith.constant 0 : i32
    %c0_i32_1 = arith.constant 0 : i32
    return %arg0, %c0_i32, %c0_i32_0 : i32, i32, i32
  }
}

</mosaic_0001>

<llo_original>
// kernel: transformer_decoder.1
$region0: #{transformer_decoder.1}
  #allocation0 [shape = 'u32[]', space=smem, size = 0x4, offset = 0x4, fixed_abs, tag = 'smem constant byte address 0x4 - core index']
  #allocation1 [shape = 'u32[144,128]{1,0:T(1,128)}', space=vmem, size = 0x12000, scoped, tag = 'internal scratch']
  #allocation2 [shape = 'f32[1,8,32]{2,1,0:T(8,128)}', space=vmem, size = 0x1000, scoped, tag = 'scratch operand']
  %s0 = inlined_call_operand.vmem [shape: f32[2,8,32], index: 0, kind: input, shape index: {}]
  %s1 = inlined_call_operand.vmem [shape: f32[2,8,32], index: 1, kind: input, shape index: {}]
  %s2 = inlined_call_operand.vmem [shape: f32[2,16,32], index: 2, kind: input, shape index: {}]
  %s3 = inlined_call_operand.vmem [shape: f32[2,16,32], index: 3, kind: input, shape index: {}]
  %s4 = inlined_call_operand.vmem [shape: bf16[2,32,64], index: 4, kind: input, shape index: {}]
  %s5 = inlined_call_operand.vmem [shape: bf16[2,32,32], index: 5, kind: input, shape index: {}]
  %s6 = inlined_call_operand.vmem [shape: bf16[2,32,32], index: 6, kind: input, shape index: {}]
  %s7 = inlined_call_operand.vmem [shape: bf16[2,32,32], index: 7, kind: input, shape index: {}]
  %s8 = inlined_call_operand.vmem [shape: bf16[2,32,32], index: 8, kind: input, shape index: {}]
  %s9 = inlined_call_operand.vmem [shape: bf16[2,32,32], index: 9, kind: input, shape index: {}]
  %s10 = inlined_call_operand.vmem [shape: bf16[2,32,32], index: 10, kind: input, shape index: {}]
  %s11 = inlined_call_operand.vmem [shape: bf16[2,33,64], index: 11, kind: input, shape index: {}]
  %s12 = inlined_call_operand.vmem [shape: bf16[2,64,32], index: 12, kind: input, shape index: {}]
  %s13 = inlined_call_operand.hbm [shape: f32[2,16,32], index: 13, kind: input, shape index: {}]
  %s14 = inlined_call_operand.vmem [shape: f32[2,32], index: 14, kind: input, shape index: {}]
  %s15 = inlined_call_operand.vmem [shape: f32[2,8,32], index: 15, kind: output, shape index: {}]
  %s16 = sld [smem:[#allocation0]]
  $region105: #{transformer_decoder.1} parent=0
    _
  %s18 = ssub.s32 1, %s16
  %s19 = scalar_select 0, %s18, %s16
  $region1: #{transformer_decoder.1} parent=0
    #allocation3 [shape = 'u8[16384]{0}', space=vmem, size = 0x4000, scoped, tag = 'input window, operand 13']
    #allocation4 [shape = 's32[2]{0}', space=sflag, size = 0x8, scoped, tag = 'scoped memory for transformer_decoder.1']
    %20 = vsyncpa [#allocation4], 0
    %s21 = scalar_lea.sflag [#allocation4], 1
    %22 = vsyncpa %s21, 0
    loop: start=0, step=1, limit=6
    $region2: #{transformer_decoder.1} parent=1 // loop_pre_header
      _
    $region3: #{transformer_decoder.1} parent=1 // loop_header
      %s24 = sphi 0, %s28
      %p25 = scmp.ge.s32.totalorder %s24, 6
      %s31 = sphi 0, %s43
      %s32 = sphi 0, %s39
      %s33 = sphi 0, %s31
      %s34 = sphi 0, %s32
      %s35 = sphi 0, %s33
      %s36 = sphi 0, %s34
      %s46 = sphi 0, %s48
      %s49 = sphi 0, %s46
      %s50 = sphi 0, %s49
      %s66 = sphi 0, %s50
      %s72 = sphi 0, %s74
      %s75 = sphi 0, %s72
      %s76 = sphi 0, %s75
      %s92 = sphi 0, %s76
      %s98 = sphi 0, %s100
      %s101 = sphi 0, %s98
      %s102 = sphi 0, %s101
      %s118 = sphi 0, %s102
      %s124 = sphi 0, %s126
      %s127 = sphi 0, %s124
      %s128 = sphi 0, %s127
      %s144 = sphi 0, %s128
      %s150 = sphi 0, %s152
      %s153 = sphi 0, %s150
      %s154 = sphi 0, %s153
      %s170 = sphi 0, %s154
      %s176 = sphi 0, %s178
      %s179 = sphi 0, %s176
      %s180 = sphi 0, %s179
      %s196 = sphi 0, %s180
      %s202 = sphi 0, %s204
      %s205 = sphi 0, %s202
      %s206 = sphi 0, %s205
      %s222 = sphi 0, %s206
      %s228 = sphi 0, %s230
      %s231 = sphi 0, %s228
      %s232 = sphi 0, %s231
      %s248 = sphi 0, %s232
      %s254 = sphi 0, %s256
      %s257 = sphi 0, %s254
      %s258 = sphi 0, %s257
      %s274 = sphi 0, %s258
      %s280 = sphi 0, %s282
      %s283 = sphi 0, %s280
      %s284 = sphi 0, %s283
      %s300 = sphi 0, %s284
      %s306 = sphi 0, %s308
      %s309 = sphi 0, %s306
      %s310 = sphi 0, %s309
      %s326 = sphi 0, %s310
      %s332 = sphi 0, %s334
      %s335 = sphi 0, %s332
      %s336 = sphi 0, %s335
      %s352 = sphi 0, %s336
      %s358 = sphi 0, %s360
      %s361 = sphi 0, %s358
      %s362 = sphi 0, %s361
      %s378 = sphi 0, %s362
      %s384 = sphi 0, %s386
      %s387 = sphi 0, %s384
      %s388 = sphi 0, %s387
      %s404 = sphi 0, %s388
      %s408 = sphi 0, %s408
      %s410 = sphi 0, %s408
      %s411 = sphi 0, %s410
      %s425 = sphi 0, %s411
      %s431 = sphi 0, %s433
      %s434 = sphi 0, %s431
      %s435 = sphi 0, %s434
      %s451 = sphi 0, %s435
    $region4: #{transformer_decoder.1} parent=1 // loop_header_branch
      %27 = sbr.rel (%p25) target = $region8
    $region5: #{transformer_decoder.1} parent=1 // loop_body
      %s29 = ssub.s32 %s24, 1
      %s30 = ssub.s32 %s24, 2
      %s37 = sadd.s32 1, %s32
      %p38 = scmp.ge.s32.totalorder %s37, 2
      %s39 = scalar_select %p38, 0, %s37
      %s40 = sadd.s32 1, %s31
      %s41 = scalar_select %p38, %s40, %s31
      %p42 = scmp.ge.s32.totalorder %s41, 2
      %s43 = scalar_select %p42, 0, %s41
      %s44 = ssub.s32 %s31, %s43
      %p45 = scmp.eq.s32.totalorder %s44, 0
      %s47 = sadd.s32 %s46, 1
      %s48 = scalar_select %p45, %s46, %s47
      %p51 = pneg %p45
      %p52 = scmp.eq.s32.totalorder %s24, 3
      %p53 = por %p51, %p52
      %p54 = scmp.ne.s32.totalorder %s46, %s49
      %p55 = scmp.eq.s32.totalorder %s24, 0
      %p56 = por %p54, %p55
      %p57 = scmp.ne.s32.totalorder %s46, %s49
      %p58 = scmp.eq.s32.totalorder %s29, 3
      %p59 = por %p57, %p58
      %p60 = scmp.ne.s32.totalorder %s49, %s50
      %p61 = scmp.eq.s32.totalorder %s29, 0
      %p62 = por %p60, %p61
      %p63 = scmp.ne.s32.totalorder %s49, %s50
      %p64 = scmp.eq.s32.totalorder %s30, 3
      %p65 = por %p63, %p64
      %p67 = scmp.ne.s32.totalorder %s50, %s66
      %p68 = scmp.eq.s32.totalorder %s30, 0
      %p69 = por %p67, %p68
      %s70 = ssub.s32 %s31, %s43
      %p71 = scmp.eq.s32.totalorder %s70, 0
      %s73 = sadd.s32 %s72, 1
      %s74 = scalar_select %p71, %s72, %s73
      %p77 = pneg %p71
      %p78 = scmp.eq.s32.totalorder %s24, 3
      %p79 = por %p77, %p78
      %p80 = scmp.ne.s32.totalorder %s72, %s75
      %p81 = scmp.eq.s32.totalorder %s24, 0
      %p82 = por %p80, %p81
      %p83 = scmp.ne.s32.totalorder %s72, %s75
      %p84 = scmp.eq.s32.totalorder %s29, 3
      %p85 = por %p83, %p84
      %p86 = scmp.ne.s32.totalorder %s75, %s76
      %p87 = scmp.eq.s32.totalorder %s29, 0
      %p88 = por %p86, %p87
      %p89 = scmp.ne.s32.totalorder %s75, %s76
      %p90 = scmp.eq.s32.totalorder %s30, 3
      %p91 = por %p89, %p90
      %p93 = scmp.ne.s32.totalorder %s76, %s92
      %p94 = scmp.eq.s32.totalorder %s30, 0
      %p95 = por %p93, %p94
      %s96 = ssub.s32 %s31, %s43
      %p97 = scmp.eq.s32.totalorder %s96, 0
      %s99 = sadd.s32 %s98, 1
      %s100 = scalar_select %p97, %s98, %s99
      %p103 = pneg %p97
      %p104 = scmp.eq.s32.totalorder %s24, 3
      %p105 = por %p103, %p104
      %p106 = scmp.ne.s32.totalorder %s98, %s101
      %p107 = scmp.eq.s32.totalorder %s24, 0
      %p108 = por %p106, %p107
      %p109 = scmp.ne.s32.totalorder %s98, %s101
      %p110 = scmp.eq.s32.totalorder %s29, 3
      %p111 = por %p109, %p110
      %p112 = scmp.ne.s32.totalorder %s101, %s102
      %p113 = scmp.eq.s32.totalorder %s29, 0
      %p114 = por %p112, %p113
      %p115 = scmp.ne.s32.totalorder %s101, %s102
      %p116 = scmp.eq.s32.totalorder %s30, 3
      %p117 = por %p115, %p116
      %p119 = scmp.ne.s32.totalorder %s102, %s118
      %p120 = scmp.eq.s32.totalorder %s30, 0
      %p121 = por %p119, %p120
      %s122 = ssub.s32 %s31, %s43
      %p123 = scmp.eq.s32.totalorder %s122, 0
      %s125 = sadd.s32 %s124, 1
      %s126 = scalar_select %p123, %s124, %s125
      %p129 = pneg %p123
      %p130 = scmp.eq.s32.totalorder %s24, 3
      %p131 = por %p129, %p130
      %p132 = scmp.ne.s32.totalorder %s124, %s127
      %p133 = scmp.eq.s32.totalorder %s24, 0
      %p134 = por %p132, %p133
      %p135 = scmp.ne.s32.totalorder %s124, %s127
      %p136 = scmp.eq.s32.totalorder %s29, 3
      %p137 = por %p135, %p136
      %p138 = scmp.ne.s32.totalorder %s127, %s128
      %p139 = scmp.eq.s32.totalorder %s29, 0
      %p140 = por %p138, %p139
      %p141 = scmp.ne.s32.totalorder %s127, %s128
      %p142 = scmp.eq.s32.totalorder %s30, 3
      %p143 = por %p141, %p142
      %p145 = scmp.ne.s32.totalorder %s128, %s144
      %p146 = scmp.eq.s32.totalorder %s30, 0
      %p147 = por %p145, %p146
      %s148 = ssub.s32 %s32, %s39
      %p149 = scmp.eq.s32.totalorder %s148, 0
      %s151 = sadd.s32 %s150, 1
      %s152 = scalar_select %p149, %s150, %s151
      %p155 = pneg %p149
      %p156 = scmp.eq.s32.totalorder %s24, 3
      %p157 = por %p155, %p156
      %p158 = scmp.ne.s32.totalorder %s150, %s153
      %p159 = scmp.eq.s32.totalorder %s24, 0
      %p160 = por %p158, %p159
      %p161 = scmp.ne.s32.totalorder %s150, %s153
      %p162 = scmp.eq.s32.totalorder %s29, 3
      %p163 = por %p161, %p162
      %p164 = scmp.ne.s32.totalorder %s153, %s154
      %p165 = scmp.eq.s32.totalorder %s29, 0
      %p166 = por %p164, %p165
      %p167 = scmp.ne.s32.totalorder %s153, %s154
      %p168 = scmp.eq.s32.totalorder %s30, 3
      %p169 = por %p167, %p168
      %p171 = scmp.ne.s32.totalorder %s154, %s170
      %p172 = scmp.eq.s32.totalorder %s30, 0
      %p173 = por %p171, %p172
      %s174 = ssub.s32 %s32, %s39
      %p175 = scmp.eq.s32.totalorder %s174, 0
      %s177 = sadd.s32 %s176, 1
      %s178 = scalar_select %p175, %s176, %s177
      %p181 = pneg %p175
      %p182 = scmp.eq.s32.totalorder %s24, 3
      %p183 = por %p181, %p182
      %p184 = scmp.ne.s32.totalorder %s176, %s179
      %p185 = scmp.eq.s32.totalorder %s24, 0
      %p186 = por %p184, %p185
      %p187 = scmp.ne.s32.totalorder %s176, %s179
      %p188 = scmp.eq.s32.totalorder %s29, 3
      %p189 = por %p187, %p188
      %p190 = scmp.ne.s32.totalorder %s179, %s180
      %p191 = scmp.eq.s32.totalorder %s29, 0
      %p192 = por %p190, %p191
      %p193 = scmp.ne.s32.totalorder %s179, %s180
      %p194 = scmp.eq.s32.totalorder %s30, 3
      %p195 = por %p193, %p194
      %p197 = scmp.ne.s32.totalorder %s180, %s196
      %p198 = scmp.eq.s32.totalorder %s30, 0
      %p199 = por %p197, %p198
      %s200 = ssub.s32 %s32, %s39
      %p201 = scmp.eq.s32.totalorder %s200, 0
      %s203 = sadd.s32 %s202, 1
      %s204 = scalar_select %p201, %s202, %s203
      %p207 = pneg %p201
      %p208 = scmp.eq.s32.totalorder %s24, 3
      %p209 = por %p207, %p208
      %p210 = scmp.ne.s32.totalorder %s202, %s205
      %p211 = scmp.eq.s32.totalorder %s24, 0
      %p212 = por %p210, %p211
      %p213 = scmp.ne.s32.totalorder %s202, %s205
      %p214 = scmp.eq.s32.totalorder %s29, 3
      %p215 = por %p213, %p214
      %p216 = scmp.ne.s32.totalorder %s205, %s206
      %p217 = scmp.eq.s32.totalorder %s29, 0
      %p218 = por %p216, %p217
      %p219 = scmp.ne.s32.totalorder %s205, %s206
      %p220 = scmp.eq.s32.totalorder %s30, 3
      %p221 = por %p219, %p220
      %p223 = scmp.ne.s32.totalorder %s206, %s222
      %p224 = scmp.eq.s32.totalorder %s30, 0
      %p225 = por %p223, %p224
      %s226 = ssub.s32 %s32, %s39
      %p227 = scmp.eq.s32.totalorder %s226, 0
      %s229 = sadd.s32 %s228, 1
      %s230 = scalar_select %p227, %s228, %s229
      %p233 = pneg %p227
      %p234 = scmp.eq.s32.totalorder %s24, 3
      %p235 = por %p233, %p234
      %p236 = scmp.ne.s32.totalorder %s228, %s231
      %p237 = scmp.eq.s32.totalorder %s24, 0
      %p238 = por %p236, %p237
      %p239 = scmp.ne.s32.totalorder %s228, %s231
      %p240 = scmp.eq.s32.totalorder %s29, 3
      %p241 = por %p239, %p240
      %p242 = scmp.ne.s32.totalorder %s231, %s232
      %p243 = scmp.eq.s32.totalorder %s29, 0
      %p244 = por %p242, %p243
      %p245 = scmp.ne.s32.totalorder %s231, %s232
      %p246 = scmp.eq.s32.totalorder %s30, 3
      %p247 = por %p245, %p246
      %p249 = scmp.ne.s32.totalorder %s232, %s248
      %p250 = scmp.eq.s32.totalorder %s30, 0
      %p251 = por %p249, %p250
      %s252 = ssub.s32 %s32, %s39
      %p253 = scmp.eq.s32.totalorder %s252, 0
      %s255 = sadd.s32 %s254, 1
      %s256 = scalar_select %p253, %s254, %s255
      %p259 = pneg %p253
      %p260 = scmp.eq.s32.totalorder %s24, 3
      %p261 = por %p259, %p260
      %p262 = scmp.ne.s32.totalorder %s254, %s257
      %p263 = scmp.eq.s32.totalorder %s24, 0
      %p264 = por %p262, %p263
      %p265 = scmp.ne.s32.totalorder %s254, %s257
      %p266 = scmp.eq.s32.totalorder %s29, 3
      %p267 = por %p265, %p266
      %p268 = scmp.ne.s32.totalorder %s257, %s258
      %p269 = scmp.eq.s32.totalorder %s29, 0
      %p270 = por %p268, %p269
      %p271 = scmp.ne.s32.totalorder %s257, %s258
      %p272 = scmp.eq.s32.totalorder %s30, 3
      %p273 = por %p271, %p272
      %p275 = scmp.ne.s32.totalorder %s258, %s274
      %p276 = scmp.eq.s32.totalorder %s30, 0
      %p277 = por %p275, %p276
      %s278 = ssub.s32 %s32, %s39
      %p279 = scmp.eq.s32.totalorder %s278, 0
      %s281 = sadd.s32 %s280, 1
      %s282 = scalar_select %p279, %s280, %s281
      %p285 = pneg %p279
      %p286 = scmp.eq.s32.totalorder %s24, 3
      %p287 = por %p285, %p286
      %p288 = scmp.ne.s32.totalorder %s280, %s283
      %p289 = scmp.eq.s32.totalorder %s24, 0
      %p290 = por %p288, %p289
      %p291 = scmp.ne.s32.totalorder %s280, %s283
      %p292 = scmp.eq.s32.totalorder %s29, 3
      %p293 = por %p291, %p292
      %p294 = scmp.ne.s32.totalorder %s283, %s284
      %p295 = scmp.eq.s32.totalorder %s29, 0
      %p296 = por %p294, %p295
      %p297 = scmp.ne.s32.totalorder %s283, %s284
      %p298 = scmp.eq.s32.totalorder %s30, 3
      %p299 = por %p297, %p298
      %p301 = scmp.ne.s32.totalorder %s284, %s300
      %p302 = scmp.eq.s32.totalorder %s30, 0
      %p303 = por %p301, %p302
      %s304 = ssub.s32 %s32, %s39
      %p305 = scmp.eq.s32.totalorder %s304, 0
      %s307 = sadd.s32 %s306, 1
      %s308 = scalar_select %p305, %s306, %s307
      %p311 = pneg %p305
      %p312 = scmp.eq.s32.totalorder %s24, 3
      %p313 = por %p311, %p312
      %p314 = scmp.ne.s32.totalorder %s306, %s309
      %p315 = scmp.eq.s32.totalorder %s24, 0
      %p316 = por %p314, %p315
      %p317 = scmp.ne.s32.totalorder %s306, %s309
      %p318 = scmp.eq.s32.totalorder %s29, 3
      %p319 = por %p317, %p318
      %p320 = scmp.ne.s32.totalorder %s309, %s310
      %p321 = scmp.eq.s32.totalorder %s29, 0
      %p322 = por %p320, %p321
      %p323 = scmp.ne.s32.totalorder %s309, %s310
      %p324 = scmp.eq.s32.totalorder %s30, 3
      %p325 = por %p323, %p324
      %p327 = scmp.ne.s32.totalorder %s310, %s326
      %p328 = scmp.eq.s32.totalorder %s30, 0
      %p329 = por %p327, %p328
      %s330 = ssub.s32 %s32, %s39
      %p331 = scmp.eq.s32.totalorder %s330, 0
      %s333 = sadd.s32 %s332, 1
      %s334 = scalar_select %p331, %s332, %s333
      %p337 = pneg %p331
      %p338 = scmp.eq.s32.totalorder %s24, 3
      %p339 = por %p337, %p338
      %p340 = scmp.ne.s32.totalorder %s332, %s335
      %p341 = scmp.eq.s32.totalorder %s24, 0
      %p342 = por %p340, %p341
      %p343 = scmp.ne.s32.totalorder %s332, %s335
      %p344 = scmp.eq.s32.totalorder %s29, 3
      %p345 = por %p343, %p344
      %p346 = scmp.ne.s32.totalorder %s335, %s336
      %p347 = scmp.eq.s32.totalorder %s29, 0
      %p348 = por %p346, %p347
      %p349 = scmp.ne.s32.totalorder %s335, %s336
      %p350 = scmp.eq.s32.totalorder %s30, 3
      %p351 = por %p349, %p350
      %p353 = scmp.ne.s32.totalorder %s336, %s352
      %p354 = scmp.eq.s32.totalorder %s30, 0
      %p355 = por %p353, %p354
      %s356 = ssub.s32 %s32, %s39
      %p357 = scmp.eq.s32.totalorder %s356, 0
      %s359 = sadd.s32 %s358, 1
      %s360 = scalar_select %p357, %s358, %s359
      %p363 = pneg %p357
      %p364 = scmp.eq.s32.totalorder %s24, 3
      %p365 = por %p363, %p364
      %p366 = scmp.ne.s32.totalorder %s358, %s361
      %p367 = scmp.eq.s32.totalorder %s24, 0
      %p368 = por %p366, %p367
      %p369 = scmp.ne.s32.totalorder %s358, %s361
      %p370 = scmp.eq.s32.totalorder %s29, 3
      %p371 = por %p369, %p370
      %p372 = scmp.ne.s32.totalorder %s361, %s362
      %p373 = scmp.eq.s32.totalorder %s29, 0
      %p374 = por %p372, %p373
      %p375 = scmp.ne.s32.totalorder %s361, %s362
      %p376 = scmp.eq.s32.totalorder %s30, 3
      %p377 = por %p375, %p376
      %p379 = scmp.ne.s32.totalorder %s362, %s378
      %p380 = scmp.eq.s32.totalorder %s30, 0
      %p381 = por %p379, %p380
      %s382 = ssub.s32 %s32, %s39
      %p383 = scmp.eq.s32.totalorder %s382, 0
      %s385 = sadd.s32 %s384, 1
      %s386 = scalar_select %p383, %s384, %s385
      %p389 = pneg %p383
      %p390 = scmp.eq.s32.totalorder %s24, 3
      %p391 = por %p389, %p390
      %p392 = scmp.ne.s32.totalorder %s384, %s387
      %p393 = scmp.eq.s32.totalorder %s24, 0
      %p394 = por %p392, %p393
      %p395 = scmp.ne.s32.totalorder %s384, %s387
      %p396 = scmp.eq.s32.totalorder %s29, 3
      %p397 = por %p395, %p396
      %p398 = scmp.ne.s32.totalorder %s387, %s388
      %p399 = scmp.eq.s32.totalorder %s29, 0
      %p400 = por %p398, %p399
      %p401 = scmp.ne.s32.totalorder %s387, %s388
      %p402 = scmp.eq.s32.totalorder %s30, 3
      %p403 = por %p401, %p402
      %p405 = scmp.ne.s32.totalorder %s388, %s404
      %p406 = scmp.eq.s32.totalorder %s30, 0
      %p407 = por %p405, %p406
      %s409 = sadd.s32 %s408, 1
      %p412 = scmp.eq.s32.totalorder %s24, 3
      %p413 = scmp.ne.s32.totalorder %s408, %s410
      %p414 = scmp.eq.s32.totalorder %s24, 0
      %p415 = por %p413, %p414
      %p416 = scmp.ne.s32.totalorder %s408, %s410
      %p417 = scmp.eq.s32.totalorder %s29, 3
      %p418 = por %p416, %p417
      %p419 = scmp.ne.s32.totalorder %s410, %s411
      %p420 = scmp.eq.s32.totalorder %s29, 0
      %p421 = por %p419, %p420
      %p422 = scmp.ne.s32.totalorder %s410, %s411
      %p423 = scmp.eq.s32.totalorder %s30, 3
      %p424 = por %p422, %p423
      %p426 = scmp.ne.s32.totalorder %s411, %s425
      %p427 = scmp.eq.s32.totalorder %s30, 0
      %p428 = por %p426, %p427
      %s429 = ssub.s32 %s31, %s43
      %p430 = scmp.eq.s32.totalorder %s429, 0
      %s432 = sadd.s32 %s431, 1
      %s433 = scalar_select %p430, %s431, %s432
      %p436 = pneg %p430
      %p437 = scmp.eq.s32.totalorder %s24, 3
      %p438 = por %p436, %p437
      %p439 = scmp.ne.s32.totalorder %s431, %s434
      %p440 = scmp.eq.s32.totalorder %s24, 0
      %p441 = por %p439, %p440
      %p442 = scmp.ne.s32.totalorder %s431, %s434
      %p443 = scmp.eq.s32.totalorder %s29, 3
      %p444 = por %p442, %p443
      %p445 = scmp.ne.s32.totalorder %s434, %s435
      %p446 = scmp.eq.s32.totalorder %s29, 0
      %p447 = por %p445, %p446
      %p448 = scmp.ne.s32.totalorder %s434, %s435
      %p449 = scmp.eq.s32.totalorder %s30, 3
      %p450 = por %p448, %p449
      %p452 = scmp.ne.s32.totalorder %s435, %s451
      %p453 = scmp.eq.s32.totalorder %s30, 0
      %p454 = por %p452, %p453
      %p455 = scmp.le.s32.totalorder 1, %s24
      %p456 = scmp.lt.s32.totalorder %s24, 5
      %p457 = pnand %p455, %p456
      %p458 = pneg %p457
      // Predicated region
      $region9: #{transformer_decoder.1} parent=5 // pred_check
        _
      $region10: #{transformer_decoder.1} parent=5 // pred_check_branch
        %460 = sbr.rel (%p457) target = $region12
      $region11: #{transformer_decoder.1} parent=5 // pred_region
        %s461 = ssub.s32 %s24, 1
        // Predicated region
        $region13: #{transformer_decoder.1} parent=11 // pred_check
          %p462 = pneg %p421
        $region14: #{transformer_decoder.1} parent=11 // pred_check_branch
          %464 = sbr.rel (%p462) target = $region16
        $region15: #{transformer_decoder.1} parent=11 // pred_region
          _
        $region16: #{transformer_decoder.1} parent=11 // pred_fallthru
          _
      $region12: #{transformer_decoder.1} parent=5 // pred_fallthru
        _
      %p465 = scmp.lt.s32.totalorder %s24, 4
      // Predicated region
      $region17: #{transformer_decoder.1} parent=5 // pred_check
        %p466 = pneg %p465
      $region18: #{transformer_decoder.1} parent=5 // pred_check_branch
        %468 = sbr.rel (%p466) target = $region20
      $region19: #{transformer_decoder.1} parent=5 // pred_region
        // Predicated region
        $region21: #{transformer_decoder.1} parent=19 // pred_check
          %p469 = pneg %p56
        $region22: #{transformer_decoder.1} parent=19 // pred_check_branch
          %471 = sbr.rel (%p469) target = $region24
        $region23: #{transformer_decoder.1} parent=19 // pred_region
          %p472 = scmp.lt.s32.totalorder %s31, 1
          %s473 = scalar_select %p472, %s31, 1
          %s474 = smul.addr %s473, 8
          %s475 = scalar_lea.vmem %s0, %s474
        $region24: #{transformer_decoder.1} parent=19 // pred_fallthru
          _
        // Predicated region
        $region25: #{transformer_decoder.1} parent=19 // pred_check
          %p476 = pneg %p82
        $region26: #{transformer_decoder.1} parent=19 // pred_check_branch
          %478 = sbr.rel (%p476) target = $region28
        $region27: #{transformer_decoder.1} parent=19 // pred_region
          %p479 = scmp.lt.s32.totalorder %s31, 1
          %s480 = scalar_select %p479, %s31, 1
          %s481 = smul.addr %s480, 8
          %s482 = scalar_lea.vmem %s1, %s481
        $region28: #{transformer_decoder.1} parent=19 // pred_fallthru
          _
        // Predicated region
        $region29: #{transformer_decoder.1} parent=19 // pred_check
          %p483 = pneg %p108
        $region30: #{transformer_decoder.1} parent=19 // pred_check_branch
          %485 = sbr.rel (%p483) target = $region32
        $region31: #{transformer_decoder.1} parent=19 // pred_region
          %p486 = scmp.lt.s32.totalorder %s31, 1
          %s487 = scalar_select %p486, %s31, 1
          %s488 = smul.addr %s487, 2
          %s489 = smul.addr %s488, 8
          %s490 = scalar_lea.vmem %s2, %s489
        $region32: #{transformer_decoder.1} parent=19 // pred_fallthru
          _
        // Predicated region
        $region33: #{transformer_decoder.1} parent=19 // pred_check
          %p491 = pneg %p134
        $region34: #{transformer_decoder.1} parent=19 // pred_check_branch
          %493 = sbr.rel (%p491) target = $region36
        $region35: #{transformer_decoder.1} parent=19 // pred_region
          %p494 = scmp.lt.s32.totalorder %s31, 1
          %s495 = scalar_select %p494, %s31, 1
          %s496 = smul.addr %s495, 2
          %s497 = smul.addr %s496, 8
          %s498 = scalar_lea.vmem %s3, %s497
        $region36: #{transformer_decoder.1} parent=19 // pred_fallthru
          _
        // Predicated region
        $region37: #{transformer_decoder.1} parent=19 // pred_check
          %p499 = pneg %p160
        $region38: #{transformer_decoder.1} parent=19 // pred_check_branch
          %501 = sbr.rel (%p499) target = $region40
        $region39: #{transformer_decoder.1} parent=19 // pred_region
          %p502 = scmp.lt.s32.totalorder %s32, 1
          %s503 = scalar_select %p502, %s32, 1
          %s504 = smul.addr %s503, 4
          %s505 = smul.addr %s504, 4
          %s506 = scalar_lea.vmem %s4, %s505
        $region40: #{transformer_decoder.1} parent=19 // pred_fallthru
          _
        // Predicated region
        $region41: #{transformer_decoder.1} parent=19 // pred_check
          %p507 = pneg %p186
        $region42: #{transformer_decoder.1} parent=19 // pred_check_branch
          %509 = sbr.rel (%p507) target = $region44
        $region43: #{transformer_decoder.1} parent=19 // pred_region
          %p510 = scmp.lt.s32.totalorder %s32, 1
          %s511 = scalar_select %p510, %s32, 1
          %s512 = smul.addr %s511, 4
          %s513 = smul.addr %s512, 4
          %s514 = scalar_lea.vmem %s5, %s513
        $region44: #{transformer_decoder.1} parent=19 // pred_fallthru
          _
        // Predicated region
        $region45: #{transformer_decoder.1} parent=19 // pred_check
          %p515 = pneg %p212
        $region46: #{transformer_decoder.1} parent=19 // pred_check_branch
          %517 = sbr.rel (%p515) target = $region48
        $region47: #{transformer_decoder.1} parent=19 // pred_region
          %p518 = scmp.lt.s32.totalorder %s32, 1
          %s519 = scalar_select %p518, %s32, 1
          %s520 = smul.addr %s519, 4
          %s521 = smul.addr %s520, 4
          %s522 = scalar_lea.vmem %s6, %s521
        $region48: #{transformer_decoder.1} parent=19 // pred_fallthru
          _
        // Predicated region
        $region49: #{transformer_decoder.1} parent=19 // pred_check
          %p523 = pneg %p238
        $region50: #{transformer_decoder.1} parent=19 // pred_check_branch
          %525 = sbr.rel (%p523) target = $region52
        $region51: #{transformer_decoder.1} parent=19 // pred_region
          %p526 = scmp.lt.s32.totalorder %s32, 1
          %s527 = scalar_select %p526, %s32, 1
          %s528 = smul.addr %s527, 4
          %s529 = smul.addr %s528, 4
          %s530 = scalar_lea.vmem %s7, %s529
        $region52: #{transformer_decoder.1} parent=19 // pred_fallthru
          _
        // Predicated region
        $region53: #{transformer_decoder.1} parent=19 // pred_check
          %p531 = pneg %p264
        $region54: #{transformer_decoder.1} parent=19 // pred_check_branch
          %533 = sbr.rel (%p531) target = $region56
        $region55: #{transformer_decoder.1} parent=19 // pred_region
          %p534 = scmp.lt.s32.totalorder %s32, 1
          %s535 = scalar_select %p534, %s32, 1
          %s536 = smul.addr %s535, 4
          %s537 = smul.addr %s536, 4
          %s538 = scalar_lea.vmem %s8, %s537
        $region56: #{transformer_decoder.1} parent=19 // pred_fallthru
          _
        // Predicated region
        $region57: #{transformer_decoder.1} parent=19 // pred_check
          %p539 = pneg %p290
        $region58: #{transformer_decoder.1} parent=19 // pred_check_branch
          %541 = sbr.rel (%p539) target = $region60
        $region59: #{transformer_decoder.1} parent=19 // pred_region
          %p542 = scmp.lt.s32.totalorder %s32, 1
          %s543 = scalar_select %p542, %s32, 1
          %s544 = smul.addr %s543, 4
          %s545 = smul.addr %s544, 4
          %s546 = scalar_lea.vmem %s9, %s545
        $region60: #{transformer_decoder.1} parent=19 // pred_fallthru
          _
        // Predicated region
        $region61: #{transformer_decoder.1} parent=19 // pred_check
          %p547 = pneg %p316
        $region62: #{transformer_decoder.1} parent=19 // pred_check_branch
          %549 = sbr.rel (%p547) target = $region64
        $region63: #{transformer_decoder.1} parent=19 // pred_region
          %p550 = scmp.lt.s32.totalorder %s32, 1
          %s551 = scalar_select %p550, %s32, 1
          %s552 = smul.addr %s551, 4
          %s553 = smul.addr %s552, 4
          %s554 = scalar_lea.vmem %s10, %s553
        $region64: #{transformer_decoder.1} parent=19 // pred_fallthru
          _
        // Predicated region
        $region65: #{transformer_decoder.1} parent=19 // pred_check
          %p555 = pneg %p342
        $region66: #{transformer_decoder.1} parent=19 // pred_check_branch
          %557 = sbr.rel (%p555) target = $region68
        $region67: #{transformer_decoder.1} parent=19 // pred_region
          %p558 = scmp.lt.s32.totalorder %s32, 1
          %s559 = scalar_select %p558, %s32, 1
          %s560 = smul.addr %s559, 5
          %s561 = smul.addr %s560, 4
          %s562 = scalar_lea.vmem %s11, %s561
        $region68: #{transformer_decoder.1} parent=19 // pred_fallthru
          _
        // Predicated region
        $region69: #{transformer_decoder.1} parent=19 // pred_check
          %p563 = pneg %p368
        $region70: #{transformer_decoder.1} parent=19 // pred_check_branch
          %565 = sbr.rel (%p563) target = $region72
        $region71: #{transformer_decoder.1} parent=19 // pred_region
          %p566 = scmp.lt.s32.totalorder %s32, 1
          %s567 = scalar_select %p566, %s32, 1
          %s568 = smul.addr %s567, 8
          %s569 = smul.addr %s568, 4
          %s570 = scalar_lea.vmem %s12, %s569
        $region72: #{transformer_decoder.1} parent=19 // pred_fallthru
          _
        // Predicated region
        $region73: #{transformer_decoder.1} parent=19 // pred_check
          %p571 = pneg %p394
        $region74: #{transformer_decoder.1} parent=19 // pred_check_branch
          %573 = sbr.rel (%p571) target = $region76
        $region75: #{transformer_decoder.1} parent=19 // pred_region
          %s574 = sand.u32 %s384, 1
          %s575 = scalar_lea.sflag [#allocation4], %s574
          %s576 = sand.u32 %s384, 1
          %s577 = smul.addr %s576, 16
          %s578 = scalar_lea.vmem [#allocation3], %s577
          %s580 = ssub.s32 256, 256
          %581 = vsyncadd %s575, %s580
          %s582 = smul.addr %s32, 2
          %s583 = smul.addr %s582, 128
          %s584 = scalar_lea.hbm %s13, %s583
          %s585 = sshll.u32 %s578, 4
          %s586 = int_to_ptr.vmem [resolvable:$true] %s585
          %591 = dma.hbm_to_vmem [thread:$0]  %s584, 256, %s586, %s575, 128, 128, 8
        $region76: #{transformer_decoder.1} parent=19 // pred_fallthru
          _
      $region20: #{transformer_decoder.1} parent=5 // pred_fallthru
        _
      %p592 = scmp.le.s32.totalorder 1, %s24
      %p593 = scmp.lt.s32.totalorder %s24, 5
      %p594 = pnand %p592, %p593
      %p595 = pneg %p594
      // Predicated region
      $region77: #{transformer_decoder.1} parent=5 // pred_check
        _
      $region78: #{transformer_decoder.1} parent=5 // pred_check_branch
        %597 = sbr.rel (%p594) target = $region80
      $region79: #{transformer_decoder.1} parent=5 // pred_region
        %s598 = ssub.s32 %s24, 1
        %s599 = sand.u32 %s387, 1
        %s600 = scalar_lea.sflag [#allocation4], %s599
        %s601 = sand.u32 %s387, 1
        %s602 = smul.addr %s601, 16
        %s603 = scalar_lea.vmem [#allocation3], %s602
        // Predicated region
        $region81: #{transformer_decoder.1} parent=79 // pred_check
          %p604 = pneg %p400
        $region82: #{transformer_decoder.1} parent=79 // pred_check_branch
          %606 = sbr.rel (%p604) target = $region84
        $region83: #{transformer_decoder.1} parent=79 // pred_region
          %607 = dma.done %s600, 256
        $region84: #{transformer_decoder.1} parent=79 // pred_fallthru
          _
        %p608 = scmp.lt.s32.totalorder %s33, 1
        %s609 = scalar_select %p608, %s33, 1
        %s610 = smul.addr %s609, 8
        %s611 = scalar_lea.vmem %s0, %s610
        %p612 = pneg %p62
        %p613 = pneg %p59
        %p614 = scmp.lt.s32.totalorder %s33, 1
        %s615 = scalar_select %p614, %s33, 1
        %s616 = smul.addr %s615, 8
        %s617 = scalar_lea.vmem %s1, %s616
        %p618 = pneg %p88
        %p619 = pneg %p85
        %p620 = scmp.lt.s32.totalorder %s33, 1
        %s621 = scalar_select %p620, %s33, 1
        %s622 = smul.addr %s621, 2
        %s623 = smul.addr %s622, 8
        %s624 = scalar_lea.vmem %s2, %s623
        %p625 = pneg %p114
        %p626 = pneg %p111
        %p627 = scmp.lt.s32.totalorder %s33, 1
        %s628 = scalar_select %p627, %s33, 1
        %s629 = smul.addr %s628, 2
        %s630 = smul.addr %s629, 8
        %s631 = scalar_lea.vmem %s3, %s630
        %p632 = pneg %p140
        %p633 = pneg %p137
        %p634 = scmp.lt.s32.totalorder %s34, 1
        %s635 = scalar_select %p634, %s34, 1
        %s636 = smul.addr %s635, 4
        %s637 = smul.addr %s636, 4
        %s638 = scalar_lea.vmem %s4, %s637
        %p639 = pneg %p166
        %p640 = pneg %p163
        %p641 = scmp.lt.s32.totalorder %s34, 1
        %s642 = scalar_select %p641, %s34, 1
        %s643 = smul.addr %s642, 4
        %s644 = smul.addr %s643, 4
        %s645 = scalar_lea.vmem %s5, %s644
        %p646 = pneg %p192
        %p647 = pneg %p189
        %p648 = scmp.lt.s32.totalorder %s34, 1
        %s649 = scalar_select %p648, %s34, 1
        %s650 = smul.addr %s649, 4
        %s651 = smul.addr %s650, 4
        %s652 = scalar_lea.vmem %s6, %s651
        %p653 = pneg %p218
        %p654 = pneg %p215
        %p655 = scmp.lt.s32.totalorder %s34, 1
        %s656 = scalar_select %p655, %s34, 1
        %s657 = smul.addr %s656, 4
        %s658 = smul.addr %s657, 4
        %s659 = scalar_lea.vmem %s7, %s658
        %p660 = pneg %p244
        %p661 = pneg %p241
        %p662 = scmp.lt.s32.totalorder %s34, 1
        %s663 = scalar_select %p662, %s34, 1
        %s664 = smul.addr %s663, 4
        %s665 = smul.addr %s664, 4
        %s666 = scalar_lea.vmem %s8, %s665
        %p667 = pneg %p270
        %p668 = pneg %p267
        %p669 = scmp.lt.s32.totalorder %s34, 1
        %s670 = scalar_select %p669, %s34, 1
        %s671 = smul.addr %s670, 4
        %s672 = smul.addr %s671, 4
        %s673 = scalar_lea.vmem %s9, %s672
        %p674 = pneg %p296
        %p675 = pneg %p293
        %p676 = scmp.lt.s32.totalorder %s34, 1
        %s677 = scalar_select %p676, %s34, 1
        %s678 = smul.addr %s677, 4
        %s679 = smul.addr %s678, 4
        %s680 = scalar_lea.vmem %s10, %s679
        %p681 = pneg %p322
        %p682 = pneg %p319
        %p683 = scmp.lt.s32.totalorder %s34, 1
        %s684 = scalar_select %p683, %s34, 1
        %s685 = smul.addr %s684, 5
        %s686 = smul.addr %s685, 4
        %s687 = scalar_lea.vmem %s11, %s686
        %p688 = pneg %p348
        %p689 = pneg %p345
        %p690 = scmp.lt.s32.totalorder %s34, 1
        %s691 = scalar_select %p690, %s34, 1
        %s692 = smul.addr %s691, 8
        %s693 = smul.addr %s692, 4
        %s694 = scalar_lea.vmem %s12, %s693
        %p695 = pneg %p374
        %p696 = pneg %p371
        %s697 = sand.u32 %s387, 1
        %s698 = scalar_lea.sflag [#allocation4], %s697
        %s699 = sand.u32 %s387, 1
        %s700 = smul.addr %s699, 16
        %s701 = scalar_lea.vmem [#allocation3], %s700
        %p702 = pneg %p400
        %p703 = pneg %p397
        %p704 = pneg %p421
        %p705 = pneg %p418
        %p706 = pneg %p447
        %p707 = pneg %p444
        %p708 = scmp.lt.s32.totalorder %s33, 1
        %s709 = scalar_select %p708, %s33, 1
        %s710 = smul.addr %s709, 8
        %s711 = scalar_lea.vmem %s15, %s710
        %p712 = scmp.lt.s32.totalorder %s33, 1
        %s713 = scalar_select %p712, %s33, 1
        %s714 = smul.addr %s713, 8
        %s715 = scalar_lea.vmem %s0, %s714
        %p716 = scmp.lt.s32.totalorder %s33, 1
        %s717 = scalar_select %p716, %s33, 1
        %s718 = smul.addr %s717, 8
        %s719 = scalar_lea.vmem %s1, %s718
        %p720 = scmp.lt.s32.totalorder %s33, 1
        %s721 = scalar_select %p720, %s33, 1
        %s722 = smul.addr %s721, 2
        %s723 = smul.addr %s722, 8
        %s724 = scalar_lea.vmem %s2, %s723
        %p725 = scmp.lt.s32.totalorder %s33, 1
        %s726 = scalar_select %p725, %s33, 1
        %s727 = smul.addr %s726, 2
        %s728 = smul.addr %s727, 8
        %s729 = scalar_lea.vmem %s3, %s728
        %p730 = scmp.lt.s32.totalorder %s34, 1
        %s731 = scalar_select %p730, %s34, 1
        %s732 = smul.addr %s731, 4
        %s733 = smul.addr %s732, 4
        %s734 = scalar_lea.vmem %s4, %s733
        %p735 = scmp.lt.s32.totalorder %s34, 1
        %s736 = scalar_select %p735, %s34, 1
        %s737 = smul.addr %s736, 4
        %s738 = smul.addr %s737, 4
        %s739 = scalar_lea.vmem %s5, %s738
        %p740 = scmp.lt.s32.totalorder %s34, 1
        %s741 = scalar_select %p740, %s34, 1
        %s742 = smul.addr %s741, 4
        %s743 = smul.addr %s742, 4
        %s744 = scalar_lea.vmem %s6, %s743
        %p745 = scmp.lt.s32.totalorder %s34, 1
        %s746 = scalar_select %p745, %s34, 1
        %s747 = smul.addr %s746, 4
        %s748 = smul.addr %s747, 4
        %s749 = scalar_lea.vmem %s7, %s748
        %p750 = scmp.lt.s32.totalorder %s34, 1
        %s751 = scalar_select %p750, %s34, 1
        %s752 = smul.addr %s751, 4
        %s753 = smul.addr %s752, 4
        %s754 = scalar_lea.vmem %s8, %s753
        %p755 = scmp.lt.s32.totalorder %s34, 1
        %s756 = scalar_select %p755, %s34, 1
        %s757 = smul.addr %s756, 4
        %s758 = smul.addr %s757, 4
        %s759 = scalar_lea.vmem %s9, %s758
        %p760 = scmp.lt.s32.totalorder %s34, 1
        %s761 = scalar_select %p760, %s34, 1
        %s762 = smul.addr %s761, 4
        %s763 = smul.addr %s762, 4
        %s764 = scalar_lea.vmem %s10, %s763
        %p765 = scmp.lt.s32.totalorder %s34, 1
        %s766 = scalar_select %p765, %s34, 1
        %s767 = smul.addr %s766, 5
        %s768 = smul.addr %s767, 4
        %s769 = scalar_lea.vmem %s11, %s768
        %p770 = scmp.lt.s32.totalorder %s34, 1
        %s771 = scalar_select %p770, %s34, 1
        %s772 = smul.addr %s771, 8
        %s773 = smul.addr %s772, 4
        %s774 = scalar_lea.vmem %s12, %s773
        %p775 = scmp.lt.s32.totalorder %s33, 1
        %s776 = scalar_select %p775, %s33, 1
        %s777 = smul.addr %s776, 8
        %s778 = scalar_lea.vmem %s15, %s777
        %p780 = scmp.eq.s32.totalorder %s34, 0
        // Predicated region
        $region85: #{transformer_decoder.1} parent=79 // pred_check
          %p781 = pneg %p780
        $region86: #{transformer_decoder.1} parent=79 // pred_check_branch
          %783 = sbr.rel (%p781) target = $region88
        $region87: #{transformer_decoder.1} parent=79 // pred_region
          %v784 = vld [vmem:[%s715] sm:$0xff]
          %vm785 = vcmask 261120
          %786 = vst.msk [vmem:[#allocation2] sm:$0xff] %vm785, %v784
        $region88: #{transformer_decoder.1} parent=79 // pred_fallthru
          _
        %v787 = vld [vmem:[#allocation2] sm:$0xff]
        %v788 = vld [vmem:[%s719] sm:$0xff]
        %v789 = vld [vmem:[%s724] sm:$0xff]
        %v790 = vld [vmem:[%s724 + $0x8] sm:$0xff]
        %v791 = vld [vmem:[%s729] sm:$0xff]
        %v792 = vld [vmem:[%s729 + $0x8] sm:$0xff]
        %v793 = vld [vmem:[%s603] sm:$0xff]
        %v794 = vld [vmem:[%s603 + $0x8] sm:$0xff]
        %v795 = vadd.f32 %v787, %v788
        %v796 = vld [vmem:[%s734] sm:$0xf]
        %v797 = vld [vmem:[%s734 + $0x4] sm:$0xf]
        %v798 = vld [vmem:[%s734 + $0x8] sm:$0xf]
        %v799 = vld [vmem:[%s734 + $0xc] sm:$0xf]
        %v800 = vpack.c.bf16 %v795, %v795
        %v805 = vunpack.c.l.b16 %v796
        %v806 = vunpack.c.l.b16 %v797
        %v807 = vunpack.c.l.b16 %v798
        %v808 = vunpack.c.l.b16 %v799
        %v809 = vpack.c.b16 %v806, %v805
        %v810 = vpack.c.b16 %v808, %v807
        %vm813 = vcmask 261120
        %v815 = vsel %vm813, %v800, 0
        %817 = vmatprep.subr.bf16.mxu0 0
        %818 = vmatpush1.bf16.msra.mxu0 %v809
        %819 = vmatprep.subr.bf16.mxu0 0
        %820 = vmatpush1.bf16.msra.mxu0 %v810
        %821 = vmatprep.subr.bf16.mxu0 0
        %822 = vmatpush1.bf16.msra.mxu0 0
        %823 = vmatprep.subr.bf16.mxu0 0
        %824 = vmatpush1.bf16.msra.mxu0 0
        %825 = vmatprep.subr.bf16.mxu0 0
        %826 = vmatpush1.bf16.msra.mxu0 0
        %827 = vmatprep.subr.bf16.mxu0 0
        %828 = vmatpush1.bf16.msra.mxu0 0
        %829 = vmatprep.subr.bf16.mxu0 0
        %830 = vmatpush1.bf16.msra.mxu0 0
        %831 = vmatprep.subr.bf16.mxu0 0
        %832 = vmatpush1.bf16.msra.mxu0 0
        %833 = vmatprep.subr.bf16.mxu0 0
        %834 = vmatpush1.bf16.msra.mxu0 0
        %835 = vmatprep.subr.bf16.mxu0 0
        %836 = vmatpush1.bf16.msra.mxu0 0
        %837 = vmatprep.subr.bf16.mxu0 0
        %838 = vmatpush1.bf16.msra.mxu0 0
        %839 = vmatprep.subr.bf16.mxu0 0
        %840 = vmatpush1.bf16.msra.mxu0 0
        %841 = vmatprep.subr.bf16.mxu0 0
        %842 = vmatpush1.bf16.msra.mxu0 0
        %843 = vmatprep.subr.bf16.mxu0 0
        %844 = vmatpush1.bf16.msra.mxu0 0
        %845 = vmatprep.subr.bf16.mxu0 0
        %846 = vmatpush1.bf16.msra.mxu0 0
        %847 = vmatprep.subr.bf16.mxu0 0
        %848 = vmatpush1.bf16.msra.mxu0 0
        %849 = vmatprep.mubr.bf16.mxu0 0
        %850 = vmatmul.mubr.bf16.gmra.mrb[0].mxu0 %v815
        %v851 = vpop.f32.mrb[0].mxu0
        %v852 = vadd.f32 0.0, %v851
        %v853 = vpop.f32.mrb[0].mxu0
        %v854 = vpop.f32.mrb[0].mxu0
        %v855 = vpop.f32.mrb[0].mxu0
        %856 = vdwg.mxu0
        %v857 = vlaneseq
        %v858 = vshrl.u32 %v857, 7
        %v859 = vsub.s32 0, %v858
        %v860 = vrot.slane %v793, %v859
        %v861 = vadd.f32 %v852, %v860
        %v862 = vlaneseq
        %v863 = vshrl.u32 %v862, 7
        %v864 = vsub.s32 1, %v863
        %v865 = vrot.slane %v793, %v864
        %867 = vrot.lane.b32.xlu0 %v865, 32
        %v868 = vpop.permute.xlu0 %867
        %v870 = vadd.f32 %v852, %v868
        %v871 = vld [vmem:[%s739] sm:$0xf]
        %v872 = vld [vmem:[%s739 + $0x4] sm:$0xf]
        %v873 = vld [vmem:[%s739 + $0x8] sm:$0xf]
        %v874 = vld [vmem:[%s739 + $0xc] sm:$0xf]
        %v875 = vpack.c.bf16 %v787, %v787
        %v876 = vlaneseq
        %v877 = vshrl.u32 %v876, 7
        %v878 = vsub.s32 2, %v877
        %v879 = vrot.slane %v793, %v878
        %v884 = vunpack.c.l.b16 %v871
        %v885 = vunpack.c.l.b16 %v872
        %v886 = vunpack.c.l.b16 %v873
        %v887 = vunpack.c.l.b16 %v874
        %v888 = vpack.c.b16 %v885, %v884
        %v889 = vpack.c.b16 %v887, %v886
        %v893 = vsel %vm813, %v875, 0
        %895 = vmatprep.subr.bf16.mxu0 0
        %896 = vmatpush1.bf16.msra.mxu0 %v888
        %897 = vmatprep.subr.bf16.mxu0 0
        %898 = vmatpush1.bf16.msra.mxu0 %v889
        %899 = vmatprep.subr.bf16.mxu0 0
        %900 = vmatpush1.bf16.msra.mxu0 0
        %901 = vmatprep.subr.bf16.mxu0 0
        %902 = vmatpush1.bf16.msra.mxu0 0
        %903 = vmatprep.subr.bf16.mxu0 0
        %904 = vmatpush1.bf16.msra.mxu0 0
        %905 = vmatprep.subr.bf16.mxu0 0
        %906 = vmatpush1.bf16.msra.mxu0 0
        %907 = vmatprep.subr.bf16.mxu0 0
        %908 = vmatpush1.bf16.msra.mxu0 0
        %909 = vmatprep.subr.bf16.mxu0 0
        %910 = vmatpush1.bf16.msra.mxu0 0
        %911 = vmatprep.subr.bf16.mxu0 0
        %912 = vmatpush1.bf16.msra.mxu0 0
        %913 = vmatprep.subr.bf16.mxu0 0
        %914 = vmatpush1.bf16.msra.mxu0 0
        %915 = vmatprep.subr.bf16.mxu0 0
        %916 = vmatpush1.bf16.msra.mxu0 0
        %917 = vmatprep.subr.bf16.mxu0 0
        %918 = vmatpush1.bf16.msra.mxu0 0
        %919 = vmatprep.subr.bf16.mxu0 0
        %920 = vmatpush1.bf16.msra.mxu0 0
        %921 = vmatprep.subr.bf16.mxu0 0
        %922 = vmatpush1.bf16.msra.mxu0 0
        %923 = vmatprep.subr.bf16.mxu0 0
        %924 = vmatpush1.bf16.msra.mxu0 0
        %925 = vmatprep.subr.bf16.mxu0 0
        %926 = vmatpush1.bf16.msra.mxu0 0
        %927 = vmatprep.mubr.bf16.mxu0 0
        %928 = vmatmul.mubr.bf16.gmra.mrb[0].mxu0 %v893
        %v929 = vpop.f32.mrb[0].mxu0
        %v930 = vadd.f32 %v879, %v929
        %v931 = vpop.f32.mrb[0].mxu0
        %v932 = vpop.f32.mrb[0].mxu0
        %v933 = vpop.f32.mrb[0].mxu0
        %934 = vdwg.mxu0
        %936 = vrot.lane.b32.xlu0 %v870, 96
        %v937 = vpop.permute.xlu0 %936
        %vm938 = vcmask 64512
        %v940 = vsel %vm938, %v861, 0
        %v942 = vsel %vm938, %v937, 0
        %944 = vmatprep.subr.mxu0 0.0
        %945 = vmatpush1.xpose.msra.mxu0 %v942
        %946 = vmatprep.subr.mxu0 0.0
        %947 = vmatpush1.xpose.msra.mxu0 0.0
        %948 = vmatprep.subr.mxu0 0.0
        %949 = vmatpush1.xpose.msra.mxu0 0.0
        %950 = vmatprep.subr.mxu0 0.0
        %951 = vmatpush1.xpose.msra.mxu0 0.0
        %952 = vmatprep.subr.mxu0 0.0
        %953 = vmatpush1.xpose.msra.mxu0 0.0
        %954 = vmatprep.subr.mxu0 0.0
        %955 = vmatpush1.xpose.msra.mxu0 0.0
        %956 = vmatprep.subr.mxu0 0.0
        %957 = vmatpush1.xpose.msra.mxu0 0.0
        %958 = vmatprep.subr.mxu0 0.0
        %959 = vmatpush1.xpose.msra.mxu0 0.0
        %960 = vmatprep.subr.mxu0 0.0
        %961 = vmatpush1.xpose.msra.mxu0 0.0
        %962 = vmatprep.subr.mxu0 0.0
        %963 = vmatpush1.xpose.msra.mxu0 0.0
        %964 = vmatprep.subr.mxu0 0.0
        %965 = vmatpush1.xpose.msra.mxu0 0.0
        %966 = vmatprep.subr.mxu0 0.0
        %967 = vmatpush1.xpose.msra.mxu0 0.0
        %968 = vmatprep.subr.mxu0 0.0
        %969 = vmatpush1.xpose.msra.mxu0 0.0
        %970 = vmatprep.subr.mxu0 0.0
        %971 = vmatpush1.xpose.msra.mxu0 0.0
        %972 = vmatprep.subr.mxu0 0.0
        %973 = vmatpush1.xpose.msra.mxu0 0.0
        %974 = vmatprep.subr.mxu0 0.0
        %975 = vmatpush1.xpose.msra.mxu0 0.0
        %976 = vmatprep.subr.mxu0 0.0
        %977 = vmatpush1.xpose.msra.mxu0 0.0
        %978 = vmatprep.subr.mxu0 0.0
        %979 = vmatpush1.xpose.msra.mxu0 0.0
        %980 = vmatprep.subr.mxu0 0.0
        %981 = vmatpush1.xpose.msra.mxu0 0.0
        %982 = vmatprep.subr.mxu0 0.0
        %983 = vmatpush1.xpose.msra.mxu0 0.0
        %984 = vmatprep.subr.mxu0 0.0
        %985 = vmatpush1.xpose.msra.mxu0 0.0
        %986 = vmatprep.subr.mxu0 0.0
        %987 = vmatpush1.xpose.msra.mxu0 0.0
        %988 = vmatprep.subr.mxu0 0.0
        %989 = vmatpush1.xpose.msra.mxu0 0.0
        %990 = vmatprep.subr.mxu0 0.0
        %991 = vmatpush1.xpose.msra.mxu0 0.0
        %992 = vmatprep.subr.mxu0 0.0
        %993 = vmatpush1.xpose.msra.mxu0 0.0
        %994 = vmatprep.subr.mxu0 0.0
        %995 = vmatpush1.xpose.msra.mxu0 0.0
        %996 = vmatprep.subr.mxu0 0.0
        %997 = vmatpush1.xpose.msra.mxu0 0.0
        %998 = vmatprep.subr.mxu0 0.0
        %999 = vmatpush1.xpose.msra.mxu0 0.0
        %1000 = vmatprep.subr.mxu0 0.0
        %1001 = vmatpush1.xpose.msra.mxu0 0.0
        %1002 = vmatprep.subr.mxu0 0.0
        %1003 = vmatpush1.xpose.msra.mxu0 0.0
        %1004 = vmatprep.subr.mxu0 0.0
        %1005 = vmatpush1.xpose.msra.mxu0 0.0
        %1006 = vmatprep.subr.mxu0 0.0
        %1007 = vmatpush1.xpose.msra.mxu0 0.0
        %1008 = vmatprep.mubr.f32.mxu0 0.0
        %1009 = vmatmul.mubr.f32.gmra.mrb[0].mxu0 %v940
        %v1010 = vpop.f32.mrb[0].mxu0
        %v1011 = vadd.f32 0.0, %v1010
        %v1012 = vpop.f32.mrb[0].mxu0
        %1013 = vdwg.mxu0
        %v1014 = vsel %vm938, %v1011, -inf
        %1015 = vmax.xlane.f32.xlu0 %v1014
        %v1016 = vpop.xlane.xlu0 %1015
        %v1017 = vsub.f32 %v1011, %v1016
        %v1018 = vmul.f32 %v1017, 1.442695
        %v1019 = vpow.pop %v1018
        %v1020 = vsel %vm938, %v1019, 0.0
        %1021 = vadd.xlane.f32.xlu0 %v1020
        %v1022 = vpop.xlane.xlu0 %1021
        %v1023 = vrcp.pop %v1022
        %v1024 = vmul.f32 %v1019, %v1023
        %v1026 = vsel %vm938, %v1024, 0
        %1028 = vmatprep.subr.mxu0 0.0
        %1029 = vmatpush1.msra.mxu0 %v930
        %1030 = vmatprep.subr.mxu0 0.0
        %1031 = vmatpush1.msra.mxu0 0.0
        %1032 = vmatprep.subr.mxu0 0.0
        %1033 = vmatpush1.msra.mxu0 0.0
        %1034 = vmatprep.subr.mxu0 0.0
        %1035 = vmatpush1.msra.mxu0 0.0
        %1036 = vmatprep.subr.mxu0 0.0
        %1037 = vmatpush1.msra.mxu0 0.0
        %1038 = vmatprep.subr.mxu0 0.0
        %1039 = vmatpush1.msra.mxu0 0.0
        %1040 = vmatprep.subr.mxu0 0.0
        %1041 = vmatpush1.msra.mxu0 0.0
        %1042 = vmatprep.subr.mxu0 0.0
        %1043 = vmatpush1.msra.mxu0 0.0
        %1044 = vmatprep.subr.mxu0 0.0
        %1045 = vmatpush1.msra.mxu0 0.0
        %1046 = vmatprep.subr.mxu0 0.0
        %1047 = vmatpush1.msra.mxu0 0.0
        %1048 = vmatprep.subr.mxu0 0.0
        %1049 = vmatpush1.msra.mxu0 0.0
        %1050 = vmatprep.subr.mxu0 0.0
        %1051 = vmatpush1.msra.mxu0 0.0
        %1052 = vmatprep.subr.mxu0 0.0
        %1053 = vmatpush1.msra.mxu0 0.0
        %1054 = vmatprep.subr.mxu0 0.0
        %1055 = vmatpush1.msra.mxu0 0.0
        %1056 = vmatprep.subr.mxu0 0.0
        %1057 = vmatpush1.msra.mxu0 0.0
        %1058 = vmatprep.subr.mxu0 0.0
        %1059 = vmatpush1.msra.mxu0 0.0
        %1060 = vmatprep.subr.mxu0 0.0
        %1061 = vmatpush1.msra.mxu0 0.0
        %1062 = vmatprep.subr.mxu0 0.0
        %1063 = vmatpush1.msra.mxu0 0.0
        %1064 = vmatprep.subr.mxu0 0.0
        %1065 = vmatpush1.msra.mxu0 0.0
        %1066 = vmatprep.subr.mxu0 0.0
        %1067 = vmatpush1.msra.mxu0 0.0
        %1068 = vmatprep.subr.mxu0 0.0
        %1069 = vmatpush1.msra.mxu0 0.0
        %1070 = vmatprep.subr.mxu0 0.0
        %1071 = vmatpush1.msra.mxu0 0.0
        %1072 = vmatprep.subr.mxu0 0.0
        %1073 = vmatpush1.msra.mxu0 0.0
        %1074 = vmatprep.subr.mxu0 0.0
        %1075 = vmatpush1.msra.mxu0 0.0
        %1076 = vmatprep.subr.mxu0 0.0
        %1077 = vmatpush1.msra.mxu0 0.0
        %1078 = vmatprep.subr.mxu0 0.0
        %1079 = vmatpush1.msra.mxu0 0.0
        %1080 = vmatprep.subr.mxu0 0.0
        %1081 = vmatpush1.msra.mxu0 0.0
        %1082 = vmatprep.subr.mxu0 0.0
        %1083 = vmatpush1.msra.mxu0 0.0
        %1084 = vmatprep.subr.mxu0 0.0
        %1085 = vmatpush1.msra.mxu0 0.0
        %1086 = vmatprep.subr.mxu0 0.0
        %1087 = vmatpush1.msra.mxu0 0.0
        %1088 = vmatprep.subr.mxu0 0.0
        %1089 = vmatpush1.msra.mxu0 0.0
        %1090 = vmatprep.subr.mxu0 0.0
        %1091 = vmatpush1.msra.mxu0 0.0
        %1092 = vmatprep.mubr.f32.mxu0 0.0
        %1093 = vmatmul.mubr.f32.gmra.mrb[0].mxu0 %v1026
        %v1094 = vpop.f32.mrb[0].mxu0
        %v1095 = vadd.f32 0.0, %v1094
        %v1096 = vpop.f32.mrb[0].mxu0
        %1097 = vdwg.mxu0
        %1098 = vrot.lane.b32.xlu0 %v861, 120
        %v1099 = vpop.permute.xlu0 %1098
        %1100 = vrot.lane.b32.xlu0 %v870, 88
        %v1101 = vpop.permute.xlu0 %1100
        %v1102 = vsel %vm938, %v1099, 0
        %v1104 = vsel %vm938, %v1101, 0
        %1106 = vmatprep.subr.mxu0 0.0
        %1107 = vmatpush1.xpose.msra.mxu0 %v1104
        %1108 = vmatprep.subr.mxu0 0.0
        %1109 = vmatpush1.xpose.msra.mxu0 0.0
        %1110 = vmatprep.subr.mxu0 0.0
        %1111 = vmatpush1.xpose.msra.mxu0 0.0
        %1112 = vmatprep.subr.mxu0 0.0
        %1113 = vmatpush1.xpose.msra.mxu0 0.0
        %1114 = vmatprep.subr.mxu0 0.0
        %1115 = vmatpush1.xpose.msra.mxu0 0.0
        %1116 = vmatprep.subr.mxu0 0.0
        %1117 = vmatpush1.xpose.msra.mxu0 0.0
        %1118 = vmatprep.subr.mxu0 0.0
        %1119 = vmatpush1.xpose.msra.mxu0 0.0
        %1120 = vmatprep.subr.mxu0 0.0
        %1121 = vmatpush1.xpose.msra.mxu0 0.0
        %1122 = vmatprep.subr.mxu0 0.0
        %1123 = vmatpush1.xpose.msra.mxu0 0.0
        %1124 = vmatprep.subr.mxu0 0.0
        %1125 = vmatpush1.xpose.msra.mxu0 0.0
        %1126 = vmatprep.subr.mxu0 0.0
        %1127 = vmatpush1.xpose.msra.mxu0 0.0
        %1128 = vmatprep.subr.mxu0 0.0
        %1129 = vmatpush1.xpose.msra.mxu0 0.0
        %1130 = vmatprep.subr.mxu0 0.0
        %1131 = vmatpush1.xpose.msra.mxu0 0.0
        %1132 = vmatprep.subr.mxu0 0.0
        %1133 = vmatpush1.xpose.msra.mxu0 0.0
        %1134 = vmatprep.subr.mxu0 0.0
        %1135 = vmatpush1.xpose.msra.mxu0 0.0
        %1136 = vmatprep.subr.mxu0 0.0
        %1137 = vmatpush1.xpose.msra.mxu0 0.0
        %1138 = vmatprep.subr.mxu0 0.0
        %1139 = vmatpush1.xpose.msra.mxu0 0.0
        %1140 = vmatprep.subr.mxu0 0.0
        %1141 = vmatpush1.xpose.msra.mxu0 0.0
        %1142 = vmatprep.subr.mxu0 0.0
        %1143 = vmatpush1.xpose.msra.mxu0 0.0
        %1144 = vmatprep.subr.mxu0 0.0
        %1145 = vmatpush1.xpose.msra.mxu0 0.0
        %1146 = vmatprep.subr.mxu0 0.0
        %1147 = vmatpush1.xpose.msra.mxu0 0.0
        %1148 = vmatprep.subr.mxu0 0.0
        %1149 = vmatpush1.xpose.msra.mxu0 0.0
        %1150 = vmatprep.subr.mxu0 0.0
        %1151 = vmatpush1.xpose.msra.mxu0 0.0
        %1152 = vmatprep.subr.mxu0 0.0
        %1153 = vmatpush1.xpose.msra.mxu0 0.0
        %1154 = vmatprep.subr.mxu0 0.0
        %1155 = vmatpush1.xpose.msra.mxu0 0.0
        %1156 = vmatprep.subr.mxu0 0.0
        %1157 = vmatpush1.xpose.msra.mxu0 0.0
        %1158 = vmatprep.subr.mxu0 0.0
        %1159 = vmatpush1.xpose.msra.mxu0 0.0
        %1160 = vmatprep.subr.mxu0 0.0
        %1161 = vmatpush1.xpose.msra.mxu0 0.0
        %1162 = vmatprep.subr.mxu0 0.0
        %1163 = vmatpush1.xpose.msra.mxu0 0.0
        %1164 = vmatprep.subr.mxu0 0.0
        %1165 = vmatpush1.xpose.msra.mxu0 0.0
        %1166 = vmatprep.subr.mxu0 0.0
        %1167 = vmatpush1.xpose.msra.mxu0 0.0
        %1168 = vmatprep.subr.mxu0 0.0
        %1169 = vmatpush1.xpose.msra.mxu0 0.0
        %1170 = vmatprep.mubr.f32.mxu0 0.0
        %1171 = vmatmul.mubr.f32.gmra.mrb[0].mxu0 %v1102
        %v1172 = vpop.f32.mrb[0].mxu0
        %v1173 = vadd.f32 0.0, %v1172
        %v1174 = vpop.f32.mrb[0].mxu0
        %1175 = vdwg.mxu0
        %v1176 = vsel %vm938, %v1173, -inf
        %1177 = vmax.xlane.f32.xlu0 %v1176
        %v1178 = vpop.xlane.xlu0 %1177
        %v1179 = vsub.f32 %v1173, %v1178
        %v1180 = vmul.f32 %v1179, 1.442695
        %v1181 = vpow.pop %v1180
        %v1182 = vsel %vm938, %v1181, 0.0
        %1183 = vadd.xlane.f32.xlu0 %v1182
        %v1184 = vpop.xlane.xlu0 %1183
        %v1185 = vrcp.pop %v1184
        %v1186 = vmul.f32 %v1181, %v1185
        %1188 = vrot.lane.b32.xlu0 %v930, 120
        %v1189 = vpop.permute.xlu0 %1188
        %v1192 = vsel %vm938, %v1186, 0
        %1194 = vmatprep.subr.mxu0 0.0
        %1195 = vmatpush1.msra.mxu0 %v1189
        %1196 = vmatprep.subr.mxu0 0.0
        %1197 = vmatpush1.msra.mxu0 0.0
        %1198 = vmatprep.subr.mxu0 0.0
        %1199 = vmatpush1.msra.mxu0 0.0
        %1200 = vmatprep.subr.mxu0 0.0
        %1201 = vmatpush1.msra.mxu0 0.0
        %1202 = vmatprep.subr.mxu0 0.0
        %1203 = vmatpush1.msra.mxu0 0.0
        %1204 = vmatprep.subr.mxu0 0.0
        %1205 = vmatpush1.msra.mxu0 0.0
        %1206 = vmatprep.subr.mxu0 0.0
        %1207 = vmatpush1.msra.mxu0 0.0
        %1208 = vmatprep.subr.mxu0 0.0
        %1209 = vmatpush1.msra.mxu0 0.0
        %1210 = vmatprep.subr.mxu0 0.0
        %1211 = vmatpush1.msra.mxu0 0.0
        %1212 = vmatprep.subr.mxu0 0.0
        %1213 = vmatpush1.msra.mxu0 0.0
        %1214 = vmatprep.subr.mxu0 0.0
        %1215 = vmatpush1.msra.mxu0 0.0
        %1216 = vmatprep.subr.mxu0 0.0
        %1217 = vmatpush1.msra.mxu0 0.0
        %1218 = vmatprep.subr.mxu0 0.0
        %1219 = vmatpush1.msra.mxu0 0.0
        %1220 = vmatprep.subr.mxu0 0.0
        %1221 = vmatpush1.msra.mxu0 0.0
        %1222 = vmatprep.subr.mxu0 0.0
        %1223 = vmatpush1.msra.mxu0 0.0
        %1224 = vmatprep.subr.mxu0 0.0
        %1225 = vmatpush1.msra.mxu0 0.0
        %1226 = vmatprep.subr.mxu0 0.0
        %1227 = vmatpush1.msra.mxu0 0.0
        %1228 = vmatprep.subr.mxu0 0.0
        %1229 = vmatpush1.msra.mxu0 0.0
        %1230 = vmatprep.subr.mxu0 0.0
        %1231 = vmatpush1.msra.mxu0 0.0
        %1232 = vmatprep.subr.mxu0 0.0
        %1233 = vmatpush1.msra.mxu0 0.0
        %1234 = vmatprep.subr.mxu0 0.0
        %1235 = vmatpush1.msra.mxu0 0.0
        %1236 = vmatprep.subr.mxu0 0.0
        %1237 = vmatpush1.msra.mxu0 0.0
        %1238 = vmatprep.subr.mxu0 0.0
        %1239 = vmatpush1.msra.mxu0 0.0
        %1240 = vmatprep.subr.mxu0 0.0
        %1241 = vmatpush1.msra.mxu0 0.0
        %1242 = vmatprep.subr.mxu0 0.0
        %1243 = vmatpush1.msra.mxu0 0.0
        %1244 = vmatprep.subr.mxu0 0.0
        %1245 = vmatpush1.msra.mxu0 0.0
        %1246 = vmatprep.subr.mxu0 0.0
        %1247 = vmatpush1.msra.mxu0 0.0
        %1248 = vmatprep.subr.mxu0 0.0
        %1249 = vmatpush1.msra.mxu0 0.0
        %1250 = vmatprep.subr.mxu0 0.0
        %1251 = vmatpush1.msra.mxu0 0.0
        %1252 = vmatprep.subr.mxu0 0.0
        %1253 = vmatpush1.msra.mxu0 0.0
        %1254 = vmatprep.subr.mxu0 0.0
        %1255 = vmatpush1.msra.mxu0 0.0
        %1256 = vmatprep.subr.mxu0 0.0
        %1257 = vmatpush1.msra.mxu0 0.0
        %1258 = vmatprep.mubr.f32.mxu0 0.0
        %1259 = vmatmul.mubr.f32.gmra.mrb[0].mxu0 %v1192
        %v1260 = vpop.f32.mrb[0].mxu0
        %v1261 = vadd.f32 0.0, %v1260
        %v1262 = vpop.f32.mrb[0].mxu0
        %1263 = vdwg.mxu0
        %1264 = vrot.lane.b32.xlu0 %v861, 112
        %v1265 = vpop.permute.xlu0 %1264
        %1266 = vrot.lane.b32.xlu0 %v870, 80
        %v1267 = vpop.permute.xlu0 %1266
        %v1268 = vsel %vm938, %v1265, 0
        %v1270 = vsel %vm938, %v1267, 0
        %1272 = vmatprep.subr.mxu0 0.0
        %1273 = vmatpush1.xpose.msra.mxu0 %v1270
        %1274 = vmatprep.subr.mxu0 0.0
        %1275 = vmatpush1.xpose.msra.mxu0 0.0
        %1276 = vmatprep.subr.mxu0 0.0
        %1277 = vmatpush1.xpose.msra.mxu0 0.0
        %1278 = vmatprep.subr.mxu0 0.0
        %1279 = vmatpush1.xpose.msra.mxu0 0.0
        %1280 = vmatprep.subr.mxu0 0.0
        %1281 = vmatpush1.xpose.msra.mxu0 0.0
        %1282 = vmatprep.subr.mxu0 0.0
        %1283 = vmatpush1.xpose.msra.mxu0 0.0
        %1284 = vmatprep.subr.mxu0 0.0
        %1285 = vmatpush1.xpose.msra.mxu0 0.0
        %1286 = vmatprep.subr.mxu0 0.0
        %1287 = vmatpush1.xpose.msra.mxu0 0.0
        %1288 = vmatprep.subr.mxu0 0.0
        %1289 = vmatpush1.xpose.msra.mxu0 0.0
        %1290 = vmatprep.subr.mxu0 0.0
        %1291 = vmatpush1.xpose.msra.mxu0 0.0
        %1292 = vmatprep.subr.mxu0 0.0
        %1293 = vmatpush1.xpose.msra.mxu0 0.0
        %1294 = vmatprep.subr.mxu0 0.0
        %1295 = vmatpush1.xpose.msra.mxu0 0.0
        %1296 = vmatprep.subr.mxu0 0.0
        %1297 = vmatpush1.xpose.msra.mxu0 0.0
        %1298 = vmatprep.subr.mxu0 0.0
        %1299 = vmatpush1.xpose.msra.mxu0 0.0
        %1300 = vmatprep.subr.mxu0 0.0
        %1301 = vmatpush1.xpose.msra.mxu0 0.0
        %1302 = vmatprep.subr.mxu0 0.0
        %1303 = vmatpush1.xpose.msra.mxu0 0.0
        %1304 = vmatprep.subr.mxu0 0.0
        %1305 = vmatpush1.xpose.msra.mxu0 0.0
        %1306 = vmatprep.subr.mxu0 0.0
        %1307 = vmatpush1.xpose.msra.mxu0 0.0
        %1308 = vmatprep.subr.mxu0 0.0
        %1309 = vmatpush1.xpose.msra.mxu0 0.0
        %1310 = vmatprep.subr.mxu0 0.0
        %1311 = vmatpush1.xpose.msra.mxu0 0.0
        %1312 = vmatprep.subr.mxu0 0.0
        %1313 = vmatpush1.xpose.msra.mxu0 0.0
        %1314 = vmatprep.subr.mxu0 0.0
        %1315 = vmatpush1.xpose.msra.mxu0 0.0
        %1316 = vmatprep.subr.mxu0 0.0
        %1317 = vmatpush1.xpose.msra.mxu0 0.0
        %1318 = vmatprep.subr.mxu0 0.0
        %1319 = vmatpush1.xpose.msra.mxu0 0.0
        %1320 = vmatprep.subr.mxu0 0.0
        %1321 = vmatpush1.xpose.msra.mxu0 0.0
        %1322 = vmatprep.subr.mxu0 0.0
        %1323 = vmatpush1.xpose.msra.mxu0 0.0
        %1324 = vmatprep.subr.mxu0 0.0
        %1325 = vmatpush1.xpose.msra.mxu0 0.0
        %1326 = vmatprep.subr.mxu0 0.0
        %1327 = vmatpush1.xpose.msra.mxu0 0.0
        %1328 = vmatprep.subr.mxu0 0.0
        %1329 = vmatpush1.xpose.msra.mxu0 0.0
        %1330 = vmatprep.subr.mxu0 0.0
        %1331 = vmatpush1.xpose.msra.mxu0 0.0
        %1332 = vmatprep.subr.mxu0 0.0
        %1333 = vmatpush1.xpose.msra.mxu0 0.0
        %1334 = vmatprep.subr.mxu0 0.0
        %1335 = vmatpush1.xpose.msra.mxu0 0.0
        %1336 = vmatprep.mubr.f32.mxu0 0.0
        %1337 = vmatmul.mubr.f32.gmra.mrb[0].mxu0 %v1268
        %v1338 = vpop.f32.mrb[0].mxu0
        %v1339 = vadd.f32 0.0, %v1338
        %v1340 = vpop.f32.mrb[0].mxu0
        %1341 = vdwg.mxu0
        %v1342 = vsel %vm938, %v1339, -inf
        %1343 = vmax.xlane.f32.xlu0 %v1342
        %v1344 = vpop.xlane.xlu0 %1343
        %v1345 = vsub.f32 %v1339, %v1344
        %v1346 = vmul.f32 %v1345, 1.442695
        %v1347 = vpow.pop %v1346
        %v1348 = vsel %vm938, %v1347, 0.0
        %1349 = vadd.xlane.f32.xlu0 %v1348
        %v1350 = vpop.xlane.xlu0 %1349
        %v1351 = vrcp.pop %v1350
        %v1352 = vmul.f32 %v1347, %v1351
        %1353 = vrot.lane.b32.xlu0 %v930, 112
        %v1354 = vpop.permute.xlu0 %1353
        %v1357 = vsel %vm938, %v1352, 0
        %1359 = vmatprep.subr.mxu0 0.0
        %1360 = vmatpush1.msra.mxu0 %v1354
        %1361 = vmatprep.subr.mxu0 0.0
        %1362 = vmatpush1.msra.mxu0 0.0
        %1363 = vmatprep.subr.mxu0 0.0
        %1364 = vmatpush1.msra.mxu0 0.0
        %1365 = vmatprep.subr.mxu0 0.0
        %1366 = vmatpush1.msra.mxu0 0.0
        %1367 = vmatprep.subr.mxu0 0.0
        %1368 = vmatpush1.msra.mxu0 0.0
        %1369 = vmatprep.subr.mxu0 0.0
        %1370 = vmatpush1.msra.mxu0 0.0
        %1371 = vmatprep.subr.mxu0 0.0
        %1372 = vmatpush1.msra.mxu0 0.0
        %1373 = vmatprep.subr.mxu0 0.0
        %1374 = vmatpush1.msra.mxu0 0.0
        %1375 = vmatprep.subr.mxu0 0.0
        %1376 = vmatpush1.msra.mxu0 0.0
        %1377 = vmatprep.subr.mxu0 0.0
        %1378 = vmatpush1.msra.mxu0 0.0
        %1379 = vmatprep.subr.mxu0 0.0
        %1380 = vmatpush1.msra.mxu0 0.0
        %1381 = vmatprep.subr.mxu0 0.0
        %1382 = vmatpush1.msra.mxu0 0.0
        %1383 = vmatprep.subr.mxu0 0.0
        %1384 = vmatpush1.msra.mxu0 0.0
        %1385 = vmatprep.subr.mxu0 0.0
        %1386 = vmatpush1.msra.mxu0 0.0
        %1387 = vmatprep.subr.mxu0 0.0
        %1388 = vmatpush1.msra.mxu0 0.0
        %1389 = vmatprep.subr.mxu0 0.0
        %1390 = vmatpush1.msra.mxu0 0.0
        %1391 = vmatprep.subr.mxu0 0.0
        %1392 = vmatpush1.msra.mxu0 0.0
        %1393 = vmatprep.subr.mxu0 0.0
        %1394 = vmatpush1.msra.mxu0 0.0
        %1395 = vmatprep.subr.mxu0 0.0
        %1396 = vmatpush1.msra.mxu0 0.0
        %1397 = vmatprep.subr.mxu0 0.0
        %1398 = vmatpush1.msra.mxu0 0.0
        %1399 = vmatprep.subr.mxu0 0.0
        %1400 = vmatpush1.msra.mxu0 0.0
        %1401 = vmatprep.subr.mxu0 0.0
        %1402 = vmatpush1.msra.mxu0 0.0
        %1403 = vmatprep.subr.mxu0 0.0
        %1404 = vmatpush1.msra.mxu0 0.0
        %1405 = vmatprep.subr.mxu0 0.0
        %1406 = vmatpush1.msra.mxu0 0.0
        %1407 = vmatprep.subr.mxu0 0.0
        %1408 = vmatpush1.msra.mxu0 0.0
        %1409 = vmatprep.subr.mxu0 0.0
        %1410 = vmatpush1.msra.mxu0 0.0
        %1411 = vmatprep.subr.mxu0 0.0
        %1412 = vmatpush1.msra.mxu0 0.0
        %1413 = vmatprep.subr.mxu0 0.0
        %1414 = vmatpush1.msra.mxu0 0.0
        %1415 = vmatprep.subr.mxu0 0.0
        %1416 = vmatpush1.msra.mxu0 0.0
        %1417 = vmatprep.subr.mxu0 0.0
        %1418 = vmatpush1.msra.mxu0 0.0
        %1419 = vmatprep.subr.mxu0 0.0
        %1420 = vmatpush1.msra.mxu0 0.0
        %1421 = vmatprep.subr.mxu0 0.0
        %1422 = vmatpush1.msra.mxu0 0.0
        %1423 = vmatprep.mubr.f32.mxu0 0.0
        %1424 = vmatmul.mubr.f32.gmra.mrb[0].mxu0 %v1357
        %v1425 = vpop.f32.mrb[0].mxu0
        %v1426 = vadd.f32 0.0, %v1425
        %v1427 = vpop.f32.mrb[0].mxu0
        %1428 = vdwg.mxu0
        %1429 = vrot.lane.b32.xlu0 %v861, 104
        %v1430 = vpop.permute.xlu0 %1429
        %1431 = vrot.lane.b32.xlu0 %v870, 72
        %v1432 = vpop.permute.xlu0 %1431
        %v1433 = vsel %vm938, %v1430, 0
        %v1435 = vsel %vm938, %v1432, 0
        %1437 = vmatprep.subr.mxu0 0.0
        %1438 = vmatpush1.xpose.msra.mxu0 %v1435
        %1439 = vmatprep.subr.mxu0 0.0
        %1440 = vmatpush1.xpose.msra.mxu0 0.0
        %1441 = vmatprep.subr.mxu0 0.0
        %1442 = vmatpush1.xpose.msra.mxu0 0.0
        %1443 = vmatprep.subr.mxu0 0.0
        %1444 = vmatpush1.xpose.msra.mxu0 0.0
        %1445 = vmatprep.subr.mxu0 0.0
        %1446 = vmatpush1.xpose.msra.mxu0 0.0
        %1447 = vmatprep.subr.mxu0 0.0
        %1448 = vmatpush1.xpose.msra.mxu0 0.0
        %1449 = vmatprep.subr.mxu0 0.0
        %1450 = vmatpush1.xpose.msra.mxu0 0.0
        %1451 = vmatprep.subr.mxu0 0.0
        %1452 = vmatpush1.xpose.msra.mxu0 0.0
        %1453 = vmatprep.subr.mxu0 0.0
        %1454 = vmatpush1.xpose.msra.mxu0 0.0
        %1455 = vmatprep.subr.mxu0 0.0
        %1456 = vmatpush1.xpose.msra.mxu0 0.0
        %1457 = vmatprep.subr.mxu0 0.0
        %1458 = vmatpush1.xpose.msra.mxu0 0.0
        %1459 = vmatprep.subr.mxu0 0.0
        %1460 = vmatpush1.xpose.msra.mxu0 0.0
        %1461 = vmatprep.subr.mxu0 0.0
        %1462 = vmatpush1.xpose.msra.mxu0 0.0
        %1463 = vmatprep.subr.mxu0 0.0
        %1464 = vmatpush1.xpose.msra.mxu0 0.0
        %1465 = vmatprep.subr.mxu0 0.0
        %1466 = vmatpush1.xpose.msra.mxu0 0.0
        %1467 = vmatprep.subr.mxu0 0.0
        %1468 = vmatpush1.xpose.msra.mxu0 0.0
        %1469 = vmatprep.subr.mxu0 0.0
        %1470 = vmatpush1.xpose.msra.mxu0 0.0
        %1471 = vmatprep.subr.mxu0 0.0
        %1472 = vmatpush1.xpose.msra.mxu0 0.0
        %1473 = vmatprep.subr.mxu0 0.0
        %1474 = vmatpush1.xpose.msra.mxu0 0.0
        %1475 = vmatprep.subr.mxu0 0.0
        %1476 = vmatpush1.xpose.msra.mxu0 0.0
        %1477 = vmatprep.subr.mxu0 0.0
        %1478 = vmatpush1.xpose.msra.mxu0 0.0
        %1479 = vmatprep.subr.mxu0 0.0
        %1480 = vmatpush1.xpose.msra.mxu0 0.0
        %1481 = vmatprep.subr.mxu0 0.0
        %1482 = vmatpush1.xpose.msra.mxu0 0.0
        %1483 = vmatprep.subr.mxu0 0.0
        %1484 = vmatpush1.xpose.msra.mxu0 0.0
        %1485 = vmatprep.subr.mxu0 0.0
        %1486 = vmatpush1.xpose.msra.mxu0 0.0
        %1487 = vmatprep.subr.mxu0 0.0
        %1488 = vmatpush1.xpose.msra.mxu0 0.0
        %1489 = vmatprep.subr.mxu0 0.0
        %1490 = vmatpush1.xpose.msra.mxu0 0.0
        %1491 = vmatprep.subr.mxu0 0.0
        %1492 = vmatpush1.xpose.msra.mxu0 0.0
        %1493 = vmatprep.subr.mxu0 0.0
        %1494 = vmatpush1.xpose.msra.mxu0 0.0
        %1495 = vmatprep.subr.mxu0 0.0
        %1496 = vmatpush1.xpose.msra.mxu0 0.0
        %1497 = vmatprep.subr.mxu0 0.0
        %1498 = vmatpush1.xpose.msra.mxu0 0.0
        %1499 = vmatprep.subr.mxu0 0.0
        %1500 = vmatpush1.xpose.msra.mxu0 0.0
        %1501 = vmatprep.mubr.f32.mxu0 0.0
        %1502 = vmatmul.mubr.f32.gmra.mrb[0].mxu0 %v1433
        %v1503 = vpop.f32.mrb[0].mxu0
        %v1504 = vadd.f32 0.0, %v1503
        %v1505 = vpop.f32.mrb[0].mxu0
        %1506 = vdwg.mxu0
        %v1507 = vsel %vm938, %v1504, -inf
        %1508 = vmax.xlane.f32.xlu0 %v1507
        %v1509 = vpop.xlane.xlu0 %1508
        %v1510 = vsub.f32 %v1504, %v1509
        %v1511 = vmul.f32 %v1510, 1.442695
        %v1512 = vpow.pop %v1511
        %v1513 = vsel %vm938, %v1512, 0.0
        %1514 = vadd.xlane.f32.xlu0 %v1513
        %v1515 = vpop.xlane.xlu0 %1514
        %v1516 = vrcp.pop %v1515
        %v1517 = vmul.f32 %v1512, %v1516
        %1518 = vrot.lane.b32.xlu0 %v930, 104
        %v1519 = vpop.permute.xlu0 %1518
        %v1522 = vsel %vm938, %v1517, 0
        %1524 = vmatprep.subr.mxu0 0.0
        %1525 = vmatpush1.msra.mxu0 %v1519
        %1526 = vmatprep.subr.mxu0 0.0
        %1527 = vmatpush1.msra.mxu0 0.0
        %1528 = vmatprep.subr.mxu0 0.0
        %1529 = vmatpush1.msra.mxu0 0.0
        %1530 = vmatprep.subr.mxu0 0.0
        %1531 = vmatpush1.msra.mxu0 0.0
        %1532 = vmatprep.subr.mxu0 0.0
        %1533 = vmatpush1.msra.mxu0 0.0
        %1534 = vmatprep.subr.mxu0 0.0
        %1535 = vmatpush1.msra.mxu0 0.0
        %1536 = vmatprep.subr.mxu0 0.0
        %1537 = vmatpush1.msra.mxu0 0.0
        %1538 = vmatprep.subr.mxu0 0.0
        %1539 = vmatpush1.msra.mxu0 0.0
        %1540 = vmatprep.subr.mxu0 0.0
        %1541 = vmatpush1.msra.mxu0 0.0
        %1542 = vmatprep.subr.mxu0 0.0
        %1543 = vmatpush1.msra.mxu0 0.0
        %1544 = vmatprep.subr.mxu0 0.0
        %1545 = vmatpush1.msra.mxu0 0.0
        %1546 = vmatprep.subr.mxu0 0.0
        %1547 = vmatpush1.msra.mxu0 0.0
        %1548 = vmatprep.subr.mxu0 0.0
        %1549 = vmatpush1.msra.mxu0 0.0
        %1550 = vmatprep.subr.mxu0 0.0
        %1551 = vmatpush1.msra.mxu0 0.0
        %1552 = vmatprep.subr.mxu0 0.0
        %1553 = vmatpush1.msra.mxu0 0.0
        %1554 = vmatprep.subr.mxu0 0.0
        %1555 = vmatpush1.msra.mxu0 0.0
        %1556 = vmatprep.subr.mxu0 0.0
        %1557 = vmatpush1.msra.mxu0 0.0
        %1558 = vmatprep.subr.mxu0 0.0
        %1559 = vmatpush1.msra.mxu0 0.0
        %1560 = vmatprep.subr.mxu0 0.0
        %1561 = vmatpush1.msra.mxu0 0.0
        %1562 = vmatprep.subr.mxu0 0.0
        %1563 = vmatpush1.msra.mxu0 0.0
        %1564 = vmatprep.subr.mxu0 0.0
        %1565 = vmatpush1.msra.mxu0 0.0
        %1566 = vmatprep.subr.mxu0 0.0
        %1567 = vmatpush1.msra.mxu0 0.0
        %1568 = vmatprep.subr.mxu0 0.0
        %1569 = vmatpush1.msra.mxu0 0.0
        %1570 = vmatprep.subr.mxu0 0.0
        %1571 = vmatpush1.msra.mxu0 0.0
        %1572 = vmatprep.subr.mxu0 0.0
        %1573 = vmatpush1.msra.mxu0 0.0
        %1574 = vmatprep.subr.mxu0 0.0
        %1575 = vmatpush1.msra.mxu0 0.0
        %1576 = vmatprep.subr.mxu0 0.0
        %1577 = vmatpush1.msra.mxu0 0.0
        %1578 = vmatprep.subr.mxu0 0.0
        %1579 = vmatpush1.msra.mxu0 0.0
        %1580 = vmatprep.subr.mxu0 0.0
        %1581 = vmatpush1.msra.mxu0 0.0
        %1582 = vmatprep.subr.mxu0 0.0
        %1583 = vmatpush1.msra.mxu0 0.0
        %1584 = vmatprep.subr.mxu0 0.0
        %1585 = vmatpush1.msra.mxu0 0.0
        %1586 = vmatprep.subr.mxu0 0.0
        %1587 = vmatpush1.msra.mxu0 0.0
        %1588 = vmatprep.mubr.f32.mxu0 0.0
        %1589 = vmatmul.mubr.f32.gmra.mrb[0].mxu0 %v1522
        %v1590 = vpop.f32.mrb[0].mxu0
        %v1591 = vadd.f32 0.0, %v1590
        %v1592 = vpop.f32.mrb[0].mxu0
        %1593 = vdwg.mxu0
        %1595 = vrot.lane.b32.xlu0 %v1261, 8
        %v1596 = vpop.permute.xlu0 %1595
        %1599 = vrot.lane.b32.xlu0 %v1426, 16
        %v1600 = vpop.permute.xlu0 %1599
        %1603 = vrot.lane.b32.xlu0 %v1591, 24
        %v1604 = vpop.permute.xlu0 %1603
        %v1606 = vsel %vm938, %v1095, %v1596
        %vm1607 = vcmask 130048
        %v1608 = vsel %vm1607, %v1606, %v1600
        %vm1609 = vcmask 195584
        %v1610 = vsel %vm1609, %v1608, %v1604
        %v1611 = vld [vmem:[%s744] sm:$0xf]
        %v1612 = vld [vmem:[%s744 + $0x4] sm:$0xf]
        %v1613 = vld [vmem:[%s744 + $0x8] sm:$0xf]
        %v1614 = vld [vmem:[%s744 + $0xc] sm:$0xf]
        %v1615 = vpack.c.bf16 %v1610, %v1610
        %v1616 = vlaneseq
        %v1617 = vshrl.u32 %v1616, 7
        %v1618 = vsub.s32 3, %v1617
        %v1619 = vrot.slane %v793, %v1618
        %v1624 = vunpack.c.l.b16 %v1611
        %v1625 = vunpack.c.l.b16 %v1612
        %v1626 = vunpack.c.l.b16 %v1613
        %v1627 = vunpack.c.l.b16 %v1614
        %v1628 = vpack.c.b16 %v1625, %v1624
        %v1629 = vpack.c.b16 %v1627, %v1626
        %v1633 = vsel %vm813, %v1615, 0
        %1635 = vmatprep.subr.bf16.mxu0 0
        %1636 = vmatpush1.bf16.msra.mxu0 %v1628
        %1637 = vmatprep.subr.bf16.mxu0 0
        %1638 = vmatpush1.bf16.msra.mxu0 %v1629
        %1639 = vmatprep.subr.bf16.mxu0 0
        %1640 = vmatpush1.bf16.msra.mxu0 0
        %1641 = vmatprep.subr.bf16.mxu0 0
        %1642 = vmatpush1.bf16.msra.mxu0 0
        %1643 = vmatprep.subr.bf16.mxu0 0
        %1644 = vmatpush1.bf16.msra.mxu0 0
        %1645 = vmatprep.subr.bf16.mxu0 0
        %1646 = vmatpush1.bf16.msra.mxu0 0
        %1647 = vmatprep.subr.bf16.mxu0 0
        %1648 = vmatpush1.bf16.msra.mxu0 0
        %1649 = vmatprep.subr.bf16.mxu0 0
        %1650 = vmatpush1.bf16.msra.mxu0 0
        %1651 = vmatprep.subr.bf16.mxu0 0
        %1652 = vmatpush1.bf16.msra.mxu0 0
        %1653 = vmatprep.subr.bf16.mxu0 0
        %1654 = vmatpush1.bf16.msra.mxu0 0
        %1655 = vmatprep.subr.bf16.mxu0 0
        %1656 = vmatpush1.bf16.msra.mxu0 0
        %1657 = vmatprep.subr.bf16.mxu0 0
        %1658 = vmatpush1.bf16.msra.mxu0 0
        %1659 = vmatprep.subr.bf16.mxu0 0
        %1660 = vmatpush1.bf16.msra.mxu0 0
        %1661 = vmatprep.subr.bf16.mxu0 0
        %1662 = vmatpush1.bf16.msra.mxu0 0
        %1663 = vmatprep.subr.bf16.mxu0 0
        %1664 = vmatpush1.bf16.msra.mxu0 0
        %1665 = vmatprep.subr.bf16.mxu0 0
        %1666 = vmatpush1.bf16.msra.mxu0 0
        %1667 = vmatprep.mubr.bf16.mxu0 0
        %1668 = vmatmul.mubr.bf16.gmra.mrb[0].mxu0 %v1633
        %v1669 = vpop.f32.mrb[0].mxu0
        %v1670 = vadd.f32 %v1619, %v1669
        %v1671 = vpop.f32.mrb[0].mxu0
        %v1672 = vpop.f32.mrb[0].mxu0
        %v1673 = vpop.f32.mrb[0].mxu0
        %1674 = vdwg.mxu0
        %v1675 = vadd.f32 %v787, %v1670
        %v1676 = vsel %vm813, %v1675, 0.0
        %1677 = vadd.xlane.f32.xlu0 %v1676
        %v1678 = vpop.xlane.xlu0 %1677
        %v1679 = vrcp.pop 32.0
        %v1680 = vmul.f32 %v1678, %v1679
        %v1681 = vsub.f32 %v1675, %v1680
        %v1682 = vmul.f32 %v1681, %v1681
        %v1683 = vsel %vm813, %v1682, 0.0
        %1684 = vadd.xlane.f32.xlu0 %v1683
        %v1685 = vpop.xlane.xlu0 %1684
        %v1686 = vmul.f32 %v1685, %v1679
        %v1687 = vadd.f32 %v1686, 1e-05
        %v1688 = vrsqrt.pop %v1687
        %v1689 = vmul.f32 %v1681, %v1688
        %v1690 = vlaneseq
        %v1691 = vshrl.u32 %v1690, 7
        %v1692 = vsub.s32 1, %v1691
        %v1693 = vrot.slane %v794, %v1692
        %v1694 = vmul.f32 %v1689, %v1693
        %v1695 = vlaneseq
        %v1696 = vshrl.u32 %v1695, 7
        %v1697 = vsub.s32 2, %v1696
        %v1698 = vrot.slane %v794, %v1697
        %v1699 = vadd.f32 %v1694, %v1698
        %v1700 = vadd.f32 %v1699, %v788
        %v1701 = vld [vmem:[%s749] sm:$0xf]
        %v1702 = vld [vmem:[%s749 + $0x4] sm:$0xf]
        %v1703 = vld [vmem:[%s749 + $0x8] sm:$0xf]
        %v1704 = vld [vmem:[%s749 + $0xc] sm:$0xf]
        %v1705 = vpack.c.bf16 %v1700, %v1700
        %v1706 = vlaneseq
        %v1707 = vshrl.u32 %v1706, 7
        %v1708 = vsub.s32 4, %v1707
        %v1709 = vrot.slane %v793, %v1708
        %v1714 = vunpack.c.l.b16 %v1701
        %v1715 = vunpack.c.l.b16 %v1702
        %v1716 = vunpack.c.l.b16 %v1703
        %v1717 = vunpack.c.l.b16 %v1704
        %v1718 = vpack.c.b16 %v1715, %v1714
        %v1719 = vpack.c.b16 %v1717, %v1716
        %v1723 = vsel %vm813, %v1705, 0
        %1725 = vmatprep.subr.bf16.mxu0 0
        %1726 = vmatpush1.bf16.msra.mxu0 %v1718
        %1727 = vmatprep.subr.bf16.mxu0 0
        %1728 = vmatpush1.bf16.msra.mxu0 %v1719
        %1729 = vmatprep.subr.bf16.mxu0 0
        %1730 = vmatpush1.bf16.msra.mxu0 0
        %1731 = vmatprep.subr.bf16.mxu0 0
        %1732 = vmatpush1.bf16.msra.mxu0 0
        %1733 = vmatprep.subr.bf16.mxu0 0
        %1734 = vmatpush1.bf16.msra.mxu0 0
        %1735 = vmatprep.subr.bf16.mxu0 0
        %1736 = vmatpush1.bf16.msra.mxu0 0
        %1737 = vmatprep.subr.bf16.mxu0 0
        %1738 = vmatpush1.bf16.msra.mxu0 0
        %1739 = vmatprep.subr.bf16.mxu0 0
        %1740 = vmatpush1.bf16.msra.mxu0 0
        %1741 = vmatprep.subr.bf16.mxu0 0
        %1742 = vmatpush1.bf16.msra.mxu0 0
        %1743 = vmatprep.subr.bf16.mxu0 0
        %1744 = vmatpush1.bf16.msra.mxu0 0
        %1745 = vmatprep.subr.bf16.mxu0 0
        %1746 = vmatpush1.bf16.msra.mxu0 0
        %1747 = vmatprep.subr.bf16.mxu0 0
        %1748 = vmatpush1.bf16.msra.mxu0 0
        %1749 = vmatprep.subr.bf16.mxu0 0
        %1750 = vmatpush1.bf16.msra.mxu0 0
        %1751 = vmatprep.subr.bf16.mxu0 0
        %1752 = vmatpush1.bf16.msra.mxu0 0
        %1753 = vmatprep.subr.bf16.mxu0 0
        %1754 = vmatpush1.bf16.msra.mxu0 0
        %1755 = vmatprep.subr.bf16.mxu0 0
        %1756 = vmatpush1.bf16.msra.mxu0 0
        %1757 = vmatprep.mubr.bf16.mxu0 0
        %1758 = vmatmul.mubr.bf16.gmra.mrb[0].mxu0 %v1723
        %v1759 = vpop.f32.mrb[0].mxu0
        %v1760 = vadd.f32 %v1709, %v1759
        %v1761 = vpop.f32.mrb[0].mxu0
        %v1762 = vpop.f32.mrb[0].mxu0
        %v1763 = vpop.f32.mrb[0].mxu0
        %1764 = vdwg.mxu0
        %v1765 = vld [vmem:[%s754] sm:$0xf]
        %v1766 = vld [vmem:[%s754 + $0x4] sm:$0xf]
        %v1767 = vld [vmem:[%s754 + $0x8] sm:$0xf]
        %v1768 = vld [vmem:[%s754 + $0xc] sm:$0xf]
        %v1769 = vpack.c.bf16 %v792, %v791
        %v1770 = vlaneseq
        %v1771 = vshrl.u32 %v1770, 7
        %v1772 = vsub.s32 5, %v1771
        %v1773 = vrot.slane %v793, %v1772
        %v1778 = vunpack.c.l.b16 %v1765
        %v1779 = vunpack.c.l.b16 %v1766
        %v1780 = vunpack.c.l.b16 %v1767
        %v1781 = vunpack.c.l.b16 %v1768
        %v1782 = vpack.c.b16 %v1779, %v1778
        %v1783 = vpack.c.b16 %v1781, %v1780
        %v1787 = vsel %vm813, %v1769, 0
        %1789 = vmatprep.subr.bf16.mxu0 0
        %1790 = vmatpush1.bf16.msra.mxu0 %v1782
        %1791 = vmatprep.subr.bf16.mxu0 0
        %1792 = vmatpush1.bf16.msra.mxu0 %v1783
        %1793 = vmatprep.subr.bf16.mxu0 0
        %1794 = vmatpush1.bf16.msra.mxu0 0
        %1795 = vmatprep.subr.bf16.mxu0 0
        %1796 = vmatpush1.bf16.msra.mxu0 0
        %1797 = vmatprep.subr.bf16.mxu0 0
        %1798 = vmatpush1.bf16.msra.mxu0 0
        %1799 = vmatprep.subr.bf16.mxu0 0
        %1800 = vmatpush1.bf16.msra.mxu0 0
        %1801 = vmatprep.subr.bf16.mxu0 0
        %1802 = vmatpush1.bf16.msra.mxu0 0
        %1803 = vmatprep.subr.bf16.mxu0 0
        %1804 = vmatpush1.bf16.msra.mxu0 0
        %1805 = vmatprep.subr.bf16.mxu0 0
        %1806 = vmatpush1.bf16.msra.mxu0 0
        %1807 = vmatprep.subr.bf16.mxu0 0
        %1808 = vmatpush1.bf16.msra.mxu0 0
        %1809 = vmatprep.subr.bf16.mxu0 0
        %1810 = vmatpush1.bf16.msra.mxu0 0
        %1811 = vmatprep.subr.bf16.mxu0 0
        %1812 = vmatpush1.bf16.msra.mxu0 0
        %1813 = vmatprep.subr.bf16.mxu0 0
        %1814 = vmatpush1.bf16.msra.mxu0 0
        %1815 = vmatprep.subr.bf16.mxu0 0
        %1816 = vmatpush1.bf16.msra.mxu0 0
        %1817 = vmatprep.subr.bf16.mxu0 0
        %1818 = vmatpush1.bf16.msra.mxu0 0
        %1819 = vmatprep.subr.bf16.mxu0 0
        %1820 = vmatpush1.bf16.msra.mxu0 0
        %1821 = vmatprep.mubr.bf16.mxu0 0
        %1822 = vmatmul.mubr.bf16.gmra.mrb[0].mxu0 %v1787
        %v1823 = vpop.f32.mrb[0].mxu0
        %v1824 = vadd.f32 %v1773, %v1823
        %v1825 = vpop.f32.mrb[0].mxu0
        %v1826 = vpop.f32.mrb[0].mxu0
        %v1827 = vadd.f32 %v1773, %v1826
        %v1828 = vpop.f32.mrb[0].mxu0
        %1829 = vdwg.mxu0
        %v1830 = vld [vmem:[%s759] sm:$0xf]
        %v1831 = vld [vmem:[%s759 + $0x4] sm:$0xf]
        %v1832 = vld [vmem:[%s759 + $0x8] sm:$0xf]
        %v1833 = vld [vmem:[%s759 + $0xc] sm:$0xf]
        %v1834 = vpack.c.bf16 %v790, %v789
        %v1835 = vlaneseq
        %v1836 = vshrl.u32 %v1835, 7
        %v1837 = vsub.s32 6, %v1836
        %v1838 = vrot.slane %v793, %v1837
        %v1843 = vunpack.c.l.b16 %v1830
        %v1844 = vunpack.c.l.b16 %v1831
        %v1845 = vunpack.c.l.b16 %v1832
        %v1846 = vunpack.c.l.b16 %v1833
        %v1847 = vpack.c.b16 %v1844, %v1843
        %v1848 = vpack.c.b16 %v1846, %v1845
        %v1852 = vsel %vm813, %v1834, 0
        %1854 = vmatprep.subr.bf16.mxu0 0
        %1855 = vmatpush1.bf16.msra.mxu0 %v1847
        %1856 = vmatprep.subr.bf16.mxu0 0
        %1857 = vmatpush1.bf16.msra.mxu0 %v1848
        %1858 = vmatprep.subr.bf16.mxu0 0
        %1859 = vmatpush1.bf16.msra.mxu0 0
        %1860 = vmatprep.subr.bf16.mxu0 0
        %1861 = vmatpush1.bf16.msra.mxu0 0
        %1862 = vmatprep.subr.bf16.mxu0 0
        %1863 = vmatpush1.bf16.msra.mxu0 0
        %1864 = vmatprep.subr.bf16.mxu0 0
        %1865 = vmatpush1.bf16.msra.mxu0 0
        %1866 = vmatprep.subr.bf16.mxu0 0
        %1867 = vmatpush1.bf16.msra.mxu0 0
        %1868 = vmatprep.subr.bf16.mxu0 0
        %1869 = vmatpush1.bf16.msra.mxu0 0
        %1870 = vmatprep.subr.bf16.mxu0 0
        %1871 = vmatpush1.bf16.msra.mxu0 0
        %1872 = vmatprep.subr.bf16.mxu0 0
        %1873 = vmatpush1.bf16.msra.mxu0 0
        %1874 = vmatprep.subr.bf16.mxu0 0
        %1875 = vmatpush1.bf16.msra.mxu0 0
        %1876 = vmatprep.subr.bf16.mxu0 0
        %1877 = vmatpush1.bf16.msra.mxu0 0
        %1878 = vmatprep.subr.bf16.mxu0 0
        %1879 = vmatpush1.bf16.msra.mxu0 0
        %1880 = vmatprep.subr.bf16.mxu0 0
        %1881 = vmatpush1.bf16.msra.mxu0 0
        %1882 = vmatprep.subr.bf16.mxu0 0
        %1883 = vmatpush1.bf16.msra.mxu0 0
        %1884 = vmatprep.subr.bf16.mxu0 0
        %1885 = vmatpush1.bf16.msra.mxu0 0
        %1886 = vmatprep.mubr.bf16.mxu0 0
        %1887 = vmatmul.mubr.bf16.gmra.mrb[0].mxu0 %v1852
        %v1888 = vpop.f32.mrb[0].mxu0
        %v1889 = vadd.f32 %v1838, %v1888
        %v1890 = vpop.f32.mrb[0].mxu0
        %v1891 = vpop.f32.mrb[0].mxu0
        %v1892 = vadd.f32 %v1838, %v1891
        %v1893 = vpop.f32.mrb[0].mxu0
        %1894 = vdwg.mxu0
        %v1896 = vsel %vm938, %v1760, 0
        %v1899 = vsel %vm938, %v1824, 0
        %v1902 = vsel %vm938, %v1827, 0
        %1904 = vmatprep.subr.mxu0 0.0
        %1905 = vmatpush1.xpose.msra.mxu0 %v1899
        %1906 = vmatprep.subr.mxu0 0.0
        %1907 = vmatpush1.xpose.msra.mxu0 %v1902
        %1908 = vmatprep.subr.mxu0 0.0
        %1909 = vmatpush1.xpose.msra.mxu0 0.0
        %1910 = vmatprep.subr.mxu0 0.0
        %1911 = vmatpush1.xpose.msra.mxu0 0.0
        %1912 = vmatprep.subr.mxu0 0.0
        %1913 = vmatpush1.xpose.msra.mxu0 0.0
        %1914 = vmatprep.subr.mxu0 0.0
        %1915 = vmatpush1.xpose.msra.mxu0 0.0
        %1916 = vmatprep.subr.mxu0 0.0
        %1917 = vmatpush1.xpose.msra.mxu0 0.0
        %1918 = vmatprep.subr.mxu0 0.0
        %1919 = vmatpush1.xpose.msra.mxu0 0.0
        %1920 = vmatprep.subr.mxu0 0.0
        %1921 = vmatpush1.xpose.msra.mxu0 0.0
        %1922 = vmatprep.subr.mxu0 0.0
        %1923 = vmatpush1.xpose.msra.mxu0 0.0
        %1924 = vmatprep.subr.mxu0 0.0
        %1925 = vmatpush1.xpose.msra.mxu0 0.0
        %1926 = vmatprep.subr.mxu0 0.0
        %1927 = vmatpush1.xpose.msra.mxu0 0.0
        %1928 = vmatprep.subr.mxu0 0.0
        %1929 = vmatpush1.xpose.msra.mxu0 0.0
        %1930 = vmatprep.subr.mxu0 0.0
        %1931 = vmatpush1.xpose.msra.mxu0 0.0
        %1932 = vmatprep.subr.mxu0 0.0
        %1933 = vmatpush1.xpose.msra.mxu0 0.0
        %1934 = vmatprep.subr.mxu0 0.0
        %1935 = vmatpush1.xpose.msra.mxu0 0.0
        %1936 = vmatprep.subr.mxu0 0.0
        %1937 = vmatpush1.xpose.msra.mxu0 0.0
        %1938 = vmatprep.subr.mxu0 0.0
        %1939 = vmatpush1.xpose.msra.mxu0 0.0
        %1940 = vmatprep.subr.mxu0 0.0
        %1941 = vmatpush1.xpose.msra.mxu0 0.0
        %1942 = vmatprep.subr.mxu0 0.0
        %1943 = vmatpush1.xpose.msra.mxu0 0.0
        %1944 = vmatprep.subr.mxu0 0.0
        %1945 = vmatpush1.xpose.msra.mxu0 0.0
        %1946 = vmatprep.subr.mxu0 0.0
        %1947 = vmatpush1.xpose.msra.mxu0 0.0
        %1948 = vmatprep.subr.mxu0 0.0
        %1949 = vmatpush1.xpose.msra.mxu0 0.0
        %1950 = vmatprep.subr.mxu0 0.0
        %1951 = vmatpush1.xpose.msra.mxu0 0.0
        %1952 = vmatprep.subr.mxu0 0.0
        %1953 = vmatpush1.xpose.msra.mxu0 0.0
        %1954 = vmatprep.subr.mxu0 0.0
        %1955 = vmatpush1.xpose.msra.mxu0 0.0
        %1956 = vmatprep.subr.mxu0 0.0
        %1957 = vmatpush1.xpose.msra.mxu0 0.0
        %1958 = vmatprep.subr.mxu0 0.0
        %1959 = vmatpush1.xpose.msra.mxu0 0.0
        %1960 = vmatprep.subr.mxu0 0.0
        %1961 = vmatpush1.xpose.msra.mxu0 0.0
        %1962 = vmatprep.subr.mxu0 0.0
        %1963 = vmatpush1.xpose.msra.mxu0 0.0
        %1964 = vmatprep.subr.mxu0 0.0
        %1965 = vmatpush1.xpose.msra.mxu0 0.0
        %1966 = vmatprep.subr.mxu0 0.0
        %1967 = vmatpush1.xpose.msra.mxu0 0.0
        %1968 = vmatprep.mubr.f32.mxu0 0.0
        %1969 = vmatmul.mubr.f32.gmra.mrb[0].mxu0 %v1896
        %v1970 = vpop.f32.mrb[0].mxu0
        %v1971 = vadd.f32 0.0, %v1970
        %v1972 = vpop.f32.mrb[0].mxu0
        %1973 = vdwg.mxu0
        %v1974 = vsel %vm1607, %v1971, -inf
        %1975 = vmax.xlane.f32.xlu0 %v1974
        %v1976 = vpop.xlane.xlu0 %1975
        %v1977 = vsub.f32 %v1971, %v1976
        %v1978 = vmul.f32 %v1977, 1.442695
        %v1979 = vpow.pop %v1978
        %v1980 = vsel %vm1607, %v1979, 0.0
        %1981 = vadd.xlane.f32.xlu0 %v1980
        %v1982 = vpop.xlane.xlu0 %1981
        %v1983 = vrcp.pop %v1982
        %v1984 = vmul.f32 %v1979, %v1983
        %v1986 = vsel %vm1607, %v1984, 0
        %1988 = vmatprep.subr.mxu0 0.0
        %1989 = vmatpush1.msra.mxu0 %v1889
        %1990 = vmatprep.subr.mxu0 0.0
        %1991 = vmatpush1.msra.mxu0 %v1892
        %1992 = vmatprep.subr.mxu0 0.0
        %1993 = vmatpush1.msra.mxu0 0.0
        %1994 = vmatprep.subr.mxu0 0.0
        %1995 = vmatpush1.msra.mxu0 0.0
        %1996 = vmatprep.subr.mxu0 0.0
        %1997 = vmatpush1.msra.mxu0 0.0
        %1998 = vmatprep.subr.mxu0 0.0
        %1999 = vmatpush1.msra.mxu0 0.0
        %2000 = vmatprep.subr.mxu0 0.0
        %2001 = vmatpush1.msra.mxu0 0.0
        %2002 = vmatprep.subr.mxu0 0.0
        %2003 = vmatpush1.msra.mxu0 0.0
        %2004 = vmatprep.subr.mxu0 0.0
        %2005 = vmatpush1.msra.mxu0 0.0
        %2006 = vmatprep.subr.mxu0 0.0
        %2007 = vmatpush1.msra.mxu0 0.0
        %2008 = vmatprep.subr.mxu0 0.0
        %2009 = vmatpush1.msra.mxu0 0.0
        %2010 = vmatprep.subr.mxu0 0.0
        %2011 = vmatpush1.msra.mxu0 0.0
        %2012 = vmatprep.subr.mxu0 0.0
        %2013 = vmatpush1.msra.mxu0 0.0
        %2014 = vmatprep.subr.mxu0 0.0
        %2015 = vmatpush1.msra.mxu0 0.0
        %2016 = vmatprep.subr.mxu0 0.0
        %2017 = vmatpush1.msra.mxu0 0.0
        %2018 = vmatprep.subr.mxu0 0.0
        %2019 = vmatpush1.msra.mxu0 0.0
        %2020 = vmatprep.subr.mxu0 0.0
        %2021 = vmatpush1.msra.mxu0 0.0
        %2022 = vmatprep.subr.mxu0 0.0
        %2023 = vmatpush1.msra.mxu0 0.0
        %2024 = vmatprep.subr.mxu0 0.0
        %2025 = vmatpush1.msra.mxu0 0.0
        %2026 = vmatprep.subr.mxu0 0.0
        %2027 = vmatpush1.msra.mxu0 0.0
        %2028 = vmatprep.subr.mxu0 0.0
        %2029 = vmatpush1.msra.mxu0 0.0
        %2030 = vmatprep.subr.mxu0 0.0
        %2031 = vmatpush1.msra.mxu0 0.0
        %2032 = vmatprep.subr.mxu0 0.0
        %2033 = vmatpush1.msra.mxu0 0.0
        %2034 = vmatprep.subr.mxu0 0.0
        %2035 = vmatpush1.msra.mxu0 0.0
        %2036 = vmatprep.subr.mxu0 0.0
        %2037 = vmatpush1.msra.mxu0 0.0
        %2038 = vmatprep.subr.mxu0 0.0
        %2039 = vmatpush1.msra.mxu0 0.0
        %2040 = vmatprep.subr.mxu0 0.0
        %2041 = vmatpush1.msra.mxu0 0.0
        %2042 = vmatprep.subr.mxu0 0.0
        %2043 = vmatpush1.msra.mxu0 0.0
        %2044 = vmatprep.subr.mxu0 0.0
        %2045 = vmatpush1.msra.mxu0 0.0
        %2046 = vmatprep.subr.mxu0 0.0
        %2047 = vmatpush1.msra.mxu0 0.0
        %2048 = vmatprep.subr.mxu0 0.0
        %2049 = vmatpush1.msra.mxu0 0.0
        %2050 = vmatprep.subr.mxu0 0.0
        %2051 = vmatpush1.msra.mxu0 0.0
        %2052 = vmatprep.mubr.f32.mxu0 0.0
        %2053 = vmatmul.mubr.f32.gmra.mrb[0].mxu0 %v1986
        %v2054 = vpop.f32.mrb[0].mxu0
        %v2055 = vadd.f32 0.0, %v2054
        %v2056 = vpop.f32.mrb[0].mxu0
        %2057 = vdwg.mxu0
        %2058 = vrot.lane.b32.xlu0 %v1760, 120
        %v2059 = vpop.permute.xlu0 %2058
        %2060 = vrot.lane.b32.xlu0 %v1824, 120
        %v2061 = vpop.permute.xlu0 %2060
        %2062 = vrot.lane.b32.xlu0 %v1827, 120
        %v2063 = vpop.permute.xlu0 %2062
        %v2064 = vsel %vm938, %v2059, 0
        %v2066 = vsel %vm938, %v2061, 0
        %v2068 = vsel %vm938, %v2063, 0
        %2070 = vmatprep.subr.mxu0 0.0
        %2071 = vmatpush1.xpose.msra.mxu0 %v2066
        %2072 = vmatprep.subr.mxu0 0.0
        %2073 = vmatpush1.xpose.msra.mxu0 %v2068
        %2074 = vmatprep.subr.mxu0 0.0
        %2075 = vmatpush1.xpose.msra.mxu0 0.0
        %2076 = vmatprep.subr.mxu0 0.0
        %2077 = vmatpush1.xpose.msra.mxu0 0.0
        %2078 = vmatprep.subr.mxu0 0.0
        %2079 = vmatpush1.xpose.msra.mxu0 0.0
        %2080 = vmatprep.subr.mxu0 0.0
        %2081 = vmatpush1.xpose.msra.mxu0 0.0
        %2082 = vmatprep.subr.mxu0 0.0
        %2083 = vmatpush1.xpose.msra.mxu0 0.0
        %2084 = vmatprep.subr.mxu0 0.0
        %2085 = vmatpush1.xpose.msra.mxu0 0.0
        %2086 = vmatprep.subr.mxu0 0.0
        %2087 = vmatpush1.xpose.msra.mxu0 0.0
        %2088 = vmatprep.subr.mxu0 0.0
        %2089 = vmatpush1.xpose.msra.mxu0 0.0
        %2090 = vmatprep.subr.mxu0 0.0
        %2091 = vmatpush1.xpose.msra.mxu0 0.0
        %2092 = vmatprep.subr.mxu0 0.0
        %2093 = vmatpush1.xpose.msra.mxu0 0.0
        %2094 = vmatprep.subr.mxu0 0.0
        %2095 = vmatpush1.xpose.msra.mxu0 0.0
        %2096 = vmatprep.subr.mxu0 0.0
        %2097 = vmatpush1.xpose.msra.mxu0 0.0
        %2098 = vmatprep.subr.mxu0 0.0
        %2099 = vmatpush1.xpose.msra.mxu0 0.0
        %2100 = vmatprep.subr.mxu0 0.0
        %2101 = vmatpush1.xpose.msra.mxu0 0.0
        %2102 = vmatprep.subr.mxu0 0.0
        %2103 = vmatpush1.xpose.msra.mxu0 0.0
        %2104 = vmatprep.subr.mxu0 0.0
        %2105 = vmatpush1.xpose.msra.mxu0 0.0
        %2106 = vmatprep.subr.mxu0 0.0
        %2107 = vmatpush1.xpose.msra.mxu0 0.0
        %2108 = vmatprep.subr.mxu0 0.0
        %2109 = vmatpush1.xpose.msra.mxu0 0.0
        %2110 = vmatprep.subr.mxu0 0.0
        %2111 = vmatpush1.xpose.msra.mxu0 0.0
        %2112 = vmatprep.subr.mxu0 0.0
        %2113 = vmatpush1.xpose.msra.mxu0 0.0
        %2114 = vmatprep.subr.mxu0 0.0
        %2115 = vmatpush1.xpose.msra.mxu0 0.0
        %2116 = vmatprep.subr.mxu0 0.0
        %2117 = vmatpush1.xpose.msra.mxu0 0.0
        %2118 = vmatprep.subr.mxu0 0.0
        %2119 = vmatpush1.xpose.msra.mxu0 0.0
        %2120 = vmatprep.subr.mxu0 0.0
        %2121 = vmatpush1.xpose.msra.mxu0 0.0
        %2122 = vmatprep.subr.mxu0 0.0
        %2123 = vmatpush1.xpose.msra.mxu0 0.0
        %2124 = vmatprep.subr.mxu0 0.0
        %2125 = vmatpush1.xpose.msra.mxu0 0.0
        %2126 = vmatprep.subr.mxu0 0.0
        %2127 = vmatpush1.xpose.msra.mxu0 0.0
        %2128 = vmatprep.subr.mxu0 0.0
        %2129 = vmatpush1.xpose.msra.mxu0 0.0
        %2130 = vmatprep.subr.mxu0 0.0
        %2131 = vmatpush1.xpose.msra.mxu0 0.0
        %2132 = vmatprep.subr.mxu0 0.0
        %2133 = vmatpush1.xpose.msra.mxu0 0.0
        %2134 = vmatprep.mubr.f32.mxu0 0.0
        %2135 = vmatmul.mubr.f32.gmra.mrb[0].mxu0 %v2064
        %v2136 = vpop.f32.mrb[0].mxu0
        %v2137 = vadd.f32 0.0, %v2136
        %v2138 = vpop.f32.mrb[0].mxu0
        %2139 = vdwg.mxu0
        %v2140 = vsel %vm1607, %v2137, -inf
        %2141 = vmax.xlane.f32.xlu0 %v2140
        %v2142 = vpop.xlane.xlu0 %2141
        %v2143 = vsub.f32 %v2137, %v2142
        %v2144 = vmul.f32 %v2143, 1.442695
        %v2145 = vpow.pop %v2144
        %v2146 = vsel %vm1607, %v2145, 0.0
        %2147 = vadd.xlane.f32.xlu0 %v2146
        %v2148 = vpop.xlane.xlu0 %2147
        %v2149 = vrcp.pop %v2148
        %v2150 = vmul.f32 %v2145, %v2149
        %2153 = vrot.lane.b32.xlu0 %v1889, 120
        %v2154 = vpop.permute.xlu0 %2153
        %2155 = vrot.lane.b32.xlu0 %v1892, 120
        %v2156 = vpop.permute.xlu0 %2155
        %v2160 = vsel %vm1607, %v2150, 0
        %2162 = vmatprep.subr.mxu0 0.0
        %2163 = vmatpush1.msra.mxu0 %v2154
        %2164 = vmatprep.subr.mxu0 0.0
        %2165 = vmatpush1.msra.mxu0 %v2156
        %2166 = vmatprep.subr.mxu0 0.0
        %2167 = vmatpush1.msra.mxu0 0.0
        %2168 = vmatprep.subr.mxu0 0.0
        %2169 = vmatpush1.msra.mxu0 0.0
        %2170 = vmatprep.subr.mxu0 0.0
        %2171 = vmatpush1.msra.mxu0 0.0
        %2172 = vmatprep.subr.mxu0 0.0
        %2173 = vmatpush1.msra.mxu0 0.0
        %2174 = vmatprep.subr.mxu0 0.0
        %2175 = vmatpush1.msra.mxu0 0.0
        %2176 = vmatprep.subr.mxu0 0.0
        %2177 = vmatpush1.msra.mxu0 0.0
        %2178 = vmatprep.subr.mxu0 0.0
        %2179 = vmatpush1.msra.mxu0 0.0
        %2180 = vmatprep.subr.mxu0 0.0
        %2181 = vmatpush1.msra.mxu0 0.0
        %2182 = vmatprep.subr.mxu0 0.0
        %2183 = vmatpush1.msra.mxu0 0.0
        %2184 = vmatprep.subr.mxu0 0.0
        %2185 = vmatpush1.msra.mxu0 0.0
        %2186 = vmatprep.subr.mxu0 0.0
        %2187 = vmatpush1.msra.mxu0 0.0
        %2188 = vmatprep.subr.mxu0 0.0
        %2189 = vmatpush1.msra.mxu0 0.0
        %2190 = vmatprep.subr.mxu0 0.0
        %2191 = vmatpush1.msra.mxu0 0.0
        %2192 = vmatprep.subr.mxu0 0.0
        %2193 = vmatpush1.msra.mxu0 0.0
        %2194 = vmatprep.subr.mxu0 0.0
        %2195 = vmatpush1.msra.mxu0 0.0
        %2196 = vmatprep.subr.mxu0 0.0
        %2197 = vmatpush1.msra.mxu0 0.0
        %2198 = vmatprep.subr.mxu0 0.0
        %2199 = vmatpush1.msra.mxu0 0.0
        %2200 = vmatprep.subr.mxu0 0.0
        %2201 = vmatpush1.msra.mxu0 0.0
        %2202 = vmatprep.subr.mxu0 0.0
        %2203 = vmatpush1.msra.mxu0 0.0
        %2204 = vmatprep.subr.mxu0 0.0
        %2205 = vmatpush1.msra.mxu0 0.0
        %2206 = vmatprep.subr.mxu0 0.0
        %2207 = vmatpush1.msra.mxu0 0.0
        %2208 = vmatprep.subr.mxu0 0.0
        %2209 = vmatpush1.msra.mxu0 0.0
        %2210 = vmatprep.subr.mxu0 0.0
        %2211 = vmatpush1.msra.mxu0 0.0
        %2212 = vmatprep.subr.mxu0 0.0
        %2213 = vmatpush1.msra.mxu0 0.0
        %2214 = vmatprep.subr.mxu0 0.0
        %2215 = vmatpush1.msra.mxu0 0.0
        %2216 = vmatprep.subr.mxu0 0.0
        %2217 = vmatpush1.msra.mxu0 0.0
        %2218 = vmatprep.subr.mxu0 0.0
        %2219 = vmatpush1.msra.mxu0 0.0
        %2220 = vmatprep.subr.mxu0 0.0
        %2221 = vmatpush1.msra.mxu0 0.0
        %2222 = vmatprep.subr.mxu0 0.0
        %2223 = vmatpush1.msra.mxu0 0.0
        %2224 = vmatprep.subr.mxu0 0.0
        %2225 = vmatpush1.msra.mxu0 0.0
        %2226 = vmatprep.mubr.f32.mxu0 0.0
        %2227 = vmatmul.mubr.f32.gmra.mrb[0].mxu0 %v2160
        %v2228 = vpop.f32.mrb[0].mxu0
        %v2229 = vadd.f32 0.0, %v2228
        %v2230 = vpop.f32.mrb[0].mxu0
        %2231 = vdwg.mxu0
        %2232 = vrot.lane.b32.xlu0 %v1760, 112
        %v2233 = vpop.permute.xlu0 %2232
        %2234 = vrot.lane.b32.xlu0 %v1824, 112
        %v2235 = vpop.permute.xlu0 %2234
        %2236 = vrot.lane.b32.xlu0 %v1827, 112
        %v2237 = vpop.permute.xlu0 %2236
        %v2238 = vsel %vm938, %v2233, 0
        %v2240 = vsel %vm938, %v2235, 0
        %v2242 = vsel %vm938, %v2237, 0
        %2244 = vmatprep.subr.mxu0 0.0
        %2245 = vmatpush1.xpose.msra.mxu0 %v2240
        %2246 = vmatprep.subr.mxu0 0.0
        %2247 = vmatpush1.xpose.msra.mxu0 %v2242
        %2248 = vmatprep.subr.mxu0 0.0
        %2249 = vmatpush1.xpose.msra.mxu0 0.0
        %2250 = vmatprep.subr.mxu0 0.0
        %2251 = vmatpush1.xpose.msra.mxu0 0.0
        %2252 = vmatprep.subr.mxu0 0.0
        %2253 = vmatpush1.xpose.msra.mxu0 0.0
        %2254 = vmatprep.subr.mxu0 0.0
        %2255 = vmatpush1.xpose.msra.mxu0 0.0
        %2256 = vmatprep.subr.mxu0 0.0
        %2257 = vmatpush1.xpose.msra.mxu0 0.0
        %2258 = vmatprep.subr.mxu0 0.0
        %2259 = vmatpush1.xpose.msra.mxu0 0.0
        %2260 = vmatprep.subr.mxu0 0.0
        %2261 = vmatpush1.xpose.msra.mxu0 0.0
        %2262 = vmatprep.subr.mxu0 0.0
        %2263 = vmatpush1.xpose.msra.mxu0 0.0
        %2264 = vmatprep.subr.mxu0 0.0
        %2265 = vmatpush1.xpose.msra.mxu0 0.0
        %2266 = vmatprep.subr.mxu0 0.0
        %2267 = vmatpush1.xpose.msra.mxu0 0.0
        %2268 = vmatprep.subr.mxu0 0.0
        %2269 = vmatpush1.xpose.msra.mxu0 0.0
        %2270 = vmatprep.subr.mxu0 0.0
        %2271 = vmatpush1.xpose.msra.mxu0 0.0
        %2272 = vmatprep.subr.mxu0 0.0
        %2273 = vmatpush1.xpose.msra.mxu0 0.0
        %2274 = vmatprep.subr.mxu0 0.0
        %2275 = vmatpush1.xpose.msra.mxu0 0.0
        %2276 = vmatprep.subr.mxu0 0.0
        %2277 = vmatpush1.xpose.msra.mxu0 0.0
        %2278 = vmatprep.subr.mxu0 0.0
        %2279 = vmatpush1.xpose.msra.mxu0 0.0
        %2280 = vmatprep.subr.mxu0 0.0
        %2281 = vmatpush1.xpose.msra.mxu0 0.0
        %2282 = vmatprep.subr.mxu0 0.0
        %2283 = vmatpush1.xpose.msra.mxu0 0.0
        %2284 = vmatprep.subr.mxu0 0.0
        %2285 = vmatpush1.xpose.msra.mxu0 0.0
        %2286 = vmatprep.subr.mxu0 0.0
        %2287 = vmatpush1.xpose.msra.mxu0 0.0
        %2288 = vmatprep.subr.mxu0 0.0
        %2289 = vmatpush1.xpose.msra.mxu0 0.0
        %2290 = vmatprep.subr.mxu0 0.0
        %2291 = vmatpush1.xpose.msra.mxu0 0.0
        %2292 = vmatprep.subr.mxu0 0.0
        %2293 = vmatpush1.xpose.msra.mxu0 0.0
        %2294 = vmatprep.subr.mxu0 0.0
        %2295 = vmatpush1.xpose.msra.mxu0 0.0
        %2296 = vmatprep.subr.mxu0 0.0
        %2297 = vmatpush1.xpose.msra.mxu0 0.0
        %2298 = vmatprep.subr.mxu0 0.0
        %2299 = vmatpush1.xpose.msra.mxu0 0.0
        %2300 = vmatprep.subr.mxu0 0.0
        %2301 = vmatpush1.xpose.msra.mxu0 0.0
        %2302 = vmatprep.subr.mxu0 0.0
        %2303 = vmatpush1.xpose.msra.mxu0 0.0
        %2304 = vmatprep.subr.mxu0 0.0
        %2305 = vmatpush1.xpose.msra.mxu0 0.0
        %2306 = vmatprep.subr.mxu0 0.0
        %2307 = vmatpush1.xpose.msra.mxu0 0.0
        %2308 = vmatprep.mubr.f32.mxu0 0.0
        %2309 = vmatmul.mubr.f32.gmra.mrb[0].mxu0 %v2238
        %v2310 = vpop.f32.mrb[0].mxu0
        %v2311 = vadd.f32 0.0, %v2310
        %v2312 = vpop.f32.mrb[0].mxu0
        %2313 = vdwg.mxu0
        %v2314 = vsel %vm1607, %v2311, -inf
        %2315 = vmax.xlane.f32.xlu0 %v2314
        %v2316 = vpop.xlane.xlu0 %2315
        %v2317 = vsub.f32 %v2311, %v2316
        %v2318 = vmul.f32 %v2317, 1.442695
        %v2319 = vpow.pop %v2318
        %v2320 = vsel %vm1607, %v2319, 0.0
        %2321 = vadd.xlane.f32.xlu0 %v2320
        %v2322 = vpop.xlane.xlu0 %2321
        %v2323 = vrcp.pop %v2322
        %v2324 = vmul.f32 %v2319, %v2323
        %2325 = vrot.lane.b32.xlu0 %v1889, 112
        %v2326 = vpop.permute.xlu0 %2325
        %2327 = vrot.lane.b32.xlu0 %v1892, 112
        %v2328 = vpop.permute.xlu0 %2327
        %v2332 = vsel %vm1607, %v2324, 0
        %2334 = vmatprep.subr.mxu0 0.0
        %2335 = vmatpush1.msra.mxu0 %v2326
        %2336 = vmatprep.subr.mxu0 0.0
        %2337 = vmatpush1.msra.mxu0 %v2328
        %2338 = vmatprep.subr.mxu0 0.0
        %2339 = vmatpush1.msra.mxu0 0.0
        %2340 = vmatprep.subr.mxu0 0.0
        %2341 = vmatpush1.msra.mxu0 0.0
        %2342 = vmatprep.subr.mxu0 0.0
        %2343 = vmatpush1.msra.mxu0 0.0
        %2344 = vmatprep.subr.mxu0 0.0
        %2345 = vmatpush1.msra.mxu0 0.0
        %2346 = vmatprep.subr.mxu0 0.0
        %2347 = vmatpush1.msra.mxu0 0.0
        %2348 = vmatprep.subr.mxu0 0.0
        %2349 = vmatpush1.msra.mxu0 0.0
        %2350 = vmatprep.subr.mxu0 0.0
        %2351 = vmatpush1.msra.mxu0 0.0
        %2352 = vmatprep.subr.mxu0 0.0
        %2353 = vmatpush1.msra.mxu0 0.0
        %2354 = vmatprep.subr.mxu0 0.0
        %2355 = vmatpush1.msra.mxu0 0.0
        %2356 = vmatprep.subr.mxu0 0.0
        %2357 = vmatpush1.msra.mxu0 0.0
        %2358 = vmatprep.subr.mxu0 0.0
        %2359 = vmatpush1.msra.mxu0 0.0
        %2360 = vmatprep.subr.mxu0 0.0
        %2361 = vmatpush1.msra.mxu0 0.0
        %2362 = vmatprep.subr.mxu0 0.0
        %2363 = vmatpush1.msra.mxu0 0.0
        %2364 = vmatprep.subr.mxu0 0.0
        %2365 = vmatpush1.msra.mxu0 0.0
        %2366 = vmatprep.subr.mxu0 0.0
        %2367 = vmatpush1.msra.mxu0 0.0
        %2368 = vmatprep.subr.mxu0 0.0
        %2369 = vmatpush1.msra.mxu0 0.0
        %2370 = vmatprep.subr.mxu0 0.0
        %2371 = vmatpush1.msra.mxu0 0.0
        %2372 = vmatprep.subr.mxu0 0.0
        %2373 = vmatpush1.msra.mxu0 0.0
        %2374 = vmatprep.subr.mxu0 0.0
        %2375 = vmatpush1.msra.mxu0 0.0
        %2376 = vmatprep.subr.mxu0 0.0
        %2377 = vmatpush1.msra.mxu0 0.0
        %2378 = vmatprep.subr.mxu0 0.0
        %2379 = vmatpush1.msra.mxu0 0.0
        %2380 = vmatprep.subr.mxu0 0.0
        %2381 = vmatpush1.msra.mxu0 0.0
        %2382 = vmatprep.subr.mxu0 0.0
        %2383 = vmatpush1.msra.mxu0 0.0
        %2384 = vmatprep.subr.mxu0 0.0
        %2385 = vmatpush1.msra.mxu0 0.0
        %2386 = vmatprep.subr.mxu0 0.0
        %2387 = vmatpush1.msra.mxu0 0.0
        %2388 = vmatprep.subr.mxu0 0.0
        %2389 = vmatpush1.msra.mxu0 0.0
        %2390 = vmatprep.subr.mxu0 0.0
        %2391 = vmatpush1.msra.mxu0 0.0
        %2392 = vmatprep.subr.mxu0 0.0
        %2393 = vmatpush1.msra.mxu0 0.0
        %2394 = vmatprep.subr.mxu0 0.0
        %2395 = vmatpush1.msra.mxu0 0.0
        %2396 = vmatprep.subr.mxu0 0.0
        %2397 = vmatpush1.msra.mxu0 0.0
        %2398 = vmatprep.mubr.f32.mxu0 0.0
        %2399 = vmatmul.mubr.f32.gmra.mrb[0].mxu0 %v2332
        %v2400 = vpop.f32.mrb[0].mxu0
        %v2401 = vadd.f32 0.0, %v2400
        %v2402 = vpop.f32.mrb[0].mxu0
        %2403 = vdwg.mxu0
        %2404 = vrot.lane.b32.xlu0 %v1760, 104
        %v2405 = vpop.permute.xlu0 %2404
        %2406 = vrot.lane.b32.xlu0 %v1824, 104
        %v2407 = vpop.permute.xlu0 %2406
        %2408 = vrot.lane.b32.xlu0 %v1827, 104
        %v2409 = vpop.permute.xlu0 %2408
        %v2410 = vsel %vm938, %v2405, 0
        %v2412 = vsel %vm938, %v2407, 0
        %v2414 = vsel %vm938, %v2409, 0
        %2416 = vmatprep.subr.mxu0 0.0
        %2417 = vmatpush1.xpose.msra.mxu0 %v2412
        %2418 = vmatprep.subr.mxu0 0.0
        %2419 = vmatpush1.xpose.msra.mxu0 %v2414
        %2420 = vmatprep.subr.mxu0 0.0
        %2421 = vmatpush1.xpose.msra.mxu0 0.0
        %2422 = vmatprep.subr.mxu0 0.0
        %2423 = vmatpush1.xpose.msra.mxu0 0.0
        %2424 = vmatprep.subr.mxu0 0.0
        %2425 = vmatpush1.xpose.msra.mxu0 0.0
        %2426 = vmatprep.subr.mxu0 0.0
        %2427 = vmatpush1.xpose.msra.mxu0 0.0
        %2428 = vmatprep.subr.mxu0 0.0
        %2429 = vmatpush1.xpose.msra.mxu0 0.0
        %2430 = vmatprep.subr.mxu0 0.0
        %2431 = vmatpush1.xpose.msra.mxu0 0.0
        %2432 = vmatprep.subr.mxu0 0.0
        %2433 = vmatpush1.xpose.msra.mxu0 0.0
        %2434 = vmatprep.subr.mxu0 0.0
        %2435 = vmatpush1.xpose.msra.mxu0 0.0
        %2436 = vmatprep.subr.mxu0 0.0
        %2437 = vmatpush1.xpose.msra.mxu0 0.0
        %2438 = vmatprep.subr.mxu0 0.0
        %2439 = vmatpush1.xpose.msra.mxu0 0.0
        %2440 = vmatprep.subr.mxu0 0.0
        %2441 = vmatpush1.xpose.msra.mxu0 0.0
        %2442 = vmatprep.subr.mxu0 0.0
        %2443 = vmatpush1.xpose.msra.mxu0 0.0
        %2444 = vmatprep.subr.mxu0 0.0
        %2445 = vmatpush1.xpose.msra.mxu0 0.0
        %2446 = vmatprep.subr.mxu0 0.0
        %2447 = vmatpush1.xpose.msra.mxu0 0.0
        %2448 = vmatprep.subr.mxu0 0.0
        %2449 = vmatpush1.xpose.msra.mxu0 0.0
        %2450 = vmatprep.subr.mxu0 0.0
        %2451 = vmatpush1.xpose.msra.mxu0 0.0
        %2452 = vmatprep.subr.mxu0 0.0
        %2453 = vmatpush1.xpose.msra.mxu0 0.0
        %2454 = vmatprep.subr.mxu0 0.0
        %2455 = vmatpush1.xpose.msra.mxu0 0.0
        %2456 = vmatprep.subr.mxu0 0.0
        %2457 = vmatpush1.xpose.msra.mxu0 0.0
        %2458 = vmatprep.subr.mxu0 0.0
        %2459 = vmatpush1.xpose.msra.mxu0 0.0
        %2460 = vmatprep.subr.mxu0 0.0
        %2461 = vmatpush1.xpose.msra.mxu0 0.0
        %2462 = vmatprep.subr.mxu0 0.0
        %2463 = vmatpush1.xpose.msra.mxu0 0.0
        %2464 = vmatprep.subr.mxu0 0.0
        %2465 = vmatpush1.xpose.msra.mxu0 0.0
        %2466 = vmatprep.subr.mxu0 0.0
        %2467 = vmatpush1.xpose.msra.mxu0 0.0
        %2468 = vmatprep.subr.mxu0 0.0
        %2469 = vmatpush1.xpose.msra.mxu0 0.0
        %2470 = vmatprep.subr.mxu0 0.0
        %2471 = vmatpush1.xpose.msra.mxu0 0.0
        %2472 = vmatprep.subr.mxu0 0.0
        %2473 = vmatpush1.xpose.msra.mxu0 0.0
        %2474 = vmatprep.subr.mxu0 0.0
        %2475 = vmatpush1.xpose.msra.mxu0 0.0
        %2476 = vmatprep.subr.mxu0 0.0
        %2477 = vmatpush1.xpose.msra.mxu0 0.0
        %2478 = vmatprep.subr.mxu0 0.0
        %2479 = vmatpush1.xpose.msra.mxu0 0.0
        %2480 = vmatprep.mubr.f32.mxu0 0.0
        %2481 = vmatmul.mubr.f32.gmra.mrb[0].mxu0 %v2410
        %v2482 = vpop.f32.mrb[0].mxu0
        %v2483 = vadd.f32 0.0, %v2482
        %v2484 = vpop.f32.mrb[0].mxu0
        %2485 = vdwg.mxu0
        %v2486 = vsel %vm1607, %v2483, -inf
        %2487 = vmax.xlane.f32.xlu0 %v2486
        %v2488 = vpop.xlane.xlu0 %2487
        %v2489 = vsub.f32 %v2483, %v2488
        %v2490 = vmul.f32 %v2489, 1.442695
        %v2491 = vpow.pop %v2490
        %v2492 = vsel %vm1607, %v2491, 0.0
        %2493 = vadd.xlane.f32.xlu0 %v2492
        %v2494 = vpop.xlane.xlu0 %2493
        %v2495 = vrcp.pop %v2494
        %v2496 = vmul.f32 %v2491, %v2495
        %2497 = vrot.lane.b32.xlu0 %v1889, 104
        %v2498 = vpop.permute.xlu0 %2497
        %2499 = vrot.lane.b32.xlu0 %v1892, 104
        %v2500 = vpop.permute.xlu0 %2499
        %v2504 = vsel %vm1607, %v2496, 0
        %2506 = vmatprep.subr.mxu0 0.0
        %2507 = vmatpush1.msra.mxu0 %v2498
        %2508 = vmatprep.subr.mxu0 0.0
        %2509 = vmatpush1.msra.mxu0 %v2500
        %2510 = vmatprep.subr.mxu0 0.0
        %2511 = vmatpush1.msra.mxu0 0.0
        %2512 = vmatprep.subr.mxu0 0.0
        %2513 = vmatpush1.msra.mxu0 0.0
        %2514 = vmatprep.subr.mxu0 0.0
        %2515 = vmatpush1.msra.mxu0 0.0
        %2516 = vmatprep.subr.mxu0 0.0
        %2517 = vmatpush1.msra.mxu0 0.0
        %2518 = vmatprep.subr.mxu0 0.0
        %2519 = vmatpush1.msra.mxu0 0.0
        %2520 = vmatprep.subr.mxu0 0.0
        %2521 = vmatpush1.msra.mxu0 0.0
        %2522 = vmatprep.subr.mxu0 0.0
        %2523 = vmatpush1.msra.mxu0 0.0
        %2524 = vmatprep.subr.mxu0 0.0
        %2525 = vmatpush1.msra.mxu0 0.0
        %2526 = vmatprep.subr.mxu0 0.0
        %2527 = vmatpush1.msra.mxu0 0.0
        %2528 = vmatprep.subr.mxu0 0.0
        %2529 = vmatpush1.msra.mxu0 0.0
        %2530 = vmatprep.subr.mxu0 0.0
        %2531 = vmatpush1.msra.mxu0 0.0
        %2532 = vmatprep.subr.mxu0 0.0
        %2533 = vmatpush1.msra.mxu0 0.0
        %2534 = vmatprep.subr.mxu0 0.0
        %2535 = vmatpush1.msra.mxu0 0.0
        %2536 = vmatprep.subr.mxu0 0.0
        %2537 = vmatpush1.msra.mxu0 0.0
        %2538 = vmatprep.subr.mxu0 0.0
        %2539 = vmatpush1.msra.mxu0 0.0
        %2540 = vmatprep.subr.mxu0 0.0
        %2541 = vmatpush1.msra.mxu0 0.0
        %2542 = vmatprep.subr.mxu0 0.0
        %2543 = vmatpush1.msra.mxu0 0.0
        %2544 = vmatprep.subr.mxu0 0.0
        %2545 = vmatpush1.msra.mxu0 0.0
        %2546 = vmatprep.subr.mxu0 0.0
        %2547 = vmatpush1.msra.mxu0 0.0
        %2548 = vmatprep.subr.mxu0 0.0
        %2549 = vmatpush1.msra.mxu0 0.0
        %2550 = vmatprep.subr.mxu0 0.0
        %2551 = vmatpush1.msra.mxu0 0.0
        %2552 = vmatprep.subr.mxu0 0.0
        %2553 = vmatpush1.msra.mxu0 0.0
        %2554 = vmatprep.subr.mxu0 0.0
        %2555 = vmatpush1.msra.mxu0 0.0
        %2556 = vmatprep.subr.mxu0 0.0
        %2557 = vmatpush1.msra.mxu0 0.0
        %2558 = vmatprep.subr.mxu0 0.0
        %2559 = vmatpush1.msra.mxu0 0.0
        %2560 = vmatprep.subr.mxu0 0.0
        %2561 = vmatpush1.msra.mxu0 0.0
        %2562 = vmatprep.subr.mxu0 0.0
        %2563 = vmatpush1.msra.mxu0 0.0
        %2564 = vmatprep.subr.mxu0 0.0
        %2565 = vmatpush1.msra.mxu0 0.0
        %2566 = vmatprep.subr.mxu0 0.0
        %2567 = vmatpush1.msra.mxu0 0.0
        %2568 = vmatprep.subr.mxu0 0.0
        %2569 = vmatpush1.msra.mxu0 0.0
        %2570 = vmatprep.mubr.f32.mxu0 0.0
        %2571 = vmatmul.mubr.f32.gmra.mrb[0].mxu0 %v2504
        %v2572 = vpop.f32.mrb[0].mxu0
        %v2573 = vadd.f32 0.0, %v2572
        %v2574 = vpop.f32.mrb[0].mxu0
        %2575 = vdwg.mxu0
        %2577 = vrot.lane.b32.xlu0 %v2229, 8
        %v2578 = vpop.permute.xlu0 %2577
        %2581 = vrot.lane.b32.xlu0 %v2401, 16
        %v2582 = vpop.permute.xlu0 %2581
        %2585 = vrot.lane.b32.xlu0 %v2573, 24
        %v2586 = vpop.permute.xlu0 %2585
        %v2588 = vsel %vm938, %v2055, %v2578
        %v2589 = vsel %vm1607, %v2588, %v2582
        %v2590 = vsel %vm1609, %v2589, %v2586
        %v2591 = vld [vmem:[%s764] sm:$0xf]
        %v2592 = vld [vmem:[%s764 + $0x4] sm:$0xf]
        %v2593 = vld [vmem:[%s764 + $0x8] sm:$0xf]
        %v2594 = vld [vmem:[%s764 + $0xc] sm:$0xf]
        %v2595 = vpack.c.bf16 %v2590, %v2590
        %v2596 = vlaneseq
        %v2597 = vshrl.u32 %v2596, 7
        %v2598 = vsub.s32 7, %v2597
        %v2599 = vrot.slane %v793, %v2598
        %v2604 = vunpack.c.l.b16 %v2591
        %v2605 = vunpack.c.l.b16 %v2592
        %v2606 = vunpack.c.l.b16 %v2593
        %v2607 = vunpack.c.l.b16 %v2594
        %v2608 = vpack.c.b16 %v2605, %v2604
        %v2609 = vpack.c.b16 %v2607, %v2606
        %v2613 = vsel %vm813, %v2595, 0
        %2615 = vmatprep.subr.bf16.mxu0 0
        %2616 = vmatpush1.bf16.msra.mxu0 %v2608
        %2617 = vmatprep.subr.bf16.mxu0 0
        %2618 = vmatpush1.bf16.msra.mxu0 %v2609
        %2619 = vmatprep.subr.bf16.mxu0 0
        %2620 = vmatpush1.bf16.msra.mxu0 0
        %2621 = vmatprep.subr.bf16.mxu0 0
        %2622 = vmatpush1.bf16.msra.mxu0 0
        %2623 = vmatprep.subr.bf16.mxu0 0
        %2624 = vmatpush1.bf16.msra.mxu0 0
        %2625 = vmatprep.subr.bf16.mxu0 0
        %2626 = vmatpush1.bf16.msra.mxu0 0
        %2627 = vmatprep.subr.bf16.mxu0 0
        %2628 = vmatpush1.bf16.msra.mxu0 0
        %2629 = vmatprep.subr.bf16.mxu0 0
        %2630 = vmatpush1.bf16.msra.mxu0 0
        %2631 = vmatprep.subr.bf16.mxu0 0
        %2632 = vmatpush1.bf16.msra.mxu0 0
        %2633 = vmatprep.subr.bf16.mxu0 0
        %2634 = vmatpush1.bf16.msra.mxu0 0
        %2635 = vmatprep.subr.bf16.mxu0 0
        %2636 = vmatpush1.bf16.msra.mxu0 0
        %2637 = vmatprep.subr.bf16.mxu0 0
        %2638 = vmatpush1.bf16.msra.mxu0 0
        %2639 = vmatprep.subr.bf16.mxu0 0
        %2640 = vmatpush1.bf16.msra.mxu0 0
        %2641 = vmatprep.subr.bf16.mxu0 0
        %2642 = vmatpush1.bf16.msra.mxu0 0
        %2643 = vmatprep.subr.bf16.mxu0 0
        %2644 = vmatpush1.bf16.msra.mxu0 0
        %2645 = vmatprep.subr.bf16.mxu0 0
        %2646 = vmatpush1.bf16.msra.mxu0 0
        %2647 = vmatprep.mubr.bf16.mxu0 0
        %2648 = vmatmul.mubr.bf16.gmra.mrb[0].mxu0 %v2613
        %v2649 = vpop.f32.mrb[0].mxu0
        %v2650 = vadd.f32 %v2599, %v2649
        %v2651 = vpop.f32.mrb[0].mxu0
        %v2652 = vpop.f32.mrb[0].mxu0
        %v2653 = vpop.f32.mrb[0].mxu0
        %2654 = vdwg.mxu0
        %v2655 = vadd.f32 %v1699, %v2650
        %v2656 = vsel %vm813, %v2655, 0.0
        %2657 = vadd.xlane.f32.xlu0 %v2656
        %v2658 = vpop.xlane.xlu0 %2657
        %v2659 = vmul.f32 %v2658, %v1679
        %v2660 = vsub.f32 %v2655, %v2659
        %v2661 = vmul.f32 %v2660, %v2660
        %v2662 = vsel %vm813, %v2661, 0.0
        %2663 = vadd.xlane.f32.xlu0 %v2662
        %v2664 = vpop.xlane.xlu0 %2663
        %v2665 = vmul.f32 %v2664, %v1679
        %v2666 = vadd.f32 %v2665, 1e-05
        %v2667 = vrsqrt.pop %v2666
        %v2668 = vmul.f32 %v2660, %v2667
        %v2669 = vlaneseq
        %v2670 = vshrl.u32 %v2669, 7
        %v2671 = vsub.s32 3, %v2670
        %v2672 = vrot.slane %v794, %v2671
        %v2673 = vmul.f32 %v2668, %v2672
        %v2674 = vlaneseq
        %v2675 = vshrl.u32 %v2674, 7
        %v2676 = vsub.s32 4, %v2675
        %v2677 = vrot.slane %v794, %v2676
        %v2678 = vadd.f32 %v2673, %v2677
        %v2679 = vld [vmem:[%s769] sm:$0xf]
        %v2680 = vld [vmem:[%s769 + $0x4] sm:$0xf]
        %v2681 = vld [vmem:[%s769 + $0x8] sm:$0xf]
        %v2682 = vld [vmem:[%s769 + $0xc] sm:$0xf]
        %v2683 = vld [vmem:[%s769 + $0x10] sm:$0x1]
        %v2684 = vpack.c.bf16 %v2678, %v2678
        %v2685 = vunpack.c.l.bf16 %v2683
        %v2686 = vlaneseq
        %v2687 = vshrl.u32 %v2686, 7
        %v2688 = vsub.s32 0, %v2687
        %v2689 = vrot.slane %v2685, %v2688
        %v2694 = vunpack.c.l.b16 %v2679
        %v2695 = vunpack.c.l.b16 %v2680
        %v2696 = vunpack.c.l.b16 %v2681
        %v2697 = vunpack.c.l.b16 %v2682
        %v2698 = vpack.c.b16 %v2695, %v2694
        %v2699 = vpack.c.b16 %v2697, %v2696
        %v2703 = vsel %vm813, %v2684, 0
        %2705 = vmatprep.subr.bf16.mxu0 0
        %2706 = vmatpush1.bf16.msra.mxu0 %v2698
        %2707 = vmatprep.subr.bf16.mxu0 0
        %2708 = vmatpush1.bf16.msra.mxu0 %v2699
        %2709 = vmatprep.subr.bf16.mxu0 0
        %2710 = vmatpush1.bf16.msra.mxu0 0
        %2711 = vmatprep.subr.bf16.mxu0 0
        %2712 = vmatpush1.bf16.msra.mxu0 0
        %2713 = vmatprep.subr.bf16.mxu0 0
        %2714 = vmatpush1.bf16.msra.mxu0 0
        %2715 = vmatprep.subr.bf16.mxu0 0
        %2716 = vmatpush1.bf16.msra.mxu0 0
        %2717 = vmatprep.subr.bf16.mxu0 0
        %2718 = vmatpush1.bf16.msra.mxu0 0
        %2719 = vmatprep.subr.bf16.mxu0 0
        %2720 = vmatpush1.bf16.msra.mxu0 0
        %2721 = vmatprep.subr.bf16.mxu0 0
        %2722 = vmatpush1.bf16.msra.mxu0 0
        %2723 = vmatprep.subr.bf16.mxu0 0
        %2724 = vmatpush1.bf16.msra.mxu0 0
        %2725 = vmatprep.subr.bf16.mxu0 0
        %2726 = vmatpush1.bf16.msra.mxu0 0
        %2727 = vmatprep.subr.bf16.mxu0 0
        %2728 = vmatpush1.bf16.msra.mxu0 0
        %2729 = vmatprep.subr.bf16.mxu0 0
        %2730 = vmatpush1.bf16.msra.mxu0 0
        %2731 = vmatprep.subr.bf16.mxu0 0
        %2732 = vmatpush1.bf16.msra.mxu0 0
        %2733 = vmatprep.subr.bf16.mxu0 0
        %2734 = vmatpush1.bf16.msra.mxu0 0
        %2735 = vmatprep.subr.bf16.mxu0 0
        %2736 = vmatpush1.bf16.msra.mxu0 0
        %2737 = vmatprep.mubr.bf16.mxu0 0
        %2738 = vmatmul.mubr.bf16.gmra.mrb[0].mxu0 %v2703
        %v2739 = vpop.f32.mrb[0].mxu0
        %v2740 = vadd.f32 %v2689, %v2739
        %v2741 = vpop.f32.mrb[0].mxu0
        %v2742 = vpop.f32.mrb[0].mxu0
        %v2743 = vpop.f32.mrb[0].mxu0
        %2744 = vdwg.mxu0
        %v2745 = vmax.f32 %v2740, 0.0
        %v2746 = vld [vmem:[%s774] sm:$0xf]
        %v2747 = vld [vmem:[%s774 + $0x4] sm:$0xf]
        %v2748 = vld [vmem:[%s774 + $0x8] sm:$0xf]
        %v2749 = vld [vmem:[%s774 + $0xc] sm:$0xf]
        %v2750 = vld [vmem:[%s774 + $0x10] sm:$0xf]
        %v2751 = vld [vmem:[%s774 + $0x14] sm:$0xf]
        %v2752 = vld [vmem:[%s774 + $0x18] sm:$0xf]
        %v2753 = vld [vmem:[%s774 + $0x1c] sm:$0xf]
        %v2754 = vpack.c.bf16 %v2745, %v2745
        %v2755 = vlaneseq
        %v2756 = vshrl.u32 %v2755, 7
        %v2757 = vsub.s32 0, %v2756
        %v2758 = vrot.slane %v794, %v2757
        %v2767 = vunpack.c.l.b16 %v2746
        %v2768 = vunpack.c.l.b16 %v2747
        %v2769 = vunpack.c.l.b16 %v2748
        %v2770 = vunpack.c.l.b16 %v2749
        %v2771 = vunpack.c.l.b16 %v2750
        %v2772 = vunpack.c.l.b16 %v2751
        %v2773 = vunpack.c.l.b16 %v2752
        %v2774 = vunpack.c.l.b16 %v2753
        %v2775 = vpack.c.b16 %v2768, %v2767
        %v2776 = vpack.c.b16 %v2770, %v2769
        %v2777 = vpack.c.b16 %v2772, %v2771
        %v2778 = vpack.c.b16 %v2774, %v2773
        %vm2783 = vcmask 523264
        %v2785 = vsel %vm2783, %v2754, 0
        %2787 = vmatprep.subr.bf16.mxu0 0
        %2788 = vmatpush1.bf16.msra.mxu0 %v2775
        %2789 = vmatprep.subr.bf16.mxu0 0
        %2790 = vmatpush1.bf16.msra.mxu0 %v2776
        %2791 = vmatprep.subr.bf16.mxu0 0
        %2792 = vmatpush1.bf16.msra.mxu0 %v2777
        %2793 = vmatprep.subr.bf16.mxu0 0
        %2794 = vmatpush1.bf16.msra.mxu0 %v2778
        %2795 = vmatprep.subr.bf16.mxu0 0
        %2796 = vmatpush1.bf16.msra.mxu0 0
        %2797 = vmatprep.subr.bf16.mxu0 0
        %2798 = vmatpush1.bf16.msra.mxu0 0
        %2799 = vmatprep.subr.bf16.mxu0 0
        %2800 = vmatpush1.bf16.msra.mxu0 0
        %2801 = vmatprep.subr.bf16.mxu0 0
        %2802 = vmatpush1.bf16.msra.mxu0 0
        %2803 = vmatprep.subr.bf16.mxu0 0
        %2804 = vmatpush1.bf16.msra.mxu0 0
        %2805 = vmatprep.subr.bf16.mxu0 0
        %2806 = vmatpush1.bf16.msra.mxu0 0
        %2807 = vmatprep.subr.bf16.mxu0 0
        %2808 = vmatpush1.bf16.msra.mxu0 0
        %2809 = vmatprep.subr.bf16.mxu0 0
        %2810 = vmatpush1.bf16.msra.mxu0 0
        %2811 = vmatprep.subr.bf16.mxu0 0
        %2812 = vmatpush1.bf16.msra.mxu0 0
        %2813 = vmatprep.subr.bf16.mxu0 0
        %2814 = vmatpush1.bf16.msra.mxu0 0
        %2815 = vmatprep.subr.bf16.mxu0 0
        %2816 = vmatpush1.bf16.msra.mxu0 0
        %2817 = vmatprep.subr.bf16.mxu0 0
        %2818 = vmatpush1.bf16.msra.mxu0 0
        %2819 = vmatprep.mubr.bf16.mxu0 0
        %2820 = vmatmul.mubr.bf16.gmra.mrb[0].mxu0 %v2785
        %v2821 = vpop.f32.mrb[0].mxu0
        %v2822 = vadd.f32 %v2758, %v2821
        %v2823 = vpop.f32.mrb[0].mxu0
        %v2824 = vpop.f32.mrb[0].mxu0
        %v2825 = vpop.f32.mrb[0].mxu0
        %2826 = vdwg.mxu0
        %v2827 = vadd.f32 %v2678, %v2822
        %v2828 = vsel %vm813, %v2827, 0.0
        %2829 = vadd.xlane.f32.xlu0 %v2828
        %v2830 = vpop.xlane.xlu0 %2829
        %v2831 = vmul.f32 %v2830, %v1679
        %v2832 = vsub.f32 %v2827, %v2831
        %v2833 = vmul.f32 %v2832, %v2832
        %v2834 = vsel %vm813, %v2833, 0.0
        %2835 = vadd.xlane.f32.xlu0 %v2834
        %v2836 = vpop.xlane.xlu0 %2835
        %v2837 = vmul.f32 %v2836, %v1679
        %v2838 = vadd.f32 %v2837, 1e-05
        %v2839 = vrsqrt.pop %v2838
        %v2840 = vmul.f32 %v2832, %v2839
        %v2841 = vlaneseq
        %v2842 = vshrl.u32 %v2841, 7
        %v2843 = vsub.s32 5, %v2842
        %v2844 = vrot.slane %v794, %v2843
        %v2845 = vmul.f32 %v2840, %v2844
        %v2846 = vlaneseq
        %v2847 = vshrl.u32 %v2846, 7
        %v2848 = vsub.s32 6, %v2847
        %v2849 = vrot.slane %v794, %v2848
        %v2850 = vadd.f32 %v2845, %v2849
        %2851 = vst.msk [vmem:[#allocation2] sm:$0xff] %vm813, %v2850
        %v2852 = vld [vmem:[%s14] sm:$0x3]
        %p2853 = scmp.eq.s32.totalorder %s34, 1
        // Predicated region
        $region89: #{transformer_decoder.1} parent=79 // pred_check
          %p2854 = pneg %p2853
        $region90: #{transformer_decoder.1} parent=79 // pred_check_branch
          %2856 = sbr.rel (%p2854) target = $region92
        $region91: #{transformer_decoder.1} parent=79 // pred_region
          %v2857 = vsel %vm813, %v2850, 0.0
          %2858 = vadd.xlane.f32.xlu0 %v2857
          %v2859 = vpop.xlane.xlu0 %2858
          %v2860 = vmul.f32 %v2859, %v1679
          %v2861 = vsub.f32 %v2850, %v2860
          %v2862 = vmul.f32 %v2861, %v2861
          %v2863 = vsel %vm813, %v2862, 0.0
          %2864 = vadd.xlane.f32.xlu0 %v2863
          %v2865 = vpop.xlane.xlu0 %2864
          %v2866 = vmul.f32 %v2865, %v1679
          %v2867 = vadd.f32 %v2866, 1e-05
          %v2868 = vrsqrt.pop %v2867
          %v2869 = vmul.f32 %v2861, %v2868
          %v2870 = vlaneseq
          %v2871 = vshrl.u32 %v2870, 7
          %v2872 = vsub.s32 0, %v2871
          %v2873 = vrot.slane %v2852, %v2872
          %v2874 = vmul.f32 %v2869, %v2873
          %v2875 = vlaneseq
          %v2876 = vshrl.u32 %v2875, 7
          %v2877 = vsub.s32 1, %v2876
          %v2878 = vrot.slane %v2852, %v2877
          %v2879 = vadd.f32 %v2874, %v2878
          %2880 = vst.msk [vmem:[%s778] sm:$0xff] %vm813, %v2879
        $region92: #{transformer_decoder.1} parent=79 // pred_fallthru
          _
        %p2881 = scmp.lt.s32.totalorder %s33, 1
        %s2882 = scalar_select %p2881, %s33, 1
        %s2883 = smul.addr %s2882, 8
        %s2884 = scalar_lea.vmem %s15, %s2883
        // Predicated region
        $region93: #{transformer_decoder.1} parent=79 // pred_check
          %p2885 = pneg %p444
        $region94: #{transformer_decoder.1} parent=79 // pred_check_branch
          %2887 = sbr.rel (%p2885) target = $region96
        $region95: #{transformer_decoder.1} parent=79 // pred_region
          _
        $region96: #{transformer_decoder.1} parent=79 // pred_fallthru
          _
      $region80: #{transformer_decoder.1} parent=5 // pred_fallthru
        _
      %p2888 = scmp.le.s32.totalorder 2, %s24
      // Predicated region
      $region97: #{transformer_decoder.1} parent=5 // pred_check
        %p2889 = pneg %p2888
      $region98: #{transformer_decoder.1} parent=5 // pred_check_branch
        %2891 = sbr.rel (%p2889) target = $region100
      $region99: #{transformer_decoder.1} parent=5 // pred_region
        %s2892 = ssub.s32 %s24, 2
        // Predicated region
        $region101: #{transformer_decoder.1} parent=99 // pred_check
          %p2893 = pneg %p450
        $region102: #{transformer_decoder.1} parent=99 // pred_check_branch
          %2895 = sbr.rel (%p2893) target = $region104
        $region103: #{transformer_decoder.1} parent=99 // pred_region
          %p2896 = scmp.lt.s32.totalorder %s35, 1
          %s2897 = scalar_select %p2896, %s35, 1
          %s2898 = smul.addr %s2897, 8
          %s2899 = scalar_lea.vmem %s15, %s2898
        $region104: #{transformer_decoder.1} parent=99 // pred_fallthru
          _
      $region100: #{transformer_decoder.1} parent=5 // pred_fallthru
        _
    $region6: #{transformer_decoder.1} parent=1 // loop_footer
      %s28 = sadd.s32 1, %s24
    $region7: #{transformer_decoder.1} parent=1 // loop_footer_branch
      %23 = sbr.rel target = $region3
    $region8: #{transformer_decoder.1} parent=1 // loop_exit
      _
    %2900 = vsyncpa [#allocation4], 1
    %s2901 = scalar_lea.sflag [#allocation4], 1
    %2902 = vsyncpa %s2901, 1

</llo_original>
